<compile_context>
chip_gen: v6e
topology: v6e:2x2x1
jax: 0.10.0
libtpu: 0.0.40
codegen_flags: <defaults>
</compile_context>

<pallas_src>
import functools
import math

import jax
import jax.numpy as jnp
from jax import lax
from jax.experimental import pallas as pl
from jax.experimental.pallas import tpu as pltpu


# Set to jnp.bfloat16 on v6e/v7x to hit the bf16 MXU path for the big input
# projections (keep preferred_element_type=f32); re-verify the 5e-3 tolerance.
_MXU_DTYPE = jnp.float32

# Fully unroll the recurrence (static Python loop -> static slices) when the
# trip count is at most this; otherwise use lax.fori_loop (dynamic slices).
_FULL_UNROLL_MAX_TRIPS = 8


# ------------------------------------------------------------------------------
# shared elementwise helpers (pure jnp -> usable both in kernels and reference)
# ------------------------------------------------------------------------------

def _recip_exact(x):
    return 1.0 / x


def _recip_fast(x):
    # EUP approximate reciprocal + one Newton step (~f32 accurate, no VPU divide)
    r = pl.reciprocal(x, approx=True)
    return r * (2.0 - x * r)


def _sigmoid(x):
    return 1.0 / (1.0 + jnp.exp(-x))


def _sigmoid_k(x):
    # sigmoid via tanh: single EUP op, no f32 divide on the recurrent critical path
    return 0.5 * jnp.tanh(0.5 * x) + 0.5


def _softplus(x):
    # matches torch.nn.Softplus(beta=1, threshold=20)
    return jnp.where(x > 20.0, x, jnp.log(1.0 + jnp.exp(jnp.minimum(x, 20.0))))


_LANCZOS_G = 7.0
_LANCZOS_C = (
    0.99999999999980993, 676.5203681218851, -1259.1392167224028,
    771.32342877765313, -176.61502916214059, 12.507343278686905,
    -0.13857109526572012, 9.9843695780195716e-6, 1.5056327351493116e-7)


def _lgamma(x, recip=_recip_exact):
    # Lanczos approximation, valid for x > 0 (all arguments here are positive).
    z = x - 1.0
    base = z + _LANCZOS_G + 0.5
    s = jnp.full_like(z, _LANCZOS_C[0])
    for i in range(1, 9):
        s = s + _LANCZOS_C[i] * recip(z + float(i))
    return (0.5 * math.log(2.0 * math.pi)
            + (z + 0.5) * jnp.log(base) - base + jnp.log(s))


# HardKuma support (l, r) = (-0.1, 1.1) as in the reference KumaGate
_L, _R = -0.1, 1.1
_LOG_T0 = math.log((0.0 - _L) / (_R - _L))
_LOG_T1 = math.log((1.0 - _L) / (_R - _L))


def _hardkuma_stats(a, b, recip=_recip_exact):
    """Given clamped Kuma params a, b returns (P[z=0], P[z=1], hard mean)."""
    eps = 1e-12

    def cdf_at(log_x):                      # Kuma CDF(x) = 1 - (1 - x^a)^b
        xa = jnp.exp(a * log_x)
        return 1.0 - jnp.exp(b * jnp.log(jnp.clip(1.0 - xa, eps, 1.0)))

    p0 = cdf_at(_LOG_T0)                    # mass at exactly 0
    p1 = 1.0 - cdf_at(_LOG_T1)              # mass at exactly 1

    # Kuma mean: b * Beta(1 + 1/a, b).  The 3 lgammas are evaluated in ONE
    # stacked pass (shared vregs -> 3x fewer transcendental vreg-ops).
    u = 1.0 + recip(a)
    n0 = a.shape[0]
    args = jnp.concatenate([u, b, u + b], axis=0)
    lg = _lgamma(args, recip)
    kmean = b * jnp.exp(lg[:n0] + lg[n0:2 * n0] - lg[2 * n0:])
    # TODO(synk): exact HardKuma.mean() semantics of the original repo; we use
    # the stretched Kuma mean clamped to the hard support [0, 1].
    hmean = jnp.clip(_L + (_R - _L) * kmean, 0.0, 1.0)
    return p0, p1, hmean


# ------------------------------------------------------------------------------
# shared in-kernel LSTM pieces
# ------------------------------------------------------------------------------

def _lstm_gates(gates, h_prev, c_prev, m, H):
    """gates: [B, 4H] with column order [i, f, o, g] (sigmoid gates contiguous)."""
    sig = _sigmoid_k(gates[:, 0:3 * H])
    i = sig[:, 0:H]
    f = sig[:, H:2 * H]
    o = sig[:, 2 * H:3 * H]
    g = jnp.tanh(gates[:, 3 * H:4 * H])
    c_new = f * c_prev + i * g
    h_new = o * jnp.tanh(c_new)
    # mask-gated update == pack_padded_sequence semantics for right-padded seqs
    # (m is exactly 0/1, so the "lerp" form is exact and one VPU op cheaper).
    h_new = h_prev + m * (h_new - h_prev)
    c_new = c_prev + m * (c_new - c_prev)
    return h_new, c_new


def _bilstm_loop(xw_s, mask_col_ref, whh_f, whh_b, T, B, H,
                 hf_store=None, hb_store=None):
    """Interleaved fwd/bwd recurrence over the precomputed input projection.

    xw_s holds x@Wih + bias (fwd gates in [:, :4H], bwd gates in [:, 4H:]),
    flattened time-major as rows n = t*B + b.  State stays in vregs.
    """
    U = 2 if T % 2 == 0 else 1              # manual unroll (LLO visibility)
    trip = T // U

    def step(s, carry):
        hf, cf, hb, cb = carry
        for k in range(U):
            t = s * U + k
            tb = T - 1 - t
            # forward direction, timestep t
            gf = (xw_s[pl.ds(t * B, B), 0:4 * H]
                  + jnp.dot(hf, whh_f, preferred_element_type=jnp.float32))
            hf, cf = _lstm_gates(gf, hf, cf,
                                 mask_col_ref[pl.ds(t * B, B), :], H)
            # backward direction, timestep T-1-t (independent -> co-scheduled)
            gb = (xw_s[pl.ds(tb * B, B), 4 * H:8 * H]
                  + jnp.dot(hb, whh_b, preferred_element_type=jnp.float32))
            hb, cb = _lstm_gates(gb, hb, cb,
                                 mask_col_ref[pl.ds(tb * B, B), :], H)
            if hf_store is not None:
                hf_store[pl.ds(t * B, B), :] = hf
                hb_store[pl.ds(tb * B, B), :] = hb
        return hf, cf, hb, cb

    zeros = jnp.zeros((B, H), jnp.float32)
    carry = (zeros, zeros, zeros, zeros)
    if trip <= _FULL_UNROLL_MAX_TRIPS:
        # Fully unrolled static loop: static slice offsets, full scheduler
        # visibility across the whole (short) recurrence.
        for s in range(trip):
            carry = step(s, carry)
        return carry
    return lax.fori_loop(0, trip, step, carry)


# ------------------------------------------------------------------------------
# Pallas kernel 1: latent model = BiLSTM + fused KumaGate + deterministic z
# ------------------------------------------------------------------------------

def _latent_kernel(emb_ref, mask_col_ref, mask_row_ref,
                   wih_ref, b_ref, whh_f_ref, whh_b_ref,
                   wab_t_ref, bab_t_ref,
                   z_ref,
                   xw_s, hf_s, hb_s, *, T, B, H):
    # --- hoisted input projection: ONE [N,E]x[E,8H] MXU matmul, bias folded ---
    # (latent path is specialized: gate is all-ones, so no gate multiply)
    x = emb_ref[...].astype(_MXU_DTYPE)
    xw_s[...] = (jnp.dot(x, wih_ref[...].astype(_MXU_DTYPE),
                         preferred_element_type=jnp.float32) + b_ref[...])

    whh_f = whh_f_ref[...]
    whh_b = whh_b_ref[...]
    _bilstm_loop(xw_s, mask_col_ref, whh_f, whh_b, T, B, H,
                 hf_store=hf_s, hb_store=hb_s)

    # --- fused KumaGate, lane-dense: (a, b) as a [2, N] row slab -------------
    nt = (((1,), (1,)), ((), ()))           # contract last dims  ->  W @ H.T
    ab = (lax.dot_general(wab_t_ref[:, 0:H], hf_s[...], nt,
                          preferred_element_type=jnp.float32)
          + lax.dot_general(wab_t_ref[:, H:2 * H], hb_s[...], nt,
                            preferred_element_type=jnp.float32)
          + bab_t_ref[...])
    ab = jnp.clip(_softplus(ab), 1e-6, 100.0)          # as in KumaGate
    a = ab[0:1, :]
    b = ab[1:2, :]

    # deterministic (eval-mode) HardKuma decision
    p0, p1, hmean = _hardkuma_stats(a, b, recip=_recip_fast)
    pc = 1.0 - p0 - p1
    zero_one = jnp.where(p0 > p1, 0.0, 1.0)
    z = jnp.where(jnp.logical_and(pc > p0, pc > p1), hmean, zero_one)
    z_ref[...] = jnp.where(mask_row_ref[...] > 0.0, z, 0.0)   # lane-dense store


# ------------------------------------------------------------------------------
# Pallas kernel 2: classifier = gated BiLSTM + fused Linear+Sigmoid output
# ------------------------------------------------------------------------------

def _clf_kernel(emb_ref, gate_ref, mask_col_ref,
                wih_ref, b_ref, whh_f_ref, whh_b_ref,
                w_out_ref, b_out_ref,
                y_ref,
                xw_s, *, T, B, H):
    # gate (= mask*z) is a per-token scalar: one broadcast row-scale of the
    # embeddings (cheaper than scaling the [N,8H] projection, since E < 8H),
    # then one big [N,E]x[E,8H] MXU matmul with the bias folded in.
    x = (emb_ref[...] * gate_ref[...]).astype(_MXU_DTYPE)
    xw_s[...] = (jnp.dot(x, wih_ref[...].astype(_MXU_DTYPE),
                         preferred_element_type=jnp.float32) + b_ref[...])

    whh_f = whh_f_ref[...]
    whh_b = whh_b_ref[...]
    # classifier only needs the final fwd/bwd states -> no per-step stores at all
    hf, _cf, hb, _cb = _bilstm_loop(xw_s, mask_col_ref, whh_f, whh_b, T, B, H)

    # fused output layer: Linear(2H -> O) + Sigmoid (dropout = identity in eval)
    logits = (jnp.dot(hf, w_out_ref[0:H, :], preferred_element_type=jnp.float32)
              + jnp.dot(hb, w_out_ref[H:2 * H, :],
                        preferred_element_type=jnp.float32)
              + b_out_ref[...])
    y_ref[...] = _sigmoid_k(logits)


# ------------------------------------------------------------------------------
# Full forward (glue: embedding gather + flattening only; no extra kernels)
# ------------------------------------------------------------------------------

def latent_rationale_forward(params, input_ids, lengths):
    # NOTE: python-level max(lengths) mirrors `max(inputs['lengths'])` in the
    # torch module; every distinct max length retraces (documented hazard).
    max_len = int(max(lengths))
    ids = input_ids[:, :max_len]
    B, T = ids.shape
    N = T * B
    H = params['clf']['whh_f'].shape[0]
    E = params['embedding'].shape[1]
    O = params['w_out'].shape[1]

    mask_bt = (ids != 0)                                        # [B, T] bool
    # gather directly in time-major order -> rows n = t*B + b
    emb_flat = params['embedding'][ids.T].astype(jnp.float32).reshape(N, E)
    mask_col = mask_bt.T.astype(jnp.float32).reshape(N, 1)
    mask_row = mask_col.reshape(1, N)

    vmem = pl.BlockSpec(memory_space=pltpu.MemorySpace.VMEM)
    cparams = pltpu.CompilerParams(vmem_limit_bytes=32 * 1024 * 1024)
    # TODO(synk): for production sizes on v7x (64 MiB VMEM) stream emb/xw over
    # T-chunks (emit_pipeline) and split the batch over the 2 TensorCores.

    lat = params['lat']
    z_row = pl.pallas_call(
        functools.partial(_latent_kernel, T=T, B=B, H=H),
        out_shape=jax.ShapeDtypeStruct((1, N), jnp.float32),
        in_specs=[vmem] * 9,
        out_specs=vmem,
        scratch_shapes=[pltpu.VMEM((N, 8 * H), jnp.float32),
                        pltpu.VMEM((N, H), jnp.float32),
                        pltpu.VMEM((N, H), jnp.float32)],
        compiler_params=cparams,
    )(emb_flat, mask_col, mask_row,
      lat['wih'], lat['b'], lat['whh_f'], lat['whh_b'],
      params['kuma_wab_t'], params['kuma_bab_t'])

    gate_col = z_row.reshape(N, 1)        # z already masked -> mask*z == z

    clf = params['clf']
    y = pl.pallas_call(
        functools.partial(_clf_kernel, T=T, B=B, H=H),
        out_shape=jax.ShapeDtypeStruct((B, O), jnp.float32),
        in_specs=[vmem] * 9,
        out_specs=vmem,
        scratch_shapes=[pltpu.VMEM((N, 8 * H), jnp.float32)],
        compiler_params=cparams,
    )(emb_flat, gate_col, mask_col,
      clf['wih'], clf['b'], clf['whh_f'], clf['whh_b'],
      params['w_out'], params['b_out'])

    z_bt = z_row.reshape(T, B).T                                # [B, T]
    return (y, None), z_bt


# ------------------------------------------------------------------------------
# deterministic parameter init (synthetic, no checkpoint loading)
# ------------------------------------------------------------------------------

def init_params(key, vocab=50, E=32, H=32, O=2):
    ks = jax.random.split(key, 8)

    def lstm_params(k):
        kk = jax.random.split(k, 6)
        s = 1.0 / math.sqrt(H)
        u = lambda kki, shape: jax.random.uniform(kki, shape, jnp.float32, -s, s)
        # Gate column order inside each 4H block is [i, f, o, g] (sigmoid gates
        # contiguous).  A torch checkpoint ([i, f, g, o]) would be permuted at
        # load time.  Forward/backward Wih and biases are packed side by side.
        wih_f = u(kk[0], (E, 4 * H)); whh_f = u(kk[1], (H, 4 * H)); b_f = u(kk[2], (1, 4 * H))
        wih_b = u(kk[3], (E, 4 * H)); whh_b = u(kk[4], (H, 4 * H)); b_b = u(kk[5], (1, 4 * H))
        return dict(wih=jnp.concatenate([wih_f, wih_b], axis=1),
                    b=jnp.concatenate([b_f, b_b], axis=1),
                    whh_f=whh_f, whh_b=whh_b)

    emb = 0.1 * jax.random.normal(ks[0], (vocab, E), jnp.float32)
    emb = emb.at[0].set(0.0)                         # padding_idx = 0 (frozen)
    return dict(
        embedding=emb,
        lat=lstm_params(ks[1]),
        clf=lstm_params(ks[2]),
        # Kuma gate weight stored pre-transposed: [2, 2H] (row 0 -> a, row 1 -> b)
        kuma_wab_t=(1.0 / math.sqrt(2 * H)) *
                   jax.random.normal(ks[3], (2, 2 * H), jnp.float32),
        kuma_bab_t=jnp.zeros((2, 1), jnp.float32),
        w_out=(1.0 / math.sqrt(2 * H)) *
              jax.random.normal(ks[4], (2 * H, O), jnp.float32),
        b_out=jnp.zeros((1, O), jnp.float32),
    )


# ------------------------------------------------------------------------------
# plain-JAX reference (same math, HIGHEST precision dots) for a silent check
# ------------------------------------------------------------------------------

def _ref_cell(gates, h, c, m, H):
    i = _sigmoid(gates[:, 0:H])
    f = _sigmoid(gates[:, H:2 * H])
    o = _sigmoid(gates[:, 2 * H:3 * H])
    g = jnp.tanh(gates[:, 3 * H:4 * H])
    c_new = f * c + i * g
    h_new = o * jnp.tanh(c_new)
    return m * h_new + (1.0 - m) * h, m * c_new + (1.0 - m) * c


def _ref_forward(params, input_ids, lengths):
    hp = jax.lax.Precision.HIGHEST
    max_len = int(max(lengths))
    ids = input_ids[:, :max_len]
    mask = (ids != 0)
    B, T = ids.shape
    H = params['clf']['whh_f'].shape[0]
    emb = params['embedding'][ids].astype(jnp.float32)          # [B, T, E]
    mask_f = mask.astype(jnp.float32)

    def run(p, gate_bt):
        x = emb * gate_bt[:, :, None]
        wih_f, wih_b = p['wih'][:, :4 * H], p['wih'][:, 4 * H:]
        b_f, b_b = p['b'][:, :4 * H], p['b'][:, 4 * H:]
        hf = jnp.zeros((B, H)); cf = jnp.zeros((B, H))
        outs_f = []
        for t in range(T):
            g = (jnp.dot(x[:, t], wih_f, precision=hp)
                 + jnp.dot(hf, p['whh_f'], precision=hp) + b_f)
            hf, cf = _ref_cell(g, hf, cf, mask_f[:, t:t + 1], H)
            outs_f.append(hf)
        hb = jnp.zeros((B, H)); cb = jnp.zeros((B, H))
        outs_b = [None] * T
        for t in range(T - 1, -1, -1):
            g = (jnp.dot(x[:, t], wih_b, precision=hp)
                 + jnp.dot(hb, p['whh_b'], precision=hp) + b_b)
            hb, cb = _ref_cell(g, hb, cb, mask_f[:, t:t + 1], H)
            outs_b[t] = hb
        return (jnp.stack(outs_f, 1), jnp.stack(outs_b, 1),
                jnp.concatenate([hf, hb], -1))

    # latent model
    hf_seq, hb_seq, _ = run(params['lat'], jnp.ones_like(mask_f))
    wab_t = params['kuma_wab_t']
    lin = (jnp.einsum('bth,oh->bto', hf_seq, wab_t[:, :H], precision=hp)
           + jnp.einsum('bth,oh->bto', hb_seq, wab_t[:, H:], precision=hp)
           + params['kuma_bab_t'][:, 0])
    ab = jnp.clip(_softplus(lin), 1e-6, 100.0)
    a, b = ab[..., 0], ab[..., 1]
    p0, p1, hmean = _hardkuma_stats(a, b)
    pc = 1.0 - p0 - p1
    z = jnp.where((pc > p0) & (pc > p1), hmean, jnp.where(p0 > p1, 0.0, 1.0))
    z = jnp.where(mask, z, 0.0)

    # classifier
    _, _, final = run(params['clf'], mask_f * z)
    y = _sigmoid(jnp.dot(final, params['w_out'], precision=hp)
                 + params['b_out'])
    return y, z


# ------------------------------------------------------------------------------

if __name__ == "__main__":
    key = jax.random.PRNGKey(0)
    kp, kd = jax.random.split(key)

    B, T, V, E, H, O = 2, 8, 50, 32, 32, 2        # small shapes (emb_size=E, hidden=H)
    params = init_params(kp, vocab=V, E=E, H=H, O=O)

    lengths = [8, 5]
    ids = jax.random.randint(kd, (B, T), 1, V, dtype=jnp.int32)
    pos = jnp.arange(T)[None, :]
    input_ids = jnp.where(pos < jnp.array(lengths)[:, None], ids, 0)  # right-padded

    (y, _none), z = latent_rationale_forward(params, input_ids, lengths)
    y = jax.block_until_ready(y)
    z = jax.block_until_ready(z)

    y_ref, z_ref = _ref_forward(params, input_ids, lengths)
    assert y.shape == (B, O) and z.shape == (B, T)
    err_y = float(jnp.max(jnp.abs(y - y_ref)))
    err_z = float(jnp.max(jnp.abs(z - z_ref)))
    assert err_y < 5e-3, err_y
    assert err_z < 5e-3, err_z

    print("KERNEL_OK")
</pallas_src>

<mosaic_0001>
module attributes {stable_mosaic.version = 11 : i64} {
  func.func @_latent_kernel(%arg0: memref<16x32xf32, #tpu.memory_space<vmem>>, %arg1: memref<16x1xf32, #tpu.memory_space<vmem>>, %arg2: memref<1x16xf32, #tpu.memory_space<vmem>>, %arg3: memref<32x256xf32, #tpu.memory_space<vmem>>, %arg4: memref<1x256xf32, #tpu.memory_space<vmem>>, %arg5: memref<32x128xf32, #tpu.memory_space<vmem>>, %arg6: memref<32x128xf32, #tpu.memory_space<vmem>>, %arg7: memref<2x64xf32, #tpu.memory_space<vmem>>, %arg8: memref<2x1xf32, #tpu.memory_space<vmem>>, %arg9: memref<1x16xf32, #tpu.memory_space<vmem>>, %arg10: memref<16x256xf32, #tpu.memory_space<vmem>>, %arg11: memref<16x32xf32, #tpu.memory_space<vmem>>, %arg12: memref<16x32xf32, #tpu.memory_space<vmem>>) attributes {dimension_semantics = [], scalar_prefetch = 0 : i64, scratch_operands = 3 : i64, tpu.core_type = #tpu.core_type<tc>} {
    %c0 = arith.constant 0 : index
    %c0_0 = arith.constant 0 : index
    %0 = vector.load %arg0[%c0, %c0_0] : memref<16x32xf32, #tpu.memory_space<vmem>>, vector<16x32xf32>
    %c0_1 = arith.constant 0 : index
    %c0_2 = arith.constant 0 : index
    %1 = vector.load %arg3[%c0_1, %c0_2] : memref<32x256xf32, #tpu.memory_space<vmem>>, vector<32x256xf32>
    %cst = arith.constant dense<0.000000e+00> : vector<16x256xf32>
    %2 = tpu.matmul %0, %1, %cst {dimension_numbers = #tpu.dot_dimension_numbers<[1], [0], [0], [1], [0, 0, 1, 1], [], []>} : vector<16x32xf32>, vector<32x256xf32>, vector<16x256xf32> -> vector<16x256xf32>
    %c0_3 = arith.constant 0 : index
    %c0_4 = arith.constant 0 : index
    %3 = vector.load %arg4[%c0_3, %c0_4] : memref<1x256xf32, #tpu.memory_space<vmem>>, vector<1x256xf32>
    %4 = vector.broadcast %3 : vector<1x256xf32> to vector<16x256xf32>
    %5 = arith.addf %2, %4 : vector<16x256xf32>
    %c0_5 = arith.constant 0 : index
    %c0_6 = arith.constant 0 : index
    %6 = vector.load %arg10[%c0_5, %c0_6] : memref<16x256xf32, #tpu.memory_space<vmem>>, vector<16x256xf32>
    tpu.vector_store %arg10[%c0_5, %c0_6], %5 {strides = array<i32>} : memref<16x256xf32, #tpu.memory_space<vmem>>, vector<16x256xf32>,
    %c0_7 = arith.constant 0 : index
    %c0_8 = arith.constant 0 : index
    %7 = vector.load %arg5[%c0_7, %c0_8] : memref<32x128xf32, #tpu.memory_space<vmem>>, vector<32x128xf32>
    %c0_9 = arith.constant 0 : index
    %c0_10 = arith.constant 0 : index
    %8 = vector.load %arg6[%c0_9, %c0_10] : memref<32x128xf32, #tpu.memory_space<vmem>>, vector<32x128xf32>
    %cst_11 = arith.constant 0.000000e+00 : f32
    %9 = vector.broadcast %cst_11 : f32 to vector<2x32xf32>
    %c0_12 = arith.constant 0 : index
    %c0_13 = arith.constant 0 : index
    %10 = vector.load %arg10[%c0_12, %c0_13] : memref<16x256xf32, #tpu.memory_space<vmem>>, vector<2x128xf32>
    %cst_14 = arith.constant dense<0.000000e+00> : vector<2x128xf32>
    %11 = tpu.matmul %9, %7, %cst_14 {dimension_numbers = #tpu.dot_dimension_numbers<[1], [0], [0], [1], [0, 0, 1, 1], [], []>} : vector<2x32xf32>, vector<32x128xf32>, vector<2x128xf32> -> vector<2x128xf32>
    %12 = arith.addf %10, %11 : vector<2x128xf32>
    %c0_15 = arith.constant 0 : index
    %c0_16 = arith.constant 0 : index
    %13 = vector.load %arg1[%c0_15, %c0_16] : memref<16x1xf32, #tpu.memory_space<vmem>>, vector<2x1xf32>
    %14 = vector.extract_strided_slice %12 {offsets = [0, 0], sizes = [2, 96], strides = [1, 1]} : vector<2x128xf32> to vector<2x96xf32>
    %cst_17 = arith.constant 5.000000e-01 : f32
    %15 = vector.broadcast %cst_17 : f32 to vector<2x96xf32>
    %16 = arith.mulf %15, %14 : vector<2x96xf32>
    %17 = math.tanh %16 : vector<2x96xf32>
    %cst_18 = arith.constant 5.000000e-01 : f32
    %18 = vector.broadcast %cst_18 : f32 to vector<2x96xf32>
    %19 = arith.mulf %18, %17 : vector<2x96xf32>
    %cst_19 = arith.constant 5.000000e-01 : f32
    %20 = vector.broadcast %cst_19 : f32 to vector<2x96xf32>
    %21 = arith.addf %19, %20 : vector<2x96xf32>
    %22 = vector.extract_strided_slice %21 {offsets = [0, 0], sizes = [2, 32], strides = [1, 1]} : vector<2x96xf32> to vector<2x32xf32>
    %23 = vector.extract_strided_slice %21 {offsets = [0, 32], sizes = [2, 32], strides = [1, 1]} : vector<2x96xf32> to vector<2x32xf32>
    %24 = vector.extract_strided_slice %21 {offsets = [0, 64], sizes = [2, 32], strides = [1, 1]} : vector<2x96xf32> to vector<2x32xf32>
    %25 = vector.extract_strided_slice %12 {offsets = [0, 96], sizes = [2, 32], strides = [1, 1]} : vector<2x128xf32> to vector<2x32xf32>
    %26 = math.tanh %25 : vector<2x32xf32>
    %27 = arith.mulf %23, %9 : vector<2x32xf32>
    %28 = arith.mulf %22, %26 : vector<2x32xf32>
    %29 = arith.addf %27, %28 : vector<2x32xf32>
    %30 = math.tanh %29 : vector<2x32xf32>
    %31 = arith.mulf %24, %30 : vector<2x32xf32>
    %32 = arith.subf %31, %9 : vector<2x32xf32>
    %33 = vector.broadcast %13 : vector<2x1xf32> to vector<2x32xf32>
    %34 = arith.mulf %33, %32 : vector<2x32xf32>
    %35 = arith.addf %9, %34 : vector<2x32xf32>
    %36 = arith.subf %29, %9 : vector<2x32xf32>
    %37 = vector.broadcast %13 : vector<2x1xf32> to vector<2x32xf32>
    %38 = arith.mulf %37, %36 : vector<2x32xf32>
    %39 = arith.addf %9, %38 : vector<2x32xf32>
    %c14 = arith.constant 14 : index
    %c128 = arith.constant 128 : index
    %40 = vector.load %arg10[%c14, %c128] : memref<16x256xf32, #tpu.memory_space<vmem>>, vector<2x128xf32>
    %cst_20 = arith.constant dense<0.000000e+00> : vector<2x128xf32>
    %41 = tpu.matmul %9, %8, %cst_20 {dimension_numbers = #tpu.dot_dimension_numbers<[1], [0], [0], [1], [0, 0, 1, 1], [], []>} : vector<2x32xf32>, vector<32x128xf32>, vector<2x128xf32> -> vector<2x128xf32>
    %42 = arith.addf %40, %41 : vector<2x128xf32>
    %c14_21 = arith.constant 14 : index
    %c0_22 = arith.constant 0 : index
    %43 = vector.load %arg1[%c14_21, %c0_22] : memref<16x1xf32, #tpu.memory_space<vmem>>, vector<2x1xf32>
    %44 = vector.extract_strided_slice %42 {offsets = [0, 0], sizes = [2, 96], strides = [1, 1]} : vector<2x128xf32> to vector<2x96xf32>
    %cst_23 = arith.constant 5.000000e-01 : f32
    %45 = vector.broadcast %cst_23 : f32 to vector<2x96xf32>
    %46 = arith.mulf %45, %44 : vector<2x96xf32>
    %47 = math.tanh %46 : vector<2x96xf32>
    %cst_24 = arith.constant 5.000000e-01 : f32
    %48 = vector.broadcast %cst_24 : f32 to vector<2x96xf32>
    %49 = arith.mulf %48, %47 : vector<2x96xf32>
    %cst_25 = arith.constant 5.000000e-01 : f32
    %50 = vector.broadcast %cst_25 : f32 to vector<2x96xf32>
    %51 = arith.addf %49, %50 : vector<2x96xf32>
    %52 = vector.extract_strided_slice %51 {offsets = [0, 0], sizes = [2, 32], strides = [1, 1]} : vector<2x96xf32> to vector<2x32xf32>
    %53 = vector.extract_strided_slice %51 {offsets = [0, 32], sizes = [2, 32], strides = [1, 1]} : vector<2x96xf32> to vector<2x32xf32>
    %54 = vector.extract_strided_slice %51 {offsets = [0, 64], sizes = [2, 32], strides = [1, 1]} : vector<2x96xf32> to vector<2x32xf32>
    %55 = vector.extract_strided_slice %42 {offsets = [0, 96], sizes = [2, 32], strides = [1, 1]} : vector<2x128xf32> to vector<2x32xf32>
    %56 = math.tanh %55 : vector<2x32xf32>
    %57 = arith.mulf %53, %9 : vector<2x32xf32>
    %58 = arith.mulf %52, %56 : vector<2x32xf32>
    %59 = arith.addf %57, %58 : vector<2x32xf32>
    %60 = math.tanh %59 : vector<2x32xf32>
    %61 = arith.mulf %54, %60 : vector<2x32xf32>
    %62 = arith.subf %61, %9 : vector<2x32xf32>
    %63 = vector.broadcast %43 : vector<2x1xf32> to vector<2x32xf32>
    %64 = arith.mulf %63, %62 : vector<2x32xf32>
    %65 = arith.addf %9, %64 : vector<2x32xf32>
    %66 = arith.subf %59, %9 : vector<2x32xf32>
    %67 = vector.broadcast %43 : vector<2x1xf32> to vector<2x32xf32>
    %68 = arith.mulf %67, %66 : vector<2x32xf32>
    %69 = arith.addf %9, %68 : vector<2x32xf32>
    %c0_26 = arith.constant 0 : index
    %c0_27 = arith.constant 0 : index
    %70 = vector.load %arg11[%c0_26, %c0_27] : memref<16x32xf32, #tpu.memory_space<vmem>>, vector<2x32xf32>
    tpu.vector_store %arg11[%c0_26, %c0_27], %35 {strides = array<i32>} : memref<16x32xf32, #tpu.memory_space<vmem>>, vector<2x32xf32>,
    %c14_28 = arith.constant 14 : index
    %c0_29 = arith.constant 0 : index
    %71 = vector.load %arg12[%c14_28, %c0_29] : memref<16x32xf32, #tpu.memory_space<vmem>>, vector<2x32xf32>
    tpu.vector_store %arg12[%c14_28, %c0_29], %65 {strides = array<i32>} : memref<16x32xf32, #tpu.memory_space<vmem>>, vector<2x32xf32>,
    %c2 = arith.constant 2 : index
    %c0_30 = arith.constant 0 : index
    %72 = vector.load %arg10[%c2, %c0_30] : memref<16x256xf32, #tpu.memory_space<vmem>>, vector<2x128xf32>
    %cst_31 = arith.constant dense<0.000000e+00> : vector<2x128xf32>
    %73 = tpu.matmul %35, %7, %cst_31 {dimension_numbers = #tpu.dot_dimension_numbers<[1], [0], [0], [1], [0, 0, 1, 1], [], []>} : vector<2x32xf32>, vector<32x128xf32>, vector<2x128xf32> -> vector<2x128xf32>
    %74 = arith.addf %72, %73 : vector<2x128xf32>
    %c2_32 = arith.constant 2 : index
    %c0_33 = arith.constant 0 : index
    %75 = vector.load %arg1[%c2_32, %c0_33] : memref<16x1xf32, #tpu.memory_space<vmem>>, vector<2x1xf32>
    %76 = vector.extract_strided_slice %74 {offsets = [0, 0], sizes = [2, 96], strides = [1, 1]} : vector<2x128xf32> to vector<2x96xf32>
    %cst_34 = arith.constant 5.000000e-01 : f32
    %77 = vector.broadcast %cst_34 : f32 to vector<2x96xf32>
    %78 = arith.mulf %77, %76 : vector<2x96xf32>
    %79 = math.tanh %78 : vector<2x96xf32>
    %cst_35 = arith.constant 5.000000e-01 : f32
    %80 = vector.broadcast %cst_35 : f32 to vector<2x96xf32>
    %81 = arith.mulf %80, %79 : vector<2x96xf32>
    %cst_36 = arith.constant 5.000000e-01 : f32
    %82 = vector.broadcast %cst_36 : f32 to vector<2x96xf32>
    %83 = arith.addf %81, %82 : vector<2x96xf32>
    %84 = vector.extract_strided_slice %83 {offsets = [0, 0], sizes = [2, 32], strides = [1, 1]} : vector<2x96xf32> to vector<2x32xf32>
    %85 = vector.extract_strided_slice %83 {offsets = [0, 32], sizes = [2, 32], strides = [1, 1]} : vector<2x96xf32> to vector<2x32xf32>
    %86 = vector.extract_strided_slice %83 {offsets = [0, 64], sizes = [2, 32], strides = [1, 1]} : vector<2x96xf32> to vector<2x32xf32>
    %87 = vector.extract_strided_slice %74 {offsets = [0, 96], sizes = [2, 32], strides = [1, 1]} : vector<2x128xf32> to vector<2x32xf32>
    %88 = math.tanh %87 : vector<2x32xf32>
    %89 = arith.mulf %85, %39 : vector<2x32xf32>
    %90 = arith.mulf %84, %88 : vector<2x32xf32>
    %91 = arith.addf %89, %90 : vector<2x32xf32>
    %92 = math.tanh %91 : vector<2x32xf32>
    %93 = arith.mulf %86, %92 : vector<2x32xf32>
    %94 = arith.subf %93, %35 : vector<2x32xf32>
    %95 = vector.broadcast %75 : vector<2x1xf32> to vector<2x32xf32>
    %96 = arith.mulf %95, %94 : vector<2x32xf32>
    %97 = arith.addf %35, %96 : vector<2x32xf32>
    %98 = arith.subf %91, %39 : vector<2x32xf32>
    %99 = vector.broadcast %75 : vector<2x1xf32> to vector<2x32xf32>
    %100 = arith.mulf %99, %98 : vector<2x32xf32>
    %101 = arith.addf %39, %100 : vector<2x32xf32>
    %c12 = arith.constant 12 : index
    %c128_37 = arith.constant 128 : index
    %102 = vector.load %arg10[%c12, %c128_37] : memref<16x256xf32, #tpu.memory_space<vmem>>, vector<2x128xf32>
    %cst_38 = arith.constant dense<0.000000e+00> : vector<2x128xf32>
    %103 = tpu.matmul %65, %8, %cst_38 {dimension_numbers = #tpu.dot_dimension_numbers<[1], [0], [0], [1], [0, 0, 1, 1], [], []>} : vector<2x32xf32>, vector<32x128xf32>, vector<2x128xf32> -> vector<2x128xf32>
    %104 = arith.addf %102, %103 : vector<2x128xf32>
    %c12_39 = arith.constant 12 : index
    %c0_40 = arith.constant 0 : index
    %105 = vector.load %arg1[%c12_39, %c0_40] : memref<16x1xf32, #tpu.memory_space<vmem>>, vector<2x1xf32>
    %106 = vector.extract_strided_slice %104 {offsets = [0, 0], sizes = [2, 96], strides = [1, 1]} : vector<2x128xf32> to vector<2x96xf32>
    %cst_41 = arith.constant 5.000000e-01 : f32
    %107 = vector.broadcast %cst_41 : f32 to vector<2x96xf32>
    %108 = arith.mulf %107, %106 : vector<2x96xf32>
    %109 = math.tanh %108 : vector<2x96xf32>
    %cst_42 = arith.constant 5.000000e-01 : f32
    %110 = vector.broadcast %cst_42 : f32 to vector<2x96xf32>
    %111 = arith.mulf %110, %109 : vector<2x96xf32>
    %cst_43 = arith.constant 5.000000e-01 : f32
    %112 = vector.broadcast %cst_43 : f32 to vector<2x96xf32>
    %113 = arith.addf %111, %112 : vector<2x96xf32>
    %114 = vector.extract_strided_slice %113 {offsets = [0, 0], sizes = [2, 32], strides = [1, 1]} : vector<2x96xf32> to vector<2x32xf32>
    %115 = vector.extract_strided_slice %113 {offsets = [0, 32], sizes = [2, 32], strides = [1, 1]} : vector<2x96xf32> to vector<2x32xf32>
    %116 = vector.extract_strided_slice %113 {offsets = [0, 64], sizes = [2, 32], strides = [1, 1]} : vector<2x96xf32> to vector<2x32xf32>
    %117 = vector.extract_strided_slice %104 {offsets = [0, 96], sizes = [2, 32], strides = [1, 1]} : vector<2x128xf32> to vector<2x32xf32>
    %118 = math.tanh %117 : vector<2x32xf32>
    %119 = arith.mulf %115, %69 : vector<2x32xf32>
    %120 = arith.mulf %114, %118 : vector<2x32xf32>
    %121 = arith.addf %119, %120 : vector<2x32xf32>
    %122 = math.tanh %121 : vector<2x32xf32>
    %123 = arith.mulf %116, %122 : vector<2x32xf32>
    %124 = arith.subf %123, %65 : vector<2x32xf32>
    %125 = vector.broadcast %105 : vector<2x1xf32> to vector<2x32xf32>
    %126 = arith.mulf %125, %124 : vector<2x32xf32>
    %127 = arith.addf %65, %126 : vector<2x32xf32>
    %128 = arith.subf %121, %69 : vector<2x32xf32>
    %129 = vector.broadcast %105 : vector<2x1xf32> to vector<2x32xf32>
    %130 = arith.mulf %129, %128 : vector<2x32xf32>
    %131 = arith.addf %69, %130 : vector<2x32xf32>
    %c2_44 = arith.constant 2 : index
    %c0_45 = arith.constant 0 : index
    %132 = vector.load %arg11[%c2_44, %c0_45] : memref<16x32xf32, #tpu.memory_space<vmem>>, vector<2x32xf32>
    tpu.vector_store %arg11[%c2_44, %c0_45], %97 {strides = array<i32>} : memref<16x32xf32, #tpu.memory_space<vmem>>, vector<2x32xf32>,
    %c12_46 = arith.constant 12 : index
    %c0_47 = arith.constant 0 : index
    %133 = vector.load %arg12[%c12_46, %c0_47] : memref<16x32xf32, #tpu.memory_space<vmem>>, vector<2x32xf32>
    tpu.vector_store %arg12[%c12_46, %c0_47], %127 {strides = array<i32>} : memref<16x32xf32, #tpu.memory_space<vmem>>, vector<2x32xf32>,
    %c4 = arith.constant 4 : index
    %c0_48 = arith.constant 0 : index
    %134 = vector.load %arg10[%c4, %c0_48] : memref<16x256xf32, #tpu.memory_space<vmem>>, vector<2x128xf32>
    %cst_49 = arith.constant dense<0.000000e+00> : vector<2x128xf32>
    %135 = tpu.matmul %97, %7, %cst_49 {dimension_numbers = #tpu.dot_dimension_numbers<[1], [0], [0], [1], [0, 0, 1, 1], [], []>} : vector<2x32xf32>, vector<32x128xf32>, vector<2x128xf32> -> vector<2x128xf32>
    %136 = arith.addf %134, %135 : vector<2x128xf32>
    %c4_50 = arith.constant 4 : index
    %c0_51 = arith.constant 0 : index
    %137 = vector.load %arg1[%c4_50, %c0_51] : memref<16x1xf32, #tpu.memory_space<vmem>>, vector<2x1xf32>
    %138 = vector.extract_strided_slice %136 {offsets = [0, 0], sizes = [2, 96], strides = [1, 1]} : vector<2x128xf32> to vector<2x96xf32>
    %cst_52 = arith.constant 5.000000e-01 : f32
    %139 = vector.broadcast %cst_52 : f32 to vector<2x96xf32>
    %140 = arith.mulf %139, %138 : vector<2x96xf32>
    %141 = math.tanh %140 : vector<2x96xf32>
    %cst_53 = arith.constant 5.000000e-01 : f32
    %142 = vector.broadcast %cst_53 : f32 to vector<2x96xf32>
    %143 = arith.mulf %142, %141 : vector<2x96xf32>
    %cst_54 = arith.constant 5.000000e-01 : f32
    %144 = vector.broadcast %cst_54 : f32 to vector<2x96xf32>
    %145 = arith.addf %143, %144 : vector<2x96xf32>
    %146 = vector.extract_strided_slice %145 {offsets = [0, 0], sizes = [2, 32], strides = [1, 1]} : vector<2x96xf32> to vector<2x32xf32>
    %147 = vector.extract_strided_slice %145 {offsets = [0, 32], sizes = [2, 32], strides = [1, 1]} : vector<2x96xf32> to vector<2x32xf32>
    %148 = vector.extract_strided_slice %145 {offsets = [0, 64], sizes = [2, 32], strides = [1, 1]} : vector<2x96xf32> to vector<2x32xf32>
    %149 = vector.extract_strided_slice %136 {offsets = [0, 96], sizes = [2, 32], strides = [1, 1]} : vector<2x128xf32> to vector<2x32xf32>
    %150 = math.tanh %149 : vector<2x32xf32>
    %151 = arith.mulf %147, %101 : vector<2x32xf32>
    %152 = arith.mulf %146, %150 : vector<2x32xf32>
    %153 = arith.addf %151, %152 : vector<2x32xf32>
    %154 = math.tanh %153 : vector<2x32xf32>
    %155 = arith.mulf %148, %154 : vector<2x32xf32>
    %156 = arith.subf %155, %97 : vector<2x32xf32>
    %157 = vector.broadcast %137 : vector<2x1xf32> to vector<2x32xf32>
    %158 = arith.mulf %157, %156 : vector<2x32xf32>
    %159 = arith.addf %97, %158 : vector<2x32xf32>
    %160 = arith.subf %153, %101 : vector<2x32xf32>
    %161 = vector.broadcast %137 : vector<2x1xf32> to vector<2x32xf32>
    %162 = arith.mulf %161, %160 : vector<2x32xf32>
    %163 = arith.addf %101, %162 : vector<2x32xf32>
    %c10 = arith.constant 10 : index
    %c128_55 = arith.constant 128 : index
    %164 = vector.load %arg10[%c10, %c128_55] : memref<16x256xf32, #tpu.memory_space<vmem>>, vector<2x128xf32>
    %cst_56 = arith.constant dense<0.000000e+00> : vector<2x128xf32>
    %165 = tpu.matmul %127, %8, %cst_56 {dimension_numbers = #tpu.dot_dimension_numbers<[1], [0], [0], [1], [0, 0, 1, 1], [], []>} : vector<2x32xf32>, vector<32x128xf32>, vector<2x128xf32> -> vector<2x128xf32>
    %166 = arith.addf %164, %165 : vector<2x128xf32>
    %c10_57 = arith.constant 10 : index
    %c0_58 = arith.constant 0 : index
    %167 = vector.load %arg1[%c10_57, %c0_58] : memref<16x1xf32, #tpu.memory_space<vmem>>, vector<2x1xf32>
    %168 = vector.extract_strided_slice %166 {offsets = [0, 0], sizes = [2, 96], strides = [1, 1]} : vector<2x128xf32> to vector<2x96xf32>
    %cst_59 = arith.constant 5.000000e-01 : f32
    %169 = vector.broadcast %cst_59 : f32 to vector<2x96xf32>
    %170 = arith.mulf %169, %168 : vector<2x96xf32>
    %171 = math.tanh %170 : vector<2x96xf32>
    %cst_60 = arith.constant 5.000000e-01 : f32
    %172 = vector.broadcast %cst_60 : f32 to vector<2x96xf32>
    %173 = arith.mulf %172, %171 : vector<2x96xf32>
    %cst_61 = arith.constant 5.000000e-01 : f32
    %174 = vector.broadcast %cst_61 : f32 to vector<2x96xf32>
    %175 = arith.addf %173, %174 : vector<2x96xf32>
    %176 = vector.extract_strided_slice %175 {offsets = [0, 0], sizes = [2, 32], strides = [1, 1]} : vector<2x96xf32> to vector<2x32xf32>
    %177 = vector.extract_strided_slice %175 {offsets = [0, 32], sizes = [2, 32], strides = [1, 1]} : vector<2x96xf32> to vector<2x32xf32>
    %178 = vector.extract_strided_slice %175 {offsets = [0, 64], sizes = [2, 32], strides = [1, 1]} : vector<2x96xf32> to vector<2x32xf32>
    %179 = vector.extract_strided_slice %166 {offsets = [0, 96], sizes = [2, 32], strides = [1, 1]} : vector<2x128xf32> to vector<2x32xf32>
    %180 = math.tanh %179 : vector<2x32xf32>
    %181 = arith.mulf %177, %131 : vector<2x32xf32>
    %182 = arith.mulf %176, %180 : vector<2x32xf32>
    %183 = arith.addf %181, %182 : vector<2x32xf32>
    %184 = math.tanh %183 : vector<2x32xf32>
    %185 = arith.mulf %178, %184 : vector<2x32xf32>
    %186 = arith.subf %185, %127 : vector<2x32xf32>
    %187 = vector.broadcast %167 : vector<2x1xf32> to vector<2x32xf32>
    %188 = arith.mulf %187, %186 : vector<2x32xf32>
    %189 = arith.addf %127, %188 : vector<2x32xf32>
    %190 = arith.subf %183, %131 : vector<2x32xf32>
    %191 = vector.broadcast %167 : vector<2x1xf32> to vector<2x32xf32>
    %192 = arith.mulf %191, %190 : vector<2x32xf32>
    %193 = arith.addf %131, %192 : vector<2x32xf32>
    %c4_62 = arith.constant 4 : index
    %c0_63 = arith.constant 0 : index
    %194 = vector.load %arg11[%c4_62, %c0_63] : memref<16x32xf32, #tpu.memory_space<vmem>>, vector<2x32xf32>
    tpu.vector_store %arg11[%c4_62, %c0_63], %159 {strides = array<i32>} : memref<16x32xf32, #tpu.memory_space<vmem>>, vector<2x32xf32>,
    %c10_64 = arith.constant 10 : index
    %c0_65 = arith.constant 0 : index
    %195 = vector.load %arg12[%c10_64, %c0_65] : memref<16x32xf32, #tpu.memory_space<vmem>>, vector<2x32xf32>
    tpu.vector_store %arg12[%c10_64, %c0_65], %189 {strides = array<i32>} : memref<16x32xf32, #tpu.memory_space<vmem>>, vector<2x32xf32>,
    %c6 = arith.constant 6 : index
    %c0_66 = arith.constant 0 : index
    %196 = vector.load %arg10[%c6, %c0_66] : memref<16x256xf32, #tpu.memory_space<vmem>>, vector<2x128xf32>
    %cst_67 = arith.constant dense<0.000000e+00> : vector<2x128xf32>
    %197 = tpu.matmul %159, %7, %cst_67 {dimension_numbers = #tpu.dot_dimension_numbers<[1], [0], [0], [1], [0, 0, 1, 1], [], []>} : vector<2x32xf32>, vector<32x128xf32>, vector<2x128xf32> -> vector<2x128xf32>
    %198 = arith.addf %196, %197 : vector<2x128xf32>
    %c6_68 = arith.constant 6 : index
    %c0_69 = arith.constant 0 : index
    %199 = vector.load %arg1[%c6_68, %c0_69] : memref<16x1xf32, #tpu.memory_space<vmem>>, vector<2x1xf32>
    %200 = vector.extract_strided_slice %198 {offsets = [0, 0], sizes = [2, 96], strides = [1, 1]} : vector<2x128xf32> to vector<2x96xf32>
    %cst_70 = arith.constant 5.000000e-01 : f32
    %201 = vector.broadcast %cst_70 : f32 to vector<2x96xf32>
    %202 = arith.mulf %201, %200 : vector<2x96xf32>
    %203 = math.tanh %202 : vector<2x96xf32>
    %cst_71 = arith.constant 5.000000e-01 : f32
    %204 = vector.broadcast %cst_71 : f32 to vector<2x96xf32>
    %205 = arith.mulf %204, %203 : vector<2x96xf32>
    %cst_72 = arith.constant 5.000000e-01 : f32
    %206 = vector.broadcast %cst_72 : f32 to vector<2x96xf32>
    %207 = arith.addf %205, %206 : vector<2x96xf32>
    %208 = vector.extract_strided_slice %207 {offsets = [0, 0], sizes = [2, 32], strides = [1, 1]} : vector<2x96xf32> to vector<2x32xf32>
    %209 = vector.extract_strided_slice %207 {offsets = [0, 32], sizes = [2, 32], strides = [1, 1]} : vector<2x96xf32> to vector<2x32xf32>
    %210 = vector.extract_strided_slice %207 {offsets = [0, 64], sizes = [2, 32], strides = [1, 1]} : vector<2x96xf32> to vector<2x32xf32>
    %211 = vector.extract_strided_slice %198 {offsets = [0, 96], sizes = [2, 32], strides = [1, 1]} : vector<2x128xf32> to vector<2x32xf32>
    %212 = math.tanh %211 : vector<2x32xf32>
    %213 = arith.mulf %209, %163 : vector<2x32xf32>
    %214 = arith.mulf %208, %212 : vector<2x32xf32>
    %215 = arith.addf %213, %214 : vector<2x32xf32>
    %216 = math.tanh %215 : vector<2x32xf32>
    %217 = arith.mulf %210, %216 : vector<2x32xf32>
    %218 = arith.subf %217, %159 : vector<2x32xf32>
    %219 = vector.broadcast %199 : vector<2x1xf32> to vector<2x32xf32>
    %220 = arith.mulf %219, %218 : vector<2x32xf32>
    %221 = arith.addf %159, %220 : vector<2x32xf32>
    %222 = arith.subf %215, %163 : vector<2x32xf32>
    %223 = vector.broadcast %199 : vector<2x1xf32> to vector<2x32xf32>
    %224 = arith.mulf %223, %222 : vector<2x32xf32>
    %225 = arith.addf %163, %224 : vector<2x32xf32>
    %c8 = arith.constant 8 : index
    %c128_73 = arith.constant 128 : index
    %226 = vector.load %arg10[%c8, %c128_73] : memref<16x256xf32, #tpu.memory_space<vmem>>, vector<2x128xf32>
    %cst_74 = arith.constant dense<0.000000e+00> : vector<2x128xf32>
    %227 = tpu.matmul %189, %8, %cst_74 {dimension_numbers = #tpu.dot_dimension_numbers<[1], [0], [0], [1], [0, 0, 1, 1], [], []>} : vector<2x32xf32>, vector<32x128xf32>, vector<2x128xf32> -> vector<2x128xf32>
    %228 = arith.addf %226, %227 : vector<2x128xf32>
    %c8_75 = arith.constant 8 : index
    %c0_76 = arith.constant 0 : index
    %229 = vector.load %arg1[%c8_75, %c0_76] : memref<16x1xf32, #tpu.memory_space<vmem>>, vector<2x1xf32>
    %230 = vector.extract_strided_slice %228 {offsets = [0, 0], sizes = [2, 96], strides = [1, 1]} : vector<2x128xf32> to vector<2x96xf32>
    %cst_77 = arith.constant 5.000000e-01 : f32
    %231 = vector.broadcast %cst_77 : f32 to vector<2x96xf32>
    %232 = arith.mulf %231, %230 : vector<2x96xf32>
    %233 = math.tanh %232 : vector<2x96xf32>
    %cst_78 = arith.constant 5.000000e-01 : f32
    %234 = vector.broadcast %cst_78 : f32 to vector<2x96xf32>
    %235 = arith.mulf %234, %233 : vector<2x96xf32>
    %cst_79 = arith.constant 5.000000e-01 : f32
    %236 = vector.broadcast %cst_79 : f32 to vector<2x96xf32>
    %237 = arith.addf %235, %236 : vector<2x96xf32>
    %238 = vector.extract_strided_slice %237 {offsets = [0, 0], sizes = [2, 32], strides = [1, 1]} : vector<2x96xf32> to vector<2x32xf32>
    %239 = vector.extract_strided_slice %237 {offsets = [0, 32], sizes = [2, 32], strides = [1, 1]} : vector<2x96xf32> to vector<2x32xf32>
    %240 = vector.extract_strided_slice %237 {offsets = [0, 64], sizes = [2, 32], strides = [1, 1]} : vector<2x96xf32> to vector<2x32xf32>
    %241 = vector.extract_strided_slice %228 {offsets = [0, 96], sizes = [2, 32], strides = [1, 1]} : vector<2x128xf32> to vector<2x32xf32>
    %242 = math.tanh %241 : vector<2x32xf32>
    %243 = arith.mulf %239, %193 : vector<2x32xf32>
    %244 = arith.mulf %238, %242 : vector<2x32xf32>
    %245 = arith.addf %243, %244 : vector<2x32xf32>
    %246 = math.tanh %245 : vector<2x32xf32>
    %247 = arith.mulf %240, %246 : vector<2x32xf32>
    %248 = arith.subf %247, %189 : vector<2x32xf32>
    %249 = vector.broadcast %229 : vector<2x1xf32> to vector<2x32xf32>
    %250 = arith.mulf %249, %248 : vector<2x32xf32>
    %251 = arith.addf %189, %250 : vector<2x32xf32>
    %252 = arith.subf %245, %193 : vector<2x32xf32>
    %253 = vector.broadcast %229 : vector<2x1xf32> to vector<2x32xf32>
    %254 = arith.mulf %253, %252 : vector<2x32xf32>
    %255 = arith.addf %193, %254 : vector<2x32xf32>
    %c6_80 = arith.constant 6 : index
    %c0_81 = arith.constant 0 : index
    %256 = vector.load %arg11[%c6_80, %c0_81] : memref<16x32xf32, #tpu.memory_space<vmem>>, vector<2x32xf32>
    tpu.vector_store %arg11[%c6_80, %c0_81], %221 {strides = array<i32>} : memref<16x32xf32, #tpu.memory_space<vmem>>, vector<2x32xf32>,
    %c8_82 = arith.constant 8 : index
    %c0_83 = arith.constant 0 : index
    %257 = vector.load %arg12[%c8_82, %c0_83] : memref<16x32xf32, #tpu.memory_space<vmem>>, vector<2x32xf32>
    tpu.vector_store %arg12[%c8_82, %c0_83], %251 {strides = array<i32>} : memref<16x32xf32, #tpu.memory_space<vmem>>, vector<2x32xf32>,
    %c8_84 = arith.constant 8 : index
    %c0_85 = arith.constant 0 : index
    %258 = vector.load %arg10[%c8_84, %c0_85] : memref<16x256xf32, #tpu.memory_space<vmem>>, vector<2x128xf32>
    %cst_86 = arith.constant dense<0.000000e+00> : vector<2x128xf32>
    %259 = tpu.matmul %221, %7, %cst_86 {dimension_numbers = #tpu.dot_dimension_numbers<[1], [0], [0], [1], [0, 0, 1, 1], [], []>} : vector<2x32xf32>, vector<32x128xf32>, vector<2x128xf32> -> vector<2x128xf32>
    %260 = arith.addf %258, %259 : vector<2x128xf32>
    %c8_87 = arith.constant 8 : index
    %c0_88 = arith.constant 0 : index
    %261 = vector.load %arg1[%c8_87, %c0_88] : memref<16x1xf32, #tpu.memory_space<vmem>>, vector<2x1xf32>
    %262 = vector.extract_strided_slice %260 {offsets = [0, 0], sizes = [2, 96], strides = [1, 1]} : vector<2x128xf32> to vector<2x96xf32>
    %cst_89 = arith.constant 5.000000e-01 : f32
    %263 = vector.broadcast %cst_89 : f32 to vector<2x96xf32>
    %264 = arith.mulf %263, %262 : vector<2x96xf32>
    %265 = math.tanh %264 : vector<2x96xf32>
    %cst_90 = arith.constant 5.000000e-01 : f32
    %266 = vector.broadcast %cst_90 : f32 to vector<2x96xf32>
    %267 = arith.mulf %266, %265 : vector<2x96xf32>
    %cst_91 = arith.constant 5.000000e-01 : f32
    %268 = vector.broadcast %cst_91 : f32 to vector<2x96xf32>
    %269 = arith.addf %267, %268 : vector<2x96xf32>
    %270 = vector.extract_strided_slice %269 {offsets = [0, 0], sizes = [2, 32], strides = [1, 1]} : vector<2x96xf32> to vector<2x32xf32>
    %271 = vector.extract_strided_slice %269 {offsets = [0, 32], sizes = [2, 32], strides = [1, 1]} : vector<2x96xf32> to vector<2x32xf32>
    %272 = vector.extract_strided_slice %269 {offsets = [0, 64], sizes = [2, 32], strides = [1, 1]} : vector<2x96xf32> to vector<2x32xf32>
    %273 = vector.extract_strided_slice %260 {offsets = [0, 96], sizes = [2, 32], strides = [1, 1]} : vector<2x128xf32> to vector<2x32xf32>
    %274 = math.tanh %273 : vector<2x32xf32>
    %275 = arith.mulf %271, %225 : vector<2x32xf32>
    %276 = arith.mulf %270, %274 : vector<2x32xf32>
    %277 = arith.addf %275, %276 : vector<2x32xf32>
    %278 = math.tanh %277 : vector<2x32xf32>
    %279 = arith.mulf %272, %278 : vector<2x32xf32>
    %280 = arith.subf %279, %221 : vector<2x32xf32>
    %281 = vector.broadcast %261 : vector<2x1xf32> to vector<2x32xf32>
    %282 = arith.mulf %281, %280 : vector<2x32xf32>
    %283 = arith.addf %221, %282 : vector<2x32xf32>
    %284 = arith.subf %277, %225 : vector<2x32xf32>
    %285 = vector.broadcast %261 : vector<2x1xf32> to vector<2x32xf32>
    %286 = arith.mulf %285, %284 : vector<2x32xf32>
    %287 = arith.addf %225, %286 : vector<2x32xf32>
    %c6_92 = arith.constant 6 : index
    %c128_93 = arith.constant 128 : index
    %288 = vector.load %arg10[%c6_92, %c128_93] : memref<16x256xf32, #tpu.memory_space<vmem>>, vector<2x128xf32>
    %cst_94 = arith.constant dense<0.000000e+00> : vector<2x128xf32>
    %289 = tpu.matmul %251, %8, %cst_94 {dimension_numbers = #tpu.dot_dimension_numbers<[1], [0], [0], [1], [0, 0, 1, 1], [], []>} : vector<2x32xf32>, vector<32x128xf32>, vector<2x128xf32> -> vector<2x128xf32>
    %290 = arith.addf %288, %289 : vector<2x128xf32>
    %c6_95 = arith.constant 6 : index
    %c0_96 = arith.constant 0 : index
    %291 = vector.load %arg1[%c6_95, %c0_96] : memref<16x1xf32, #tpu.memory_space<vmem>>, vector<2x1xf32>
    %292 = vector.extract_strided_slice %290 {offsets = [0, 0], sizes = [2, 96], strides = [1, 1]} : vector<2x128xf32> to vector<2x96xf32>
    %cst_97 = arith.constant 5.000000e-01 : f32
    %293 = vector.broadcast %cst_97 : f32 to vector<2x96xf32>
    %294 = arith.mulf %293, %292 : vector<2x96xf32>
    %295 = math.tanh %294 : vector<2x96xf32>
    %cst_98 = arith.constant 5.000000e-01 : f32
    %296 = vector.broadcast %cst_98 : f32 to vector<2x96xf32>
    %297 = arith.mulf %296, %295 : vector<2x96xf32>
    %cst_99 = arith.constant 5.000000e-01 : f32
    %298 = vector.broadcast %cst_99 : f32 to vector<2x96xf32>
    %299 = arith.addf %297, %298 : vector<2x96xf32>
    %300 = vector.extract_strided_slice %299 {offsets = [0, 0], sizes = [2, 32], strides = [1, 1]} : vector<2x96xf32> to vector<2x32xf32>
    %301 = vector.extract_strided_slice %299 {offsets = [0, 32], sizes = [2, 32], strides = [1, 1]} : vector<2x96xf32> to vector<2x32xf32>
    %302 = vector.extract_strided_slice %299 {offsets = [0, 64], sizes = [2, 32], strides = [1, 1]} : vector<2x96xf32> to vector<2x32xf32>
    %303 = vector.extract_strided_slice %290 {offsets = [0, 96], sizes = [2, 32], strides = [1, 1]} : vector<2x128xf32> to vector<2x32xf32>
    %304 = math.tanh %303 : vector<2x32xf32>
    %305 = arith.mulf %301, %255 : vector<2x32xf32>
    %306 = arith.mulf %300, %304 : vector<2x32xf32>
    %307 = arith.addf %305, %306 : vector<2x32xf32>
    %308 = math.tanh %307 : vector<2x32xf32>
    %309 = arith.mulf %302, %308 : vector<2x32xf32>
    %310 = arith.subf %309, %251 : vector<2x32xf32>
    %311 = vector.broadcast %291 : vector<2x1xf32> to vector<2x32xf32>
    %312 = arith.mulf %311, %310 : vector<2x32xf32>
    %313 = arith.addf %251, %312 : vector<2x32xf32>
    %314 = arith.subf %307, %255 : vector<2x32xf32>
    %315 = vector.broadcast %291 : vector<2x1xf32> to vector<2x32xf32>
    %316 = arith.mulf %315, %314 : vector<2x32xf32>
    %317 = arith.addf %255, %316 : vector<2x32xf32>
    %c8_100 = arith.constant 8 : index
    %c0_101 = arith.constant 0 : index
    %318 = vector.load %arg11[%c8_100, %c0_101] : memref<16x32xf32, #tpu.memory_space<vmem>>, vector<2x32xf32>
    tpu.vector_store %arg11[%c8_100, %c0_101], %283 {strides = array<i32>} : memref<16x32xf32, #tpu.memory_space<vmem>>, vector<2x32xf32>,
    %c6_102 = arith.constant 6 : index
    %c0_103 = arith.constant 0 : index
    %319 = vector.load %arg12[%c6_102, %c0_103] : memref<16x32xf32, #tpu.memory_space<vmem>>, vector<2x32xf32>
    tpu.vector_store %arg12[%c6_102, %c0_103], %313 {strides = array<i32>} : memref<16x32xf32, #tpu.memory_space<vmem>>, vector<2x32xf32>,
    %c10_104 = arith.constant 10 : index
    %c0_105 = arith.constant 0 : index
    %320 = vector.load %arg10[%c10_104, %c0_105] : memref<16x256xf32, #tpu.memory_space<vmem>>, vector<2x128xf32>
    %cst_106 = arith.constant dense<0.000000e+00> : vector<2x128xf32>
    %321 = tpu.matmul %283, %7, %cst_106 {dimension_numbers = #tpu.dot_dimension_numbers<[1], [0], [0], [1], [0, 0, 1, 1], [], []>} : vector<2x32xf32>, vector<32x128xf32>, vector<2x128xf32> -> vector<2x128xf32>
    %322 = arith.addf %320, %321 : vector<2x128xf32>
    %c10_107 = arith.constant 10 : index
    %c0_108 = arith.constant 0 : index
    %323 = vector.load %arg1[%c10_107, %c0_108] : memref<16x1xf32, #tpu.memory_space<vmem>>, vector<2x1xf32>
    %324 = vector.extract_strided_slice %322 {offsets = [0, 0], sizes = [2, 96], strides = [1, 1]} : vector<2x128xf32> to vector<2x96xf32>
    %cst_109 = arith.constant 5.000000e-01 : f32
    %325 = vector.broadcast %cst_109 : f32 to vector<2x96xf32>
    %326 = arith.mulf %325, %324 : vector<2x96xf32>
    %327 = math.tanh %326 : vector<2x96xf32>
    %cst_110 = arith.constant 5.000000e-01 : f32
    %328 = vector.broadcast %cst_110 : f32 to vector<2x96xf32>
    %329 = arith.mulf %328, %327 : vector<2x96xf32>
    %cst_111 = arith.constant 5.000000e-01 : f32
    %330 = vector.broadcast %cst_111 : f32 to vector<2x96xf32>
    %331 = arith.addf %329, %330 : vector<2x96xf32>
    %332 = vector.extract_strided_slice %331 {offsets = [0, 0], sizes = [2, 32], strides = [1, 1]} : vector<2x96xf32> to vector<2x32xf32>
    %333 = vector.extract_strided_slice %331 {offsets = [0, 32], sizes = [2, 32], strides = [1, 1]} : vector<2x96xf32> to vector<2x32xf32>
    %334 = vector.extract_strided_slice %331 {offsets = [0, 64], sizes = [2, 32], strides = [1, 1]} : vector<2x96xf32> to vector<2x32xf32>
    %335 = vector.extract_strided_slice %322 {offsets = [0, 96], sizes = [2, 32], strides = [1, 1]} : vector<2x128xf32> to vector<2x32xf32>
    %336 = math.tanh %335 : vector<2x32xf32>
    %337 = arith.mulf %333, %287 : vector<2x32xf32>
    %338 = arith.mulf %332, %336 : vector<2x32xf32>
    %339 = arith.addf %337, %338 : vector<2x32xf32>
    %340 = math.tanh %339 : vector<2x32xf32>
    %341 = arith.mulf %334, %340 : vector<2x32xf32>
    %342 = arith.subf %341, %283 : vector<2x32xf32>
    %343 = vector.broadcast %323 : vector<2x1xf32> to vector<2x32xf32>
    %344 = arith.mulf %343, %342 : vector<2x32xf32>
    %345 = arith.addf %283, %344 : vector<2x32xf32>
    %346 = arith.subf %339, %287 : vector<2x32xf32>
    %347 = vector.broadcast %323 : vector<2x1xf32> to vector<2x32xf32>
    %348 = arith.mulf %347, %346 : vector<2x32xf32>
    %349 = arith.addf %287, %348 : vector<2x32xf32>
    %c4_112 = arith.constant 4 : index
    %c128_113 = arith.constant 128 : index
    %350 = vector.load %arg10[%c4_112, %c128_113] : memref<16x256xf32, #tpu.memory_space<vmem>>, vector<2x128xf32>
    %cst_114 = arith.constant dense<0.000000e+00> : vector<2x128xf32>
    %351 = tpu.matmul %313, %8, %cst_114 {dimension_numbers = #tpu.dot_dimension_numbers<[1], [0], [0], [1], [0, 0, 1, 1], [], []>} : vector<2x32xf32>, vector<32x128xf32>, vector<2x128xf32> -> vector<2x128xf32>
    %352 = arith.addf %350, %351 : vector<2x128xf32>
    %c4_115 = arith.constant 4 : index
    %c0_116 = arith.constant 0 : index
    %353 = vector.load %arg1[%c4_115, %c0_116] : memref<16x1xf32, #tpu.memory_space<vmem>>, vector<2x1xf32>
    %354 = vector.extract_strided_slice %352 {offsets = [0, 0], sizes = [2, 96], strides = [1, 1]} : vector<2x128xf32> to vector<2x96xf32>
    %cst_117 = arith.constant 5.000000e-01 : f32
    %355 = vector.broadcast %cst_117 : f32 to vector<2x96xf32>
    %356 = arith.mulf %355, %354 : vector<2x96xf32>
    %357 = math.tanh %356 : vector<2x96xf32>
    %cst_118 = arith.constant 5.000000e-01 : f32
    %358 = vector.broadcast %cst_118 : f32 to vector<2x96xf32>
    %359 = arith.mulf %358, %357 : vector<2x96xf32>
    %cst_119 = arith.constant 5.000000e-01 : f32
    %360 = vector.broadcast %cst_119 : f32 to vector<2x96xf32>
    %361 = arith.addf %359, %360 : vector<2x96xf32>
    %362 = vector.extract_strided_slice %361 {offsets = [0, 0], sizes = [2, 32], strides = [1, 1]} : vector<2x96xf32> to vector<2x32xf32>
    %363 = vector.extract_strided_slice %361 {offsets = [0, 32], sizes = [2, 32], strides = [1, 1]} : vector<2x96xf32> to vector<2x32xf32>
    %364 = vector.extract_strided_slice %361 {offsets = [0, 64], sizes = [2, 32], strides = [1, 1]} : vector<2x96xf32> to vector<2x32xf32>
    %365 = vector.extract_strided_slice %352 {offsets = [0, 96], sizes = [2, 32], strides = [1, 1]} : vector<2x128xf32> to vector<2x32xf32>
    %366 = math.tanh %365 : vector<2x32xf32>
    %367 = arith.mulf %363, %317 : vector<2x32xf32>
    %368 = arith.mulf %362, %366 : vector<2x32xf32>
    %369 = arith.addf %367, %368 : vector<2x32xf32>
    %370 = math.tanh %369 : vector<2x32xf32>
    %371 = arith.mulf %364, %370 : vector<2x32xf32>
    %372 = arith.subf %371, %313 : vector<2x32xf32>
    %373 = vector.broadcast %353 : vector<2x1xf32> to vector<2x32xf32>
    %374 = arith.mulf %373, %372 : vector<2x32xf32>
    %375 = arith.addf %313, %374 : vector<2x32xf32>
    %376 = arith.subf %369, %317 : vector<2x32xf32>
    %377 = vector.broadcast %353 : vector<2x1xf32> to vector<2x32xf32>
    %378 = arith.mulf %377, %376 : vector<2x32xf32>
    %379 = arith.addf %317, %378 : vector<2x32xf32>
    %c10_120 = arith.constant 10 : index
    %c0_121 = arith.constant 0 : index
    %380 = vector.load %arg11[%c10_120, %c0_121] : memref<16x32xf32, #tpu.memory_space<vmem>>, vector<2x32xf32>
    tpu.vector_store %arg11[%c10_120, %c0_121], %345 {strides = array<i32>} : memref<16x32xf32, #tpu.memory_space<vmem>>, vector<2x32xf32>,
    %c4_122 = arith.constant 4 : index
    %c0_123 = arith.constant 0 : index
    %381 = vector.load %arg12[%c4_122, %c0_123] : memref<16x32xf32, #tpu.memory_space<vmem>>, vector<2x32xf32>
    tpu.vector_store %arg12[%c4_122, %c0_123], %375 {strides = array<i32>} : memref<16x32xf32, #tpu.memory_space<vmem>>, vector<2x32xf32>,
    %c12_124 = arith.constant 12 : index
    %c0_125 = arith.constant 0 : index
    %382 = vector.load %arg10[%c12_124, %c0_125] : memref<16x256xf32, #tpu.memory_space<vmem>>, vector<2x128xf32>
    %cst_126 = arith.constant dense<0.000000e+00> : vector<2x128xf32>
    %383 = tpu.matmul %345, %7, %cst_126 {dimension_numbers = #tpu.dot_dimension_numbers<[1], [0], [0], [1], [0, 0, 1, 1], [], []>} : vector<2x32xf32>, vector<32x128xf32>, vector<2x128xf32> -> vector<2x128xf32>
    %384 = arith.addf %382, %383 : vector<2x128xf32>
    %c12_127 = arith.constant 12 : index
    %c0_128 = arith.constant 0 : index
    %385 = vector.load %arg1[%c12_127, %c0_128] : memref<16x1xf32, #tpu.memory_space<vmem>>, vector<2x1xf32>
    %386 = vector.extract_strided_slice %384 {offsets = [0, 0], sizes = [2, 96], strides = [1, 1]} : vector<2x128xf32> to vector<2x96xf32>
    %cst_129 = arith.constant 5.000000e-01 : f32
    %387 = vector.broadcast %cst_129 : f32 to vector<2x96xf32>
    %388 = arith.mulf %387, %386 : vector<2x96xf32>
    %389 = math.tanh %388 : vector<2x96xf32>
    %cst_130 = arith.constant 5.000000e-01 : f32
    %390 = vector.broadcast %cst_130 : f32 to vector<2x96xf32>
    %391 = arith.mulf %390, %389 : vector<2x96xf32>
    %cst_131 = arith.constant 5.000000e-01 : f32
    %392 = vector.broadcast %cst_131 : f32 to vector<2x96xf32>
    %393 = arith.addf %391, %392 : vector<2x96xf32>
    %394 = vector.extract_strided_slice %393 {offsets = [0, 0], sizes = [2, 32], strides = [1, 1]} : vector<2x96xf32> to vector<2x32xf32>
    %395 = vector.extract_strided_slice %393 {offsets = [0, 32], sizes = [2, 32], strides = [1, 1]} : vector<2x96xf32> to vector<2x32xf32>
    %396 = vector.extract_strided_slice %393 {offsets = [0, 64], sizes = [2, 32], strides = [1, 1]} : vector<2x96xf32> to vector<2x32xf32>
    %397 = vector.extract_strided_slice %384 {offsets = [0, 96], sizes = [2, 32], strides = [1, 1]} : vector<2x128xf32> to vector<2x32xf32>
    %398 = math.tanh %397 : vector<2x32xf32>
    %399 = arith.mulf %395, %349 : vector<2x32xf32>
    %400 = arith.mulf %394, %398 : vector<2x32xf32>
    %401 = arith.addf %399, %400 : vector<2x32xf32>
    %402 = math.tanh %401 : vector<2x32xf32>
    %403 = arith.mulf %396, %402 : vector<2x32xf32>
    %404 = arith.subf %403, %345 : vector<2x32xf32>
    %405 = vector.broadcast %385 : vector<2x1xf32> to vector<2x32xf32>
    %406 = arith.mulf %405, %404 : vector<2x32xf32>
    %407 = arith.addf %345, %406 : vector<2x32xf32>
    %408 = arith.subf %401, %349 : vector<2x32xf32>
    %409 = vector.broadcast %385 : vector<2x1xf32> to vector<2x32xf32>
    %410 = arith.mulf %409, %408 : vector<2x32xf32>
    %411 = arith.addf %349, %410 : vector<2x32xf32>
    %c2_132 = arith.constant 2 : index
    %c128_133 = arith.constant 128 : index
    %412 = vector.load %arg10[%c2_132, %c128_133] : memref<16x256xf32, #tpu.memory_space<vmem>>, vector<2x128xf32>
    %cst_134 = arith.constant dense<0.000000e+00> : vector<2x128xf32>
    %413 = tpu.matmul %375, %8, %cst_134 {dimension_numbers = #tpu.dot_dimension_numbers<[1], [0], [0], [1], [0, 0, 1, 1], [], []>} : vector<2x32xf32>, vector<32x128xf32>, vector<2x128xf32> -> vector<2x128xf32>
    %414 = arith.addf %412, %413 : vector<2x128xf32>
    %c2_135 = arith.constant 2 : index
    %c0_136 = arith.constant 0 : index
    %415 = vector.load %arg1[%c2_135, %c0_136] : memref<16x1xf32, #tpu.memory_space<vmem>>, vector<2x1xf32>
    %416 = vector.extract_strided_slice %414 {offsets = [0, 0], sizes = [2, 96], strides = [1, 1]} : vector<2x128xf32> to vector<2x96xf32>
    %cst_137 = arith.constant 5.000000e-01 : f32
    %417 = vector.broadcast %cst_137 : f32 to vector<2x96xf32>
    %418 = arith.mulf %417, %416 : vector<2x96xf32>
    %419 = math.tanh %418 : vector<2x96xf32>
    %cst_138 = arith.constant 5.000000e-01 : f32
    %420 = vector.broadcast %cst_138 : f32 to vector<2x96xf32>
    %421 = arith.mulf %420, %419 : vector<2x96xf32>
    %cst_139 = arith.constant 5.000000e-01 : f32
    %422 = vector.broadcast %cst_139 : f32 to vector<2x96xf32>
    %423 = arith.addf %421, %422 : vector<2x96xf32>
    %424 = vector.extract_strided_slice %423 {offsets = [0, 0], sizes = [2, 32], strides = [1, 1]} : vector<2x96xf32> to vector<2x32xf32>
    %425 = vector.extract_strided_slice %423 {offsets = [0, 32], sizes = [2, 32], strides = [1, 1]} : vector<2x96xf32> to vector<2x32xf32>
    %426 = vector.extract_strided_slice %423 {offsets = [0, 64], sizes = [2, 32], strides = [1, 1]} : vector<2x96xf32> to vector<2x32xf32>
    %427 = vector.extract_strided_slice %414 {offsets = [0, 96], sizes = [2, 32], strides = [1, 1]} : vector<2x128xf32> to vector<2x32xf32>
    %428 = math.tanh %427 : vector<2x32xf32>
    %429 = arith.mulf %425, %379 : vector<2x32xf32>
    %430 = arith.mulf %424, %428 : vector<2x32xf32>
    %431 = arith.addf %429, %430 : vector<2x32xf32>
    %432 = math.tanh %431 : vector<2x32xf32>
    %433 = arith.mulf %426, %432 : vector<2x32xf32>
    %434 = arith.subf %433, %375 : vector<2x32xf32>
    %435 = vector.broadcast %415 : vector<2x1xf32> to vector<2x32xf32>
    %436 = arith.mulf %435, %434 : vector<2x32xf32>
    %437 = arith.addf %375, %436 : vector<2x32xf32>
    %438 = arith.subf %431, %379 : vector<2x32xf32>
    %439 = vector.broadcast %415 : vector<2x1xf32> to vector<2x32xf32>
    %440 = arith.mulf %439, %438 : vector<2x32xf32>
    %441 = arith.addf %379, %440 : vector<2x32xf32>
    %c12_140 = arith.constant 12 : index
    %c0_141 = arith.constant 0 : index
    %442 = vector.load %arg11[%c12_140, %c0_141] : memref<16x32xf32, #tpu.memory_space<vmem>>, vector<2x32xf32>
    tpu.vector_store %arg11[%c12_140, %c0_141], %407 {strides = array<i32>} : memref<16x32xf32, #tpu.memory_space<vmem>>, vector<2x32xf32>,
    %c2_142 = arith.constant 2 : index
    %c0_143 = arith.constant 0 : index
    %443 = vector.load %arg12[%c2_142, %c0_143] : memref<16x32xf32, #tpu.memory_space<vmem>>, vector<2x32xf32>
    tpu.vector_store %arg12[%c2_142, %c0_143], %437 {strides = array<i32>} : memref<16x32xf32, #tpu.memory_space<vmem>>, vector<2x32xf32>,
    %c14_144 = arith.constant 14 : index
    %c0_145 = arith.constant 0 : index
    %444 = vector.load %arg10[%c14_144, %c0_145] : memref<16x256xf32, #tpu.memory_space<vmem>>, vector<2x128xf32>
    %cst_146 = arith.constant dense<0.000000e+00> : vector<2x128xf32>
    %445 = tpu.matmul %407, %7, %cst_146 {dimension_numbers = #tpu.dot_dimension_numbers<[1], [0], [0], [1], [0, 0, 1, 1], [], []>} : vector<2x32xf32>, vector<32x128xf32>, vector<2x128xf32> -> vector<2x128xf32>
    %446 = arith.addf %444, %445 : vector<2x128xf32>
    %c14_147 = arith.constant 14 : index
    %c0_148 = arith.constant 0 : index
    %447 = vector.load %arg1[%c14_147, %c0_148] : memref<16x1xf32, #tpu.memory_space<vmem>>, vector<2x1xf32>
    %448 = vector.extract_strided_slice %446 {offsets = [0, 0], sizes = [2, 96], strides = [1, 1]} : vector<2x128xf32> to vector<2x96xf32>
    %cst_149 = arith.constant 5.000000e-01 : f32
    %449 = vector.broadcast %cst_149 : f32 to vector<2x96xf32>
    %450 = arith.mulf %449, %448 : vector<2x96xf32>
    %451 = math.tanh %450 : vector<2x96xf32>
    %cst_150 = arith.constant 5.000000e-01 : f32
    %452 = vector.broadcast %cst_150 : f32 to vector<2x96xf32>
    %453 = arith.mulf %452, %451 : vector<2x96xf32>
    %cst_151 = arith.constant 5.000000e-01 : f32
    %454 = vector.broadcast %cst_151 : f32 to vector<2x96xf32>
    %455 = arith.addf %453, %454 : vector<2x96xf32>
    %456 = vector.extract_strided_slice %455 {offsets = [0, 0], sizes = [2, 32], strides = [1, 1]} : vector<2x96xf32> to vector<2x32xf32>
    %457 = vector.extract_strided_slice %455 {offsets = [0, 32], sizes = [2, 32], strides = [1, 1]} : vector<2x96xf32> to vector<2x32xf32>
    %458 = vector.extract_strided_slice %455 {offsets = [0, 64], sizes = [2, 32], strides = [1, 1]} : vector<2x96xf32> to vector<2x32xf32>
    %459 = vector.extract_strided_slice %446 {offsets = [0, 96], sizes = [2, 32], strides = [1, 1]} : vector<2x128xf32> to vector<2x32xf32>
    %460 = math.tanh %459 : vector<2x32xf32>
    %461 = arith.mulf %457, %411 : vector<2x32xf32>
    %462 = arith.mulf %456, %460 : vector<2x32xf32>
    %463 = arith.addf %461, %462 : vector<2x32xf32>
    %464 = math.tanh %463 : vector<2x32xf32>
    %465 = arith.mulf %458, %464 : vector<2x32xf32>
    %466 = arith.subf %465, %407 : vector<2x32xf32>
    %467 = vector.broadcast %447 : vector<2x1xf32> to vector<2x32xf32>
    %468 = arith.mulf %467, %466 : vector<2x32xf32>
    %469 = arith.addf %407, %468 : vector<2x32xf32>
    %c0_152 = arith.constant 0 : index
    %c128_153 = arith.constant 128 : index
    %470 = vector.load %arg10[%c0_152, %c128_153] : memref<16x256xf32, #tpu.memory_space<vmem>>, vector<2x128xf32>
    %cst_154 = arith.constant dense<0.000000e+00> : vector<2x128xf32>
    %471 = tpu.matmul %437, %8, %cst_154 {dimension_numbers = #tpu.dot_dimension_numbers<[1], [0], [0], [1], [0, 0, 1, 1], [], []>} : vector<2x32xf32>, vector<32x128xf32>, vector<2x128xf32> -> vector<2x128xf32>
    %472 = arith.addf %470, %471 : vector<2x128xf32>
    %c0_155 = arith.constant 0 : index
    %c0_156 = arith.constant 0 : index
    %473 = vector.load %arg1[%c0_155, %c0_156] : memref<16x1xf32, #tpu.memory_space<vmem>>, vector<2x1xf32>
    %474 = vector.extract_strided_slice %472 {offsets = [0, 0], sizes = [2, 96], strides = [1, 1]} : vector<2x128xf32> to vector<2x96xf32>
    %cst_157 = arith.constant 5.000000e-01 : f32
    %475 = vector.broadcast %cst_157 : f32 to vector<2x96xf32>
    %476 = arith.mulf %475, %474 : vector<2x96xf32>
    %477 = math.tanh %476 : vector<2x96xf32>
    %cst_158 = arith.constant 5.000000e-01 : f32
    %478 = vector.broadcast %cst_158 : f32 to vector<2x96xf32>
    %479 = arith.mulf %478, %477 : vector<2x96xf32>
    %cst_159 = arith.constant 5.000000e-01 : f32
    %480 = vector.broadcast %cst_159 : f32 to vector<2x96xf32>
    %481 = arith.addf %479, %480 : vector<2x96xf32>
    %482 = vector.extract_strided_slice %481 {offsets = [0, 0], sizes = [2, 32], strides = [1, 1]} : vector<2x96xf32> to vector<2x32xf32>
    %483 = vector.extract_strided_slice %481 {offsets = [0, 32], sizes = [2, 32], strides = [1, 1]} : vector<2x96xf32> to vector<2x32xf32>
    %484 = vector.extract_strided_slice %481 {offsets = [0, 64], sizes = [2, 32], strides = [1, 1]} : vector<2x96xf32> to vector<2x32xf32>
    %485 = vector.extract_strided_slice %472 {offsets = [0, 96], sizes = [2, 32], strides = [1, 1]} : vector<2x128xf32> to vector<2x32xf32>
    %486 = math.tanh %485 : vector<2x32xf32>
    %487 = arith.mulf %483, %441 : vector<2x32xf32>
    %488 = arith.mulf %482, %486 : vector<2x32xf32>
    %489 = arith.addf %487, %488 : vector<2x32xf32>
    %490 = math.tanh %489 : vector<2x32xf32>
    %491 = arith.mulf %484, %490 : vector<2x32xf32>
    %492 = arith.subf %491, %437 : vector<2x32xf32>
    %493 = vector.broadcast %473 : vector<2x1xf32> to vector<2x32xf32>
    %494 = arith.mulf %493, %492 : vector<2x32xf32>
    %495 = arith.addf %437, %494 : vector<2x32xf32>
    %c14_160 = arith.constant 14 : index
    %c0_161 = arith.constant 0 : index
    %496 = vector.load %arg11[%c14_160, %c0_161] : memref<16x32xf32, #tpu.memory_space<vmem>>, vector<2x32xf32>
    tpu.vector_store %arg11[%c14_160, %c0_161], %469 {strides = array<i32>} : memref<16x32xf32, #tpu.memory_space<vmem>>, vector<2x32xf32>,
    %c0_162 = arith.constant 0 : index
    %c0_163 = arith.constant 0 : index
    %497 = vector.load %arg12[%c0_162, %c0_163] : memref<16x32xf32, #tpu.memory_space<vmem>>, vector<2x32xf32>
    tpu.vector_store %arg12[%c0_162, %c0_163], %495 {strides = array<i32>} : memref<16x32xf32, #tpu.memory_space<vmem>>, vector<2x32xf32>,
    %c0_164 = arith.constant 0 : index
    %c0_165 = arith.constant 0 : index
    %498 = vector.load %arg7[%c0_164, %c0_165] : memref<2x64xf32, #tpu.memory_space<vmem>>, vector<2x32xf32>
    %c0_166 = arith.constant 0 : index
    %c0_167 = arith.constant 0 : index
    %499 = vector.load %arg11[%c0_166, %c0_167] : memref<16x32xf32, #tpu.memory_space<vmem>>, vector<16x32xf32>
    %cst_168 = arith.constant dense<0.000000e+00> : vector<2x16xf32>
    %500 = tpu.matmul %498, %499, %cst_168 {dimension_numbers = #tpu.dot_dimension_numbers<[1], [1], [0], [0], [0, 0, 1, 0], [], []>} : vector<2x32xf32>, vector<16x32xf32>, vector<2x16xf32> -> vector<2x16xf32>
    %c0_169 = arith.constant 0 : index
    %c32 = arith.constant 32 : index
    %501 = vector.load %arg7[%c0_169, %c32] : memref<2x64xf32, #tpu.memory_space<vmem>>, vector<2x32xf32>
    %c0_170 = arith.constant 0 : index
    %c0_171 = arith.constant 0 : index
    %502 = vector.load %arg12[%c0_170, %c0_171] : memref<16x32xf32, #tpu.memory_space<vmem>>, vector<16x32xf32>
    %cst_172 = arith.constant dense<0.000000e+00> : vector<2x16xf32>
    %503 = tpu.matmul %501, %502, %cst_172 {dimension_numbers = #tpu.dot_dimension_numbers<[1], [1], [0], [0], [0, 0, 1, 0], [], []>} : vector<2x32xf32>, vector<16x32xf32>, vector<2x16xf32> -> vector<2x16xf32>
    %504 = arith.addf %500, %503 : vector<2x16xf32>
    %c0_173 = arith.constant 0 : index
    %c0_174 = arith.constant 0 : index
    %505 = vector.load %arg8[%c0_173, %c0_174] : memref<2x1xf32, #tpu.memory_space<vmem>>, vector<2x1xf32>
    %506 = vector.broadcast %505 : vector<2x1xf32> to vector<2x16xf32>
    %507 = arith.addf %504, %506 : vector<2x16xf32>
    %cst_175 = arith.constant 2.000000e+01 : f32
    %508 = vector.broadcast %cst_175 : f32 to vector<2x16xf32>
    %509 = arith.cmpf ogt, %507, %508 : vector<2x16xf32>
    %cst_176 = arith.constant 2.000000e+01 : f32
    %510 = vector.broadcast %cst_176 : f32 to vector<2x16xf32>
    %511 = arith.minimumf %507, %510 : vector<2x16xf32>
    %512 = math.exp %511 : vector<2x16xf32>
    %cst_177 = arith.constant 1.000000e+00 : f32
    %513 = vector.broadcast %cst_177 : f32 to vector<2x16xf32>
    %514 = arith.addf %513, %512 : vector<2x16xf32>
    %515 = math.log %514 : vector<2x16xf32>
    %516 = arith.select %509, %507, %515 : vector<2x16xi1>, vector<2x16xf32>
    %cst_178 = arith.constant 9.99999997E-7 : f32
    %cst_179 = arith.constant 1.000000e+02 : f32
    %517 = vector.broadcast %cst_178 : f32 to vector<2x16xf32>
    %518 = arith.maximumf %517, %516 : vector<2x16xf32>
    %519 = vector.broadcast %cst_179 : f32 to vector<2x16xf32>
    %520 = arith.minimumf %519, %518 : vector<2x16xf32>
    %521 = vector.extract_strided_slice %520 {offsets = [0, 0], sizes = [1, 16], strides = [1, 1]} : vector<2x16xf32> to vector<1x16xf32>
    %522 = vector.extract_strided_slice %520 {offsets = [1, 0], sizes = [1, 16], strides = [1, 1]} : vector<2x16xf32> to vector<1x16xf32>
    %cst_180 = arith.constant -2.48490667 : f32
    %523 = vector.broadcast %cst_180 : f32 to vector<1x16xf32>
    %524 = arith.mulf %521, %523 : vector<1x16xf32>
    %525 = math.exp %524 : vector<1x16xf32>
    %cst_181 = arith.constant 1.000000e+00 : f32
    %526 = vector.broadcast %cst_181 : f32 to vector<1x16xf32>
    %527 = arith.subf %526, %525 : vector<1x16xf32>
    %cst_182 = arith.constant 9.99999996E-13 : f32
    %cst_183 = arith.constant 1.000000e+00 : f32
    %528 = vector.broadcast %cst_182 : f32 to vector<1x16xf32>
    %529 = arith.maximumf %528, %527 : vector<1x16xf32>
    %530 = vector.broadcast %cst_183 : f32 to vector<1x16xf32>
    %531 = arith.minimumf %530, %529 : vector<1x16xf32>
    %532 = math.log %531 : vector<1x16xf32>
    %533 = arith.mulf %522, %532 : vector<1x16xf32>
    %534 = math.exp %533 : vector<1x16xf32>
    %cst_184 = arith.constant 1.000000e+00 : f32
    %535 = vector.broadcast %cst_184 : f32 to vector<1x16xf32>
    %536 = arith.subf %535, %534 : vector<1x16xf32>
    %cst_185 = arith.constant -0.0870113745 : f32
    %537 = vector.broadcast %cst_185 : f32 to vector<1x16xf32>
    %538 = arith.mulf %521, %537 : vector<1x16xf32>
    %539 = math.exp %538 : vector<1x16xf32>
    %cst_186 = arith.constant 1.000000e+00 : f32
    %540 = vector.broadcast %cst_186 : f32 to vector<1x16xf32>
    %541 = arith.subf %540, %539 : vector<1x16xf32>
    %cst_187 = arith.constant 9.99999996E-13 : f32
    %cst_188 = arith.constant 1.000000e+00 : f32
    %542 = vector.broadcast %cst_187 : f32 to vector<1x16xf32>
    %543 = arith.maximumf %542, %541 : vector<1x16xf32>
    %544 = vector.broadcast %cst_188 : f32 to vector<1x16xf32>
    %545 = arith.minimumf %544, %543 : vector<1x16xf32>
    %546 = math.log %545 : vector<1x16xf32>
    %547 = arith.mulf %522, %546 : vector<1x16xf32>
    %548 = math.exp %547 : vector<1x16xf32>
    %cst_189 = arith.constant 1.000000e+00 : f32
    %549 = vector.broadcast %cst_189 : f32 to vector<1x16xf32>
    %550 = arith.subf %549, %548 : vector<1x16xf32>
    %cst_190 = arith.constant 1.000000e+00 : f32
    %551 = vector.broadcast %cst_190 : f32 to vector<1x16xf32>
    %552 = arith.subf %551, %550 : vector<1x16xf32>
    %553 = tpu.reciprocal %521 {approx = true} : vector<1x16xf32> -> vector<1x16xf32>
    %554 = arith.mulf %521, %553 : vector<1x16xf32>
    %cst_191 = arith.constant 2.000000e+00 : f32
    %555 = vector.broadcast %cst_191 : f32 to vector<1x16xf32>
    %556 = arith.subf %555, %554 : vector<1x16xf32>
    %557 = arith.mulf %553, %556 : vector<1x16xf32>
    %cst_192 = arith.constant 1.000000e+00 : f32
    %558 = vector.broadcast %cst_192 : f32 to vector<1x16xf32>
    %559 = arith.addf %558, %557 : vector<1x16xf32>
    %560 = arith.addf %559, %522 : vector<1x16xf32>
    %561 = tpu.concatenate %559, %522, %560 in 0 : vector<1x16xf32>, vector<1x16xf32>, vector<1x16xf32> -> vector<3x16xf32>
    %cst_193 = arith.constant 1.000000e+00 : f32
    %562 = vector.broadcast %cst_193 : f32 to vector<3x16xf32>
    %563 = arith.subf %561, %562 : vector<3x16xf32>
    %cst_194 = arith.constant 7.000000e+00 : f32
    %564 = vector.broadcast %cst_194 : f32 to vector<3x16xf32>
    %565 = arith.addf %563, %564 : vector<3x16xf32>
    %cst_195 = arith.constant 5.000000e-01 : f32
    %566 = vector.broadcast %cst_195 : f32 to vector<3x16xf32>
    %567 = arith.addf %565, %566 : vector<3x16xf32>
    %cst_196 = arith.constant 1.000000e+00 : f32
    %568 = vector.broadcast %cst_196 : f32 to vector<3x16xf32>
    %cst_197 = arith.constant 1.000000e+00 : f32
    %569 = vector.broadcast %cst_197 : f32 to vector<3x16xf32>
    %570 = arith.addf %563, %569 : vector<3x16xf32>
    %571 = tpu.reciprocal %570 {approx = true} : vector<3x16xf32> -> vector<3x16xf32>
    %572 = arith.mulf %570, %571 : vector<3x16xf32>
    %cst_198 = arith.constant 2.000000e+00 : f32
    %573 = vector.broadcast %cst_198 : f32 to vector<3x16xf32>
    %574 = arith.subf %573, %572 : vector<3x16xf32>
    %575 = arith.mulf %571, %574 : vector<3x16xf32>
    %cst_199 = arith.constant 676.520386 : f32
    %576 = vector.broadcast %cst_199 : f32 to vector<3x16xf32>
    %577 = arith.mulf %576, %575 : vector<3x16xf32>
    %578 = arith.addf %568, %577 : vector<3x16xf32>
    %cst_200 = arith.constant 2.000000e+00 : f32
    %579 = vector.broadcast %cst_200 : f32 to vector<3x16xf32>
    %580 = arith.addf %563, %579 : vector<3x16xf32>
    %581 = tpu.reciprocal %580 {approx = true} : vector<3x16xf32> -> vector<3x16xf32>
    %582 = arith.mulf %580, %581 : vector<3x16xf32>
    %cst_201 = arith.constant 2.000000e+00 : f32
    %583 = vector.broadcast %cst_201 : f32 to vector<3x16xf32>
    %584 = arith.subf %583, %582 : vector<3x16xf32>
    %585 = arith.mulf %581, %584 : vector<3x16xf32>
    %cst_202 = arith.constant -1259.13916 : f32
    %586 = vector.broadcast %cst_202 : f32 to vector<3x16xf32>
    %587 = arith.mulf %586, %585 : vector<3x16xf32>
    %588 = arith.addf %578, %587 : vector<3x16xf32>
    %cst_203 = arith.constant 3.000000e+00 : f32
    %589 = vector.broadcast %cst_203 : f32 to vector<3x16xf32>
    %590 = arith.addf %563, %589 : vector<3x16xf32>
    %591 = tpu.reciprocal %590 {approx = true} : vector<3x16xf32> -> vector<3x16xf32>
    %592 = arith.mulf %590, %591 : vector<3x16xf32>
    %cst_204 = arith.constant 2.000000e+00 : f32
    %593 = vector.broadcast %cst_204 : f32 to vector<3x16xf32>
    %594 = arith.subf %593, %592 : vector<3x16xf32>
    %595 = arith.mulf %591, %594 : vector<3x16xf32>
    %cst_205 = arith.constant 771.323425 : f32
    %596 = vector.broadcast %cst_205 : f32 to vector<3x16xf32>
    %597 = arith.mulf %596, %595 : vector<3x16xf32>
    %598 = arith.addf %588, %597 : vector<3x16xf32>
    %cst_206 = arith.constant 4.000000e+00 : f32
    %599 = vector.broadcast %cst_206 : f32 to vector<3x16xf32>
    %600 = arith.addf %563, %599 : vector<3x16xf32>
    %601 = tpu.reciprocal %600 {approx = true} : vector<3x16xf32> -> vector<3x16xf32>
    %602 = arith.mulf %600, %601 : vector<3x16xf32>
    %cst_207 = arith.constant 2.000000e+00 : f32
    %603 = vector.broadcast %cst_207 : f32 to vector<3x16xf32>
    %604 = arith.subf %603, %602 : vector<3x16xf32>
    %605 = arith.mulf %601, %604 : vector<3x16xf32>
    %cst_208 = arith.constant -176.615036 : f32
    %606 = vector.broadcast %cst_208 : f32 to vector<3x16xf32>
    %607 = arith.mulf %606, %605 : vector<3x16xf32>
    %608 = arith.addf %598, %607 : vector<3x16xf32>
    %cst_209 = arith.constant 5.000000e+00 : f32
    %609 = vector.broadcast %cst_209 : f32 to vector<3x16xf32>
    %610 = arith.addf %563, %609 : vector<3x16xf32>
    %611 = tpu.reciprocal %610 {approx = true} : vector<3x16xf32> -> vector<3x16xf32>
    %612 = arith.mulf %610, %611 : vector<3x16xf32>
    %cst_210 = arith.constant 2.000000e+00 : f32
    %613 = vector.broadcast %cst_210 : f32 to vector<3x16xf32>
    %614 = arith.subf %613, %612 : vector<3x16xf32>
    %615 = arith.mulf %611, %614 : vector<3x16xf32>
    %cst_211 = arith.constant 12.5073433 : f32
    %616 = vector.broadcast %cst_211 : f32 to vector<3x16xf32>
    %617 = arith.mulf %616, %615 : vector<3x16xf32>
    %618 = arith.addf %608, %617 : vector<3x16xf32>
    %cst_212 = arith.constant 6.000000e+00 : f32
    %619 = vector.broadcast %cst_212 : f32 to vector<3x16xf32>
    %620 = arith.addf %563, %619 : vector<3x16xf32>
    %621 = tpu.reciprocal %620 {approx = true} : vector<3x16xf32> -> vector<3x16xf32>
    %622 = arith.mulf %620, %621 : vector<3x16xf32>
    %cst_213 = arith.constant 2.000000e+00 : f32
    %623 = vector.broadcast %cst_213 : f32 to vector<3x16xf32>
    %624 = arith.subf %623, %622 : vector<3x16xf32>
    %625 = arith.mulf %621, %624 : vector<3x16xf32>
    %cst_214 = arith.constant -0.138571098 : f32
    %626 = vector.broadcast %cst_214 : f32 to vector<3x16xf32>
    %627 = arith.mulf %626, %625 : vector<3x16xf32>
    %628 = arith.addf %618, %627 : vector<3x16xf32>
    %cst_215 = arith.constant 7.000000e+00 : f32
    %629 = vector.broadcast %cst_215 : f32 to vector<3x16xf32>
    %630 = arith.addf %563, %629 : vector<3x16xf32>
    %631 = tpu.reciprocal %630 {approx = true} : vector<3x16xf32> -> vector<3x16xf32>
    %632 = arith.mulf %630, %631 : vector<3x16xf32>
    %cst_216 = arith.constant 2.000000e+00 : f32
    %633 = vector.broadcast %cst_216 : f32 to vector<3x16xf32>
    %634 = arith.subf %633, %632 : vector<3x16xf32>
    %635 = arith.mulf %631, %634 : vector<3x16xf32>
    %cst_217 = arith.constant 9.98436917E-6 : f32
    %636 = vector.broadcast %cst_217 : f32 to vector<3x16xf32>
    %637 = arith.mulf %636, %635 : vector<3x16xf32>
    %638 = arith.addf %628, %637 : vector<3x16xf32>
    %cst_218 = arith.constant 8.000000e+00 : f32
    %639 = vector.broadcast %cst_218 : f32 to vector<3x16xf32>
    %640 = arith.addf %563, %639 : vector<3x16xf32>
    %641 = tpu.reciprocal %640 {approx = true} : vector<3x16xf32> -> vector<3x16xf32>
    %642 = arith.mulf %640, %641 : vector<3x16xf32>
    %cst_219 = arith.constant 2.000000e+00 : f32
    %643 = vector.broadcast %cst_219 : f32 to vector<3x16xf32>
    %644 = arith.subf %643, %642 : vector<3x16xf32>
    %645 = arith.mulf %641, %644 : vector<3x16xf32>
    %cst_220 = arith.constant 1.50563267E-7 : f32
    %646 = vector.broadcast %cst_220 : f32 to vector<3x16xf32>
    %647 = arith.mulf %646, %645 : vector<3x16xf32>
    %648 = arith.addf %638, %647 : vector<3x16xf32>
    %cst_221 = arith.constant 5.000000e-01 : f32
    %649 = vector.broadcast %cst_221 : f32 to vector<3x16xf32>
    %650 = arith.addf %563, %649 : vector<3x16xf32>
    %651 = math.log %567 : vector<3x16xf32>
    %652 = arith.mulf %650, %651 : vector<3x16xf32>
    %cst_222 = arith.constant 0.918938517 : f32
    %653 = vector.broadcast %cst_222 : f32 to vector<3x16xf32>
    %654 = arith.addf %653, %652 : vector<3x16xf32>
    %655 = arith.subf %654, %567 : vector<3x16xf32>
    %656 = math.log %648 : vector<3x16xf32>
    %657 = arith.addf %655, %656 : vector<3x16xf32>
    %658 = vector.extract_strided_slice %657 {offsets = [0, 0], sizes = [1, 16], strides = [1, 1]} : vector<3x16xf32> to vector<1x16xf32>
    %659 = vector.extract_strided_slice %657 {offsets = [1, 0], sizes = [1, 16], strides = [1, 1]} : vector<3x16xf32> to vector<1x16xf32>
    %660 = arith.addf %658, %659 : vector<1x16xf32>
    %661 = vector.extract_strided_slice %657 {offsets = [2, 0], sizes = [1, 16], strides = [1, 1]} : vector<3x16xf32> to vector<1x16xf32>
    %662 = arith.subf %660, %661 : vector<1x16xf32>
    %663 = math.exp %662 : vector<1x16xf32>
    %664 = arith.mulf %522, %663 : vector<1x16xf32>
    %cst_223 = arith.constant 1.200000e+00 : f32
    %665 = vector.broadcast %cst_223 : f32 to vector<1x16xf32>
    %666 = arith.mulf %665, %664 : vector<1x16xf32>
    %cst_224 = arith.constant -1.000000e-01 : f32
    %667 = vector.broadcast %cst_224 : f32 to vector<1x16xf32>
    %668 = arith.addf %667, %666 : vector<1x16xf32>
    %cst_225 = arith.constant 0.000000e+00 : f32
    %cst_226 = arith.constant 1.000000e+00 : f32
    %669 = vector.broadcast %cst_225 : f32 to vector<1x16xf32>
    %670 = arith.maximumf %669, %668 : vector<1x16xf32>
    %671 = vector.broadcast %cst_226 : f32 to vector<1x16xf32>
    %672 = arith.minimumf %671, %670 : vector<1x16xf32>
    %cst_227 = arith.constant 1.000000e+00 : f32
    %673 = vector.broadcast %cst_227 : f32 to vector<1x16xf32>
    %674 = arith.subf %673, %536 : vector<1x16xf32>
    %675 = arith.subf %674, %552 : vector<1x16xf32>
    %676 = arith.cmpf ogt, %536, %552 : vector<1x16xf32>
    %cst_228 = arith.constant 0.000000e+00 : f32
    %cst_229 = arith.constant 1.000000e+00 : f32
    %677 = vector.broadcast %cst_228 : f32 to vector<1x16xf32>
    %678 = vector.broadcast %cst_229 : f32 to vector<1x16xf32>
    %679 = arith.select %676, %677, %678 : vector<1x16xi1>, vector<1x16xf32>
    %680 = arith.cmpf ogt, %675, %536 : vector<1x16xf32>
    %681 = arith.cmpf ogt, %675, %552 : vector<1x16xf32>
    %682 = arith.andi %680, %681 : vector<1x16xi1>
    %683 = arith.select %682, %672, %679 : vector<1x16xi1>, vector<1x16xf32>
    %c0_230 = arith.constant 0 : index
    %c0_231 = arith.constant 0 : index
    %684 = vector.load %arg2[%c0_230, %c0_231] : memref<1x16xf32, #tpu.memory_space<vmem>>, vector<1x16xf32>
    %cst_232 = arith.constant 0.000000e+00 : f32
    %685 = vector.broadcast %cst_232 : f32 to vector<1x16xf32>
    %686 = arith.cmpf ogt, %684, %685 : vector<1x16xf32>
    %cst_233 = arith.constant 0.000000e+00 : f32
    %687 = vector.broadcast %cst_233 : f32 to vector<1x16xf32>
    %688 = arith.select %686, %683, %687 : vector<1x16xi1>, vector<1x16xf32>
    %c0_234 = arith.constant 0 : index
    %c0_235 = arith.constant 0 : index
    %689 = vector.load %arg9[%c0_234, %c0_235] : memref<1x16xf32, #tpu.memory_space<vmem>>, vector<1x16xf32>
    tpu.vector_store %arg9[%c0_234, %c0_235], %688 {strides = array<i32>} : memref<1x16xf32, #tpu.memory_space<vmem>>, vector<1x16xf32>,
    return
  }
}

</mosaic_0001>

<llo_original>
// kernel: tpu_custom_call.1
$region0: #{tpu_custom_call.1}
  #allocation0 [shape = 'u32[]', space=smem, size = 0x4, offset = 0x4, fixed_abs, tag = 'smem constant byte address 0x4 - core index']
  #allocation1 [shape = 'u32[144,128]{1,0:T(1,128)}', space=vmem, size = 0x12000, scoped, tag = 'internal scratch']
  #allocation2 [shape = 'f32[16,256]{1,0:T(8,128)}', space=vmem, size = 0x4000, scoped, tag = 'scratch operand']
  #allocation3 [shape = 'f32[16,32]{1,0:T(8,128)}', space=vmem, size = 0x2000, scoped, tag = 'scratch operand']
  #allocation4 [shape = 'f32[16,32]{1,0:T(8,128)}', space=vmem, size = 0x2000, scoped, tag = 'scratch operand']
  %s0 = inlined_call_operand.vmem [shape: f32[16,32], index: 0, kind: input, shape index: {}]
  %s1 = inlined_call_operand.vmem [shape: f32[16,1], index: 1, kind: input, shape index: {}]
  %s2 = inlined_call_operand.vmem [shape: f32[1,16], index: 2, kind: input, shape index: {}]
  %s3 = inlined_call_operand.hbm [shape: f32[32,256], index: 3, kind: input, shape index: {}]
  %s4 = inlined_call_operand.vmem [shape: f32[1,256], index: 4, kind: input, shape index: {}]
  %s5 = inlined_call_operand.hbm [shape: f32[32,128], index: 5, kind: input, shape index: {}]
  %s6 = inlined_call_operand.hbm [shape: f32[32,128], index: 6, kind: input, shape index: {}]
  %s7 = inlined_call_operand.vmem [shape: f32[2,64], index: 7, kind: input, shape index: {}]
  %s8 = inlined_call_operand.vmem [shape: f32[2,1], index: 8, kind: input, shape index: {}]
  %s9 = inlined_call_operand.hbm [shape: f32[1,16], index: 9, kind: output, shape index: {}]
  %s10 = sld [smem:[#allocation0]]
  $region58: #{tpu_custom_call.1} parent=0
    _
  %s12 = ssub.s32 1, %s10
  %s13 = scalar_select 0, %s12, %s10
  $region1: #{tpu_custom_call.1} parent=0
    #allocation5 [shape = 'u8[32768]{0}', space=vmem, size = 0x8000, scoped, tag = 'input window, operand 3, single buffered']
    #allocation6 [shape = 's32[1]{0}', space=sflag, size = 0x4, scoped, tag = 'scoped memory for tpu_custom_call.1']
    #allocation7 [shape = 's32[1]{0}', space=sflag, size = 0x4, scoped, tag = 'scoped memory for tpu_custom_call.1']
    #allocation8 [shape = 'u8[16384]{0}', space=vmem, size = 0x4000, scoped, tag = 'input window, operand 5, single buffered']
    #allocation9 [shape = 's32[1]{0}', space=sflag, size = 0x4, scoped, tag = 'scoped memory for tpu_custom_call.1']
    #allocation10 [shape = 'u8[16384]{0}', space=vmem, size = 0x4000, scoped, tag = 'input window, operand 6, single buffered']
    #allocation11 [shape = 'u8[512]{0}', space=vmem, size = 0x400, scoped, tag = 'output window, operand 0, single buffered']
    %14 = vsyncpa [#allocation6], 0
    %15 = vsyncpa [#allocation9], 0
    %16 = vsyncpa [#allocation7], 0
    // Predicated region
    $region2: #{tpu_custom_call.1} parent=1 // pred_check
      _
    $region3: #{tpu_custom_call.1} parent=1 // pred_check_branch
      %18 = sbr.rel (0) target = $region5
    $region4: #{tpu_custom_call.1} parent=1 // pred_region
      _
    $region5: #{tpu_custom_call.1} parent=1 // pred_fallthru
      _
    // Predicated region
    $region6: #{tpu_custom_call.1} parent=1 // pred_check
      _
    $region7: #{tpu_custom_call.1} parent=1 // pred_check_branch
      %20 = sbr.rel (0) target = $region9
    $region8: #{tpu_custom_call.1} parent=1 // pred_region
      _
    $region9: #{tpu_custom_call.1} parent=1 // pred_fallthru
      _
    // Predicated region
    $region10: #{tpu_custom_call.1} parent=1 // pred_check
      _
    $region11: #{tpu_custom_call.1} parent=1 // pred_check_branch
      %22 = sbr.rel (0) target = $region13
    $region12: #{tpu_custom_call.1} parent=1 // pred_region
      _
    $region13: #{tpu_custom_call.1} parent=1 // pred_fallthru
      _
    // Predicated region
    $region14: #{tpu_custom_call.1} parent=1 // pred_check
      _
    $region15: #{tpu_custom_call.1} parent=1 // pred_check_branch
      %24 = sbr.rel (0) target = $region17
    $region16: #{tpu_custom_call.1} parent=1 // pred_region
      %s26 = ssub.s32 1024, 1024
      %27 = vsyncadd [#allocation6], %s26
      %s28 = sshll.u32 [#allocation5], 4
      %s29 = int_to_ptr.vmem [resolvable:$true] %s28
      %34 = dma.hbm_to_vmem [thread:$0]  %s3, 1024, %s29, [#allocation6], 256, 256, 16
    $region17: #{tpu_custom_call.1} parent=1 // pred_fallthru
      _
    // Predicated region
    $region18: #{tpu_custom_call.1} parent=1 // pred_check
      _
    $region19: #{tpu_custom_call.1} parent=1 // pred_check_branch
      %36 = sbr.rel (0) target = $region21
    $region20: #{tpu_custom_call.1} parent=1 // pred_region
      _
    $region21: #{tpu_custom_call.1} parent=1 // pred_fallthru
      _
    // Predicated region
    $region22: #{tpu_custom_call.1} parent=1 // pred_check
      _
    $region23: #{tpu_custom_call.1} parent=1 // pred_check_branch
      %38 = sbr.rel (0) target = $region25
    $region24: #{tpu_custom_call.1} parent=1 // pred_region
      %s40 = ssub.s32 512, 512
      %41 = vsyncadd [#allocation9], %s40
      %s42 = sshll.u32 [#allocation8], 4
      %s43 = int_to_ptr.vmem [resolvable:$true] %s42
      %48 = dma.hbm_to_vmem [thread:$0]  %s5, 512, %s43, [#allocation9], 128, 128, 8
    $region25: #{tpu_custom_call.1} parent=1 // pred_fallthru
      _
    // Predicated region
    $region26: #{tpu_custom_call.1} parent=1 // pred_check
      _
    $region27: #{tpu_custom_call.1} parent=1 // pred_check_branch
      %50 = sbr.rel (0) target = $region29
    $region28: #{tpu_custom_call.1} parent=1 // pred_region
      %s52 = ssub.s32 512, 512
      %53 = vsyncadd [#allocation9], %s52
      %s54 = sshll.u32 [#allocation10], 4
      %s55 = int_to_ptr.vmem [resolvable:$true] %s54
      %60 = dma.hbm_to_vmem [thread:$0]  %s6, 512, %s55, [#allocation9], 128, 128, 8
    $region29: #{tpu_custom_call.1} parent=1 // pred_fallthru
      _
    // Predicated region
    $region30: #{tpu_custom_call.1} parent=1 // pred_check
      _
    $region31: #{tpu_custom_call.1} parent=1 // pred_check_branch
      %62 = sbr.rel (0) target = $region33
    $region32: #{tpu_custom_call.1} parent=1 // pred_region
      _
    $region33: #{tpu_custom_call.1} parent=1 // pred_fallthru
      _
    // Predicated region
    $region34: #{tpu_custom_call.1} parent=1 // pred_check
      _
    $region35: #{tpu_custom_call.1} parent=1 // pred_check_branch
      %64 = sbr.rel (0) target = $region37
    $region36: #{tpu_custom_call.1} parent=1 // pred_region
      _
    $region37: #{tpu_custom_call.1} parent=1 // pred_fallthru
      _
    // Predicated region
    $region38: #{tpu_custom_call.1} parent=1 // pred_check
      _
    $region39: #{tpu_custom_call.1} parent=1 // pred_check_branch
      %66 = sbr.rel (0) target = $region41
    $region40: #{tpu_custom_call.1} parent=1 // pred_region
      %67 = dma.done [#allocation6], 1024
    $region41: #{tpu_custom_call.1} parent=1 // pred_fallthru
      _
    // Predicated region
    $region42: #{tpu_custom_call.1} parent=1 // pred_check
      _
    $region43: #{tpu_custom_call.1} parent=1 // pred_check_branch
      %69 = sbr.rel (0) target = $region45
    $region44: #{tpu_custom_call.1} parent=1 // pred_region
      %70 = dma.done [#allocation9], 512
    $region45: #{tpu_custom_call.1} parent=1 // pred_fallthru
      _
    // Predicated region
    $region46: #{tpu_custom_call.1} parent=1 // pred_check
      _
    $region47: #{tpu_custom_call.1} parent=1 // pred_check_branch
      %72 = sbr.rel (0) target = $region49
    $region48: #{tpu_custom_call.1} parent=1 // pred_region
      %73 = dma.done [#allocation9], 512
    $region49: #{tpu_custom_call.1} parent=1 // pred_fallthru
      _
    %v74 = vld [vmem:[%s0] sm:$0xff]
    %v75 = vld [vmem:[%s0 + $0x8] sm:$0xff]
    %v76 = vld [vmem:[#allocation5] sm:$0xff]
    %v77 = vld [vmem:[#allocation5 + $0x8] sm:$0xff]
    %v78 = vld [vmem:[#allocation5 + $0x10] sm:$0xff]
    %v79 = vld [vmem:[#allocation5 + $0x18] sm:$0xff]
    %v80 = vld [vmem:[#allocation5 + $0x20] sm:$0xff]
    %v81 = vld [vmem:[#allocation5 + $0x28] sm:$0xff]
    %v82 = vld [vmem:[#allocation5 + $0x30] sm:$0xff]
    %v83 = vld [vmem:[#allocation5 + $0x38] sm:$0xff]
    %v84 = vld [vmem:[%s4] sm:$0x3]
    %v86 = vlaneseq
    %v87 = vshrl.u32 %v86, 7
    %v88 = vsub.s32 0, %v87
    %v89 = vrot.slane %v84, %v88
    %v90 = vlaneseq
    %v91 = vshrl.u32 %v90, 7
    %v92 = vsub.s32 1, %v91
    %v93 = vrot.slane %v84, %v92
    %vm96 = vcmask 261120
    %v98 = vsel %vm96, %v74, 0
    %v101 = vsel %vm96, %v75, 0
    %103 = vmatprep.subr.mxu0 0.0
    %104 = vmatpush1.msra.mxu0 0.0
    %105 = vmatprep.subr.mxu0 0.0
    %106 = vmatpush1.msra.mxu0 0.0
    %107 = vmatprep.subr.mxu0 0.0
    %108 = vmatpush1.msra.mxu0 0.0
    %109 = vmatprep.subr.mxu0 0.0
    %110 = vmatpush1.msra.mxu0 0.0
    %111 = vmatprep.subr.mxu0 0.0
    %112 = vmatpush1.msra.mxu0 0.0
    %113 = vmatprep.subr.mxu0 0.0
    %114 = vmatpush1.msra.mxu0 0.0
    %115 = vmatprep.subr.mxu0 0.0
    %116 = vmatpush1.msra.mxu0 0.0
    %117 = vmatprep.subr.mxu0 0.0
    %118 = vmatpush1.msra.mxu0 0.0
    %119 = vmatprep.subr.mxu0 0.0
    %120 = vmatpush1.msra.mxu0 0.0
    %121 = vmatprep.subr.mxu0 0.0
    %122 = vmatpush1.msra.mxu0 0.0
    %123 = vmatprep.subr.mxu0 0.0
    %124 = vmatpush1.msra.mxu0 0.0
    %125 = vmatprep.subr.mxu0 0.0
    %126 = vmatpush1.msra.mxu0 0.0
    %127 = vmatprep.subr.mxu0 %v83
    %128 = vmatpush1.msra.mxu0 %v82
    %129 = vmatprep.subr.mxu0 %v81
    %130 = vmatpush1.msra.mxu0 %v80
    %131 = vmatprep.subr.mxu0 %v79
    %132 = vmatpush1.msra.mxu0 %v78
    %133 = vmatprep.subr.mxu0 %v77
    %134 = vmatpush1.msra.mxu0 %v76
    %135 = vmatprep.subr.mxu0 0.0
    %136 = vmatpush2.msra.mxu0 0.0
    %137 = vmatprep.subr.mxu0 0.0
    %138 = vmatpush2.msra.mxu0 0.0
    %139 = vmatprep.subr.mxu0 0.0
    %140 = vmatpush2.msra.mxu0 0.0
    %141 = vmatprep.subr.mxu0 0.0
    %142 = vmatpush2.msra.mxu0 0.0
    %143 = vmatprep.subr.mxu0 0.0
    %144 = vmatpush2.msra.mxu0 0.0
    %145 = vmatprep.subr.mxu0 0.0
    %146 = vmatpush2.msra.mxu0 0.0
    %147 = vmatprep.subr.mxu0 0.0
    %148 = vmatpush2.msra.mxu0 0.0
    %149 = vmatprep.subr.mxu0 0.0
    %150 = vmatpush2.msra.mxu0 0.0
    %151 = vmatprep.subr.mxu0 0.0
    %152 = vmatpush2.msra.mxu0 0.0
    %153 = vmatprep.subr.mxu0 0.0
    %154 = vmatpush2.msra.mxu0 0.0
    %155 = vmatprep.subr.mxu0 0.0
    %156 = vmatpush2.msra.mxu0 0.0
    %157 = vmatprep.subr.mxu0 0.0
    %158 = vmatpush2.msra.mxu0 0.0
    %159 = vmatprep.subr.mxu0 0.0
    %160 = vmatpush2.msra.mxu0 0.0
    %161 = vmatprep.subr.mxu0 0.0
    %162 = vmatpush2.msra.mxu0 0.0
    %163 = vmatprep.subr.mxu0 0.0
    %164 = vmatpush2.msra.mxu0 0.0
    %165 = vmatprep.subr.mxu0 0.0
    %166 = vmatpush2.msra.mxu0 0.0
    %167 = vmatprep.mubr.f32.mxu0 0.0
    %168 = vmatmul.mubr.f32.gmra.mxu0 %v98
    %v169 = vpop.f32.mrf.mxu0
    %v170 = vadd.f32 %v89, %v169
    %v171 = vpop.f32.mrf.mxu0
    %v172 = vadd.f32 %v93, %v171
    %173 = vmatprep.mubr.f32.mxu0 0.0
    %174 = vmatmul.mubr.f32.gmra.mxu0 %v101
    %v175 = vpop.f32.mrf.mxu0
    %v176 = vadd.f32 %v89, %v175
    %v177 = vpop.f32.mrf.mxu0
    %v178 = vadd.f32 %v93, %v177
    %179 = vdwg.mxu0
    %180 = vst [vmem:[#allocation2] sm:$0xff] %v170
    %181 = vst [vmem:[#allocation2 + $0x8] sm:$0xff] %v172
    %182 = vst [vmem:[#allocation2 + $0x10] sm:$0xff] %v176
    %183 = vst [vmem:[#allocation2 + $0x18] sm:$0xff] %v178
    %v184 = vld [vmem:[#allocation8] sm:$0xff]
    %v185 = vld [vmem:[#allocation8 + $0x8] sm:$0xff]
    %v186 = vld [vmem:[#allocation8 + $0x10] sm:$0xff]
    %v187 = vld [vmem:[#allocation8 + $0x18] sm:$0xff]
    %v188 = vld [vmem:[#allocation10] sm:$0xff]
    %v189 = vld [vmem:[#allocation10 + $0x8] sm:$0xff]
    %v190 = vld [vmem:[#allocation10 + $0x10] sm:$0xff]
    %v191 = vld [vmem:[#allocation10 + $0x18] sm:$0xff]
    %v192 = vld [vmem:[#allocation2] sm:$0x3]
    %v194 = vsel %vm96, 0.0, 0
    %196 = vmatprep.subr.mxu0 0.0
    %197 = vmatpush1.msra.mxu0 0.0
    %198 = vmatprep.subr.mxu0 0.0
    %199 = vmatpush1.msra.mxu0 0.0
    %200 = vmatprep.subr.mxu0 0.0
    %201 = vmatpush1.msra.mxu0 0.0
    %202 = vmatprep.subr.mxu0 0.0
    %203 = vmatpush1.msra.mxu0 0.0
    %204 = vmatprep.subr.mxu0 0.0
    %205 = vmatpush1.msra.mxu0 0.0
    %206 = vmatprep.subr.mxu0 0.0
    %207 = vmatpush1.msra.mxu0 0.0
    %208 = vmatprep.subr.mxu0 0.0
    %209 = vmatpush1.msra.mxu0 0.0
    %210 = vmatprep.subr.mxu0 0.0
    %211 = vmatpush1.msra.mxu0 0.0
    %212 = vmatprep.subr.mxu0 0.0
    %213 = vmatpush1.msra.mxu0 0.0
    %214 = vmatprep.subr.mxu0 0.0
    %215 = vmatpush1.msra.mxu0 0.0
    %216 = vmatprep.subr.mxu0 0.0
    %217 = vmatpush1.msra.mxu0 0.0
    %218 = vmatprep.subr.mxu0 0.0
    %219 = vmatpush1.msra.mxu0 0.0
    %220 = vmatprep.subr.mxu0 0.0
    %221 = vmatpush1.msra.mxu0 %v187
    %222 = vmatprep.subr.mxu0 0.0
    %223 = vmatpush1.msra.mxu0 %v186
    %224 = vmatprep.subr.mxu0 0.0
    %225 = vmatpush1.msra.mxu0 %v185
    %226 = vmatprep.subr.mxu0 0.0
    %227 = vmatpush1.msra.mxu0 %v184
    %228 = vmatprep.subr.mxu0 0.0
    %229 = vmatpush2.msra.mxu0 0.0
    %230 = vmatprep.subr.mxu0 0.0
    %231 = vmatpush2.msra.mxu0 0.0
    %232 = vmatprep.subr.mxu0 0.0
    %233 = vmatpush2.msra.mxu0 0.0
    %234 = vmatprep.subr.mxu0 0.0
    %235 = vmatpush2.msra.mxu0 0.0
    %236 = vmatprep.subr.mxu0 0.0
    %237 = vmatpush2.msra.mxu0 0.0
    %238 = vmatprep.subr.mxu0 0.0
    %239 = vmatpush2.msra.mxu0 0.0
    %240 = vmatprep.subr.mxu0 0.0
    %241 = vmatpush2.msra.mxu0 0.0
    %242 = vmatprep.subr.mxu0 0.0
    %243 = vmatpush2.msra.mxu0 0.0
    %244 = vmatprep.subr.mxu0 0.0
    %245 = vmatpush2.msra.mxu0 0.0
    %246 = vmatprep.subr.mxu0 0.0
    %247 = vmatpush2.msra.mxu0 0.0
    %248 = vmatprep.subr.mxu0 0.0
    %249 = vmatpush2.msra.mxu0 0.0
    %250 = vmatprep.subr.mxu0 0.0
    %251 = vmatpush2.msra.mxu0 0.0
    %252 = vmatprep.subr.mxu0 0.0
    %253 = vmatpush2.msra.mxu0 0.0
    %254 = vmatprep.subr.mxu0 0.0
    %255 = vmatpush2.msra.mxu0 0.0
    %256 = vmatprep.subr.mxu0 0.0
    %257 = vmatpush2.msra.mxu0 0.0
    %258 = vmatprep.subr.mxu0 0.0
    %259 = vmatpush2.msra.mxu0 0.0
    %260 = vmatprep.mubr.f32.mxu0 0.0
    %261 = vmatmul.mubr.f32.gmra.mxu0 %v194
    %v262 = vpop.f32.mrf.mxu0
    %v263 = vadd.f32 0.0, %v262
    %v264 = vpop.f32.mrf.mxu0
    %265 = vdwg.mxu0
    %v266 = vadd.f32 %v192, %v263
    %v267 = vld [vmem:[%s1] sm:$0x3]
    %v268 = vmul.f32 %v266, 0.5
    %v269 = vtanh.pop %v268
    %v270 = vmul.f32 %v269, 0.5
    %v271 = vadd.f32 %v270, 0.5
    %v272 = vtanh.pop %v266
    %v273 = vmul.f32 %v271, 0.0
    %275 = vrot.lane.b32.xlu0 %v272, 32
    %v276 = vpop.permute.xlu0 %275
    %v278 = vmul.f32 %v271, %v276
    %280 = vrot.lane.b32.xlu0 %v278, 32
    %v281 = vpop.permute.xlu0 %280
    %v283 = vadd.f32 %v273, %v281
    %v284 = vtanh.pop %v283
    %286 = vrot.lane.b32.xlu0 %v284, 32
    %v287 = vpop.permute.xlu0 %286
    %v289 = vmul.f32 %v271, %v287
    %291 = vset.pattern.permute.xlu0 0
    %292 = vperm.xlu0 %291, %v267
    %v293 = vpop.permute.xlu0 %292
    %v295 = vmul.f32 %v293, %v289
    %v296 = vadd.f32 %v295, 0.0
    %v297 = vmul.f32 %v293, %v283
    %v298 = vadd.f32 %v297, 0.0
    %v299 = vld [vmem:[#allocation2 + $0x18] sm:$0xc0]
    %300 = vmatprep.subr.mxu0 0.0
    %301 = vmatpush1.msra.mxu0 0.0
    %302 = vmatprep.subr.mxu0 0.0
    %303 = vmatpush1.msra.mxu0 0.0
    %304 = vmatprep.subr.mxu0 0.0
    %305 = vmatpush1.msra.mxu0 0.0
    %306 = vmatprep.subr.mxu0 0.0
    %307 = vmatpush1.msra.mxu0 0.0
    %308 = vmatprep.subr.mxu0 0.0
    %309 = vmatpush1.msra.mxu0 0.0
    %310 = vmatprep.subr.mxu0 0.0
    %311 = vmatpush1.msra.mxu0 0.0
    %312 = vmatprep.subr.mxu0 0.0
    %313 = vmatpush1.msra.mxu0 0.0
    %314 = vmatprep.subr.mxu0 0.0
    %315 = vmatpush1.msra.mxu0 0.0
    %316 = vmatprep.subr.mxu0 0.0
    %317 = vmatpush1.msra.mxu0 0.0
    %318 = vmatprep.subr.mxu0 0.0
    %319 = vmatpush1.msra.mxu0 0.0
    %320 = vmatprep.subr.mxu0 0.0
    %321 = vmatpush1.msra.mxu0 0.0
    %322 = vmatprep.subr.mxu0 0.0
    %323 = vmatpush1.msra.mxu0 0.0
    %324 = vmatprep.subr.mxu0 0.0
    %325 = vmatpush1.msra.mxu0 %v191
    %326 = vmatprep.subr.mxu0 0.0
    %327 = vmatpush1.msra.mxu0 %v190
    %328 = vmatprep.subr.mxu0 0.0
    %329 = vmatpush1.msra.mxu0 %v189
    %330 = vmatprep.subr.mxu0 0.0
    %331 = vmatpush1.msra.mxu0 %v188
    %332 = vmatprep.subr.mxu0 0.0
    %333 = vmatpush2.msra.mxu0 0.0
    %334 = vmatprep.subr.mxu0 0.0
    %335 = vmatpush2.msra.mxu0 0.0
    %336 = vmatprep.subr.mxu0 0.0
    %337 = vmatpush2.msra.mxu0 0.0
    %338 = vmatprep.subr.mxu0 0.0
    %339 = vmatpush2.msra.mxu0 0.0
    %340 = vmatprep.subr.mxu0 0.0
    %341 = vmatpush2.msra.mxu0 0.0
    %342 = vmatprep.subr.mxu0 0.0
    %343 = vmatpush2.msra.mxu0 0.0
    %344 = vmatprep.subr.mxu0 0.0
    %345 = vmatpush2.msra.mxu0 0.0
    %346 = vmatprep.subr.mxu0 0.0
    %347 = vmatpush2.msra.mxu0 0.0
    %348 = vmatprep.subr.mxu0 0.0
    %349 = vmatpush2.msra.mxu0 0.0
    %350 = vmatprep.subr.mxu0 0.0
    %351 = vmatpush2.msra.mxu0 0.0
    %352 = vmatprep.subr.mxu0 0.0
    %353 = vmatpush2.msra.mxu0 0.0
    %354 = vmatprep.subr.mxu0 0.0
    %355 = vmatpush2.msra.mxu0 0.0
    %356 = vmatprep.subr.mxu0 0.0
    %357 = vmatpush2.msra.mxu0 0.0
    %358 = vmatprep.subr.mxu0 0.0
    %359 = vmatpush2.msra.mxu0 0.0
    %360 = vmatprep.subr.mxu0 0.0
    %361 = vmatpush2.msra.mxu0 0.0
    %362 = vmatprep.subr.mxu0 0.0
    %363 = vmatpush2.msra.mxu0 0.0
    %364 = vmatprep.mubr.f32.mxu0 0.0
    %365 = vmatmul.mubr.f32.gmra.mxu0 %v194
    %v366 = vpop.f32.mrf.mxu0
    %v367 = vadd.f32 0.0, %v366
    %v368 = vpop.f32.mrf.mxu0
    %369 = vdwg.mxu0
    %v371 = vrot.slane %v367, 2
    %v373 = vadd.f32 %v299, %v371
    %v374 = vld [vmem:[%s1 + $0xe] sm:$0x3]
    %v375 = vmul.f32 %v373, 0.5
    %v376 = vtanh.pop %v375
    %v377 = vmul.f32 %v376, 0.5
    %v378 = vadd.f32 %v377, 0.5
    %v379 = vtanh.pop %v373
    %v380 = vmul.f32 %v378, 0.0
    %382 = vrot.lane.b32.xlu0 %v379, 32
    %v383 = vpop.permute.xlu0 %382
    %v385 = vmul.f32 %v378, %v383
    %387 = vrot.lane.b32.xlu0 %v385, 32
    %v388 = vpop.permute.xlu0 %387
    %v390 = vadd.f32 %v380, %v388
    %v391 = vtanh.pop %v390
    %393 = vrot.lane.b32.xlu0 %v391, 32
    %v394 = vpop.permute.xlu0 %393
    %v396 = vmul.f32 %v378, %v394
    %398 = vset.pattern.permute.xlu0 0
    %399 = vperm.xlu0 %398, %v374
    %v400 = vpop.permute.xlu0 %399
    %v403 = vrot.slane %v396, 6
    %404 = vrot.lane.b32.xlu0 %v403, 64
    %v405 = vpop.permute.xlu0 %404
    %v407 = vmul.f32 %v400, %v405
    %v408 = vadd.f32 %v407, 0.0
    %v410 = vrot.slane %v390, 6
    %411 = vrot.lane.b32.xlu0 %v410, 96
    %v412 = vpop.permute.xlu0 %411
    %v414 = vmul.f32 %v400, %v412
    %v415 = vadd.f32 %v414, 0.0
    %417 = vrot.lane.b32.xlu0 %v296, 64
    %v418 = vpop.permute.xlu0 %417
    %vm420 = vcmask 254976
    %421 = vst.msk [vmem:[#allocation3] sm:$0x3] %vm420, %v418
    %422 = vst.msk [vmem:[#allocation4 + $0xe] sm:$0x3] %vm420, %v408
    %v423 = vld [vmem:[#allocation2] sm:$0xc]
    %v424 = vsel %vm96, %v418, 0
    %426 = vmatprep.subr.mxu0 0.0
    %427 = vmatpush1.msra.mxu0 0.0
    %428 = vmatprep.subr.mxu0 0.0
    %429 = vmatpush1.msra.mxu0 0.0
    %430 = vmatprep.subr.mxu0 0.0
    %431 = vmatpush1.msra.mxu0 0.0
    %432 = vmatprep.subr.mxu0 0.0
    %433 = vmatpush1.msra.mxu0 0.0
    %434 = vmatprep.subr.mxu0 0.0
    %435 = vmatpush1.msra.mxu0 0.0
    %436 = vmatprep.subr.mxu0 0.0
    %437 = vmatpush1.msra.mxu0 0.0
    %438 = vmatprep.subr.mxu0 0.0
    %439 = vmatpush1.msra.mxu0 0.0
    %440 = vmatprep.subr.mxu0 0.0
    %441 = vmatpush1.msra.mxu0 0.0
    %442 = vmatprep.subr.mxu0 0.0
    %443 = vmatpush1.msra.mxu0 0.0
    %444 = vmatprep.subr.mxu0 0.0
    %445 = vmatpush1.msra.mxu0 0.0
    %446 = vmatprep.subr.mxu0 0.0
    %447 = vmatpush1.msra.mxu0 0.0
    %448 = vmatprep.subr.mxu0 0.0
    %449 = vmatpush1.msra.mxu0 0.0
    %450 = vmatprep.subr.mxu0 0.0
    %451 = vmatpush1.msra.mxu0 %v187
    %452 = vmatprep.subr.mxu0 0.0
    %453 = vmatpush1.msra.mxu0 %v186
    %454 = vmatprep.subr.mxu0 0.0
    %455 = vmatpush1.msra.mxu0 %v185
    %456 = vmatprep.subr.mxu0 0.0
    %457 = vmatpush1.msra.mxu0 %v184
    %458 = vmatprep.subr.mxu0 0.0
    %459 = vmatpush2.msra.mxu0 0.0
    %460 = vmatprep.subr.mxu0 0.0
    %461 = vmatpush2.msra.mxu0 0.0
    %462 = vmatprep.subr.mxu0 0.0
    %463 = vmatpush2.msra.mxu0 0.0
    %464 = vmatprep.subr.mxu0 0.0
    %465 = vmatpush2.msra.mxu0 0.0
    %466 = vmatprep.subr.mxu0 0.0
    %467 = vmatpush2.msra.mxu0 0.0
    %468 = vmatprep.subr.mxu0 0.0
    %469 = vmatpush2.msra.mxu0 0.0
    %470 = vmatprep.subr.mxu0 0.0
    %471 = vmatpush2.msra.mxu0 0.0
    %472 = vmatprep.subr.mxu0 0.0
    %473 = vmatpush2.msra.mxu0 0.0
    %474 = vmatprep.subr.mxu0 0.0
    %475 = vmatpush2.msra.mxu0 0.0
    %476 = vmatprep.subr.mxu0 0.0
    %477 = vmatpush2.msra.mxu0 0.0
    %478 = vmatprep.subr.mxu0 0.0
    %479 = vmatpush2.msra.mxu0 0.0
    %480 = vmatprep.subr.mxu0 0.0
    %481 = vmatpush2.msra.mxu0 0.0
    %482 = vmatprep.subr.mxu0 0.0
    %483 = vmatpush2.msra.mxu0 0.0
    %484 = vmatprep.subr.mxu0 0.0
    %485 = vmatpush2.msra.mxu0 0.0
    %486 = vmatprep.subr.mxu0 0.0
    %487 = vmatpush2.msra.mxu0 0.0
    %488 = vmatprep.subr.mxu0 0.0
    %489 = vmatpush2.msra.mxu0 0.0
    %490 = vmatprep.mubr.f32.mxu0 0.0
    %491 = vmatmul.mubr.f32.gmra.mxu0 %v424
    %v492 = vpop.f32.mrf.mxu0
    %v493 = vadd.f32 0.0, %v492
    %v494 = vpop.f32.mrf.mxu0
    %495 = vdwg.mxu0
    %v497 = vrot.slane %v493, 6
    %v499 = vadd.f32 %v423, %v497
    %v500 = vld [vmem:[%s1 + $0x2] sm:$0x3]
    %v501 = vmul.f32 %v499, 0.5
    %v502 = vtanh.pop %v501
    %v503 = vmul.f32 %v502, 0.5
    %v504 = vadd.f32 %v503, 0.5
    %v505 = vtanh.pop %v499
    %v507 = vrot.slane %v298, 6
    %v509 = vmul.f32 %v504, %v507
    %511 = vrot.lane.b32.xlu0 %v505, 32
    %v512 = vpop.permute.xlu0 %511
    %v514 = vmul.f32 %v504, %v512
    %516 = vrot.lane.b32.xlu0 %v514, 32
    %v517 = vpop.permute.xlu0 %516
    %v519 = vadd.f32 %v509, %v517
    %v520 = vtanh.pop %v519
    %522 = vrot.lane.b32.xlu0 %v520, 32
    %v523 = vpop.permute.xlu0 %522
    %v525 = vmul.f32 %v504, %v523
    %v526 = vrot.slane %v296, 6
    %v528 = vsub.f32 %v525, %v526
    %530 = vset.pattern.permute.xlu0 0
    %531 = vperm.xlu0 %530, %v500
    %v532 = vpop.permute.xlu0 %531
    %v535 = vrot.slane %v528, 2
    %536 = vrot.lane.b32.xlu0 %v535, 64
    %v537 = vpop.permute.xlu0 %536
    %v539 = vmul.f32 %v532, %v537
    %541 = vrot.lane.b32.xlu0 %v539, 64
    %v542 = vpop.permute.xlu0 %541
    %v544 = vadd.f32 %v296, %v542
    %v545 = vsub.f32 %v519, %v507
    %v547 = vrot.slane %v545, 2
    %548 = vrot.lane.b32.xlu0 %v547, 96
    %v549 = vpop.permute.xlu0 %548
    %v551 = vmul.f32 %v532, %v549
    %553 = vrot.lane.b32.xlu0 %v551, 32
    %v554 = vpop.permute.xlu0 %553
    %v556 = vadd.f32 %v298, %v554
    %v557 = vld [vmem:[#allocation2 + $0x18] sm:$0x30]
    %v559 = vsel %vm96, %v408, 0
    %561 = vmatprep.subr.mxu0 0.0
    %562 = vmatpush1.msra.mxu0 0.0
    %563 = vmatprep.subr.mxu0 0.0
    %564 = vmatpush1.msra.mxu0 0.0
    %565 = vmatprep.subr.mxu0 0.0
    %566 = vmatpush1.msra.mxu0 0.0
    %567 = vmatprep.subr.mxu0 0.0
    %568 = vmatpush1.msra.mxu0 0.0
    %569 = vmatprep.subr.mxu0 0.0
    %570 = vmatpush1.msra.mxu0 0.0
    %571 = vmatprep.subr.mxu0 0.0
    %572 = vmatpush1.msra.mxu0 0.0
    %573 = vmatprep.subr.mxu0 0.0
    %574 = vmatpush1.msra.mxu0 0.0
    %575 = vmatprep.subr.mxu0 0.0
    %576 = vmatpush1.msra.mxu0 0.0
    %577 = vmatprep.subr.mxu0 0.0
    %578 = vmatpush1.msra.mxu0 0.0
    %579 = vmatprep.subr.mxu0 0.0
    %580 = vmatpush1.msra.mxu0 0.0
    %581 = vmatprep.subr.mxu0 0.0
    %582 = vmatpush1.msra.mxu0 0.0
    %583 = vmatprep.subr.mxu0 0.0
    %584 = vmatpush1.msra.mxu0 0.0
    %585 = vmatprep.subr.mxu0 0.0
    %586 = vmatpush1.msra.mxu0 %v191
    %587 = vmatprep.subr.mxu0 0.0
    %588 = vmatpush1.msra.mxu0 %v190
    %589 = vmatprep.subr.mxu0 0.0
    %590 = vmatpush1.msra.mxu0 %v189
    %591 = vmatprep.subr.mxu0 0.0
    %592 = vmatpush1.msra.mxu0 %v188
    %593 = vmatprep.subr.mxu0 0.0
    %594 = vmatpush2.msra.mxu0 0.0
    %595 = vmatprep.subr.mxu0 0.0
    %596 = vmatpush2.msra.mxu0 0.0
    %597 = vmatprep.subr.mxu0 0.0
    %598 = vmatpush2.msra.mxu0 0.0
    %599 = vmatprep.subr.mxu0 0.0
    %600 = vmatpush2.msra.mxu0 0.0
    %601 = vmatprep.subr.mxu0 0.0
    %602 = vmatpush2.msra.mxu0 0.0
    %603 = vmatprep.subr.mxu0 0.0
    %604 = vmatpush2.msra.mxu0 0.0
    %605 = vmatprep.subr.mxu0 0.0
    %606 = vmatpush2.msra.mxu0 0.0
    %607 = vmatprep.subr.mxu0 0.0
    %608 = vmatpush2.msra.mxu0 0.0
    %609 = vmatprep.subr.mxu0 0.0
    %610 = vmatpush2.msra.mxu0 0.0
    %611 = vmatprep.subr.mxu0 0.0
    %612 = vmatpush2.msra.mxu0 0.0
    %613 = vmatprep.subr.mxu0 0.0
    %614 = vmatpush2.msra.mxu0 0.0
    %615 = vmatprep.subr.mxu0 0.0
    %616 = vmatpush2.msra.mxu0 0.0
    %617 = vmatprep.subr.mxu0 0.0
    %618 = vmatpush2.msra.mxu0 0.0
    %619 = vmatprep.subr.mxu0 0.0
    %620 = vmatpush2.msra.mxu0 0.0
    %621 = vmatprep.subr.mxu0 0.0
    %622 = vmatpush2.msra.mxu0 0.0
    %623 = vmatprep.subr.mxu0 0.0
    %624 = vmatpush2.msra.mxu0 0.0
    %625 = vmatprep.mubr.f32.mxu0 0.0
    %626 = vmatmul.mubr.f32.gmra.mxu0 %v559
    %v627 = vpop.f32.mrf.mxu0
    %v628 = vadd.f32 0.0, %v627
    %v629 = vpop.f32.mrf.mxu0
    %630 = vdwg.mxu0
    %v632 = vrot.slane %v628, 4
    %v634 = vadd.f32 %v557, %v632
    %v635 = vld [vmem:[%s1 + $0xc] sm:$0x3]
    %v636 = vmul.f32 %v634, 0.5
    %v637 = vtanh.pop %v636
    %v638 = vmul.f32 %v637, 0.5
    %v639 = vadd.f32 %v638, 0.5
    %v640 = vtanh.pop %v634
    %v642 = vrot.slane %v415, 4
    %643 = vrot.lane.b32.xlu0 %v642, 32
    %v644 = vpop.permute.xlu0 %643
    %v646 = vmul.f32 %v639, %v644
    %648 = vrot.lane.b32.xlu0 %v640, 32
    %v649 = vpop.permute.xlu0 %648
    %v651 = vmul.f32 %v639, %v649
    %653 = vrot.lane.b32.xlu0 %v651, 32
    %v654 = vpop.permute.xlu0 %653
    %v656 = vadd.f32 %v646, %v654
    %v657 = vtanh.pop %v656
    %659 = vrot.lane.b32.xlu0 %v657, 32
    %v660 = vpop.permute.xlu0 %659
    %v662 = vmul.f32 %v639, %v660
    %v663 = vrot.slane %v408, 4
    %664 = vrot.lane.b32.xlu0 %v663, 64
    %v665 = vpop.permute.xlu0 %664
    %v667 = vsub.f32 %v662, %v665
    %669 = vset.pattern.permute.xlu0 0
    %670 = vperm.xlu0 %669, %v635
    %v671 = vpop.permute.xlu0 %670
    %v674 = vrot.slane %v667, 4
    %675 = vrot.lane.b32.xlu0 %v674, 64
    %v676 = vpop.permute.xlu0 %675
    %v678 = vmul.f32 %v671, %v676
    %v679 = vadd.f32 %v408, %v678
    %v680 = vsub.f32 %v656, %v644
    %v682 = vrot.slane %v680, 4
    %683 = vrot.lane.b32.xlu0 %v682, 96
    %v684 = vpop.permute.xlu0 %683
    %v686 = vmul.f32 %v671, %v684
    %v687 = vadd.f32 %v415, %v686
    %689 = vrot.lane.b32.xlu0 %v544, 64
    %v690 = vpop.permute.xlu0 %689
    %692 = vst.msk [vmem:[#allocation3 + $0x2] sm:$0x3] %vm420, %v690
    %693 = vst.msk [vmem:[#allocation4 + $0xc] sm:$0x3] %vm420, %v679
    %v694 = vld [vmem:[#allocation2] sm:$0x30]
    %v695 = vsel %vm96, %v690, 0
    %697 = vmatprep.subr.mxu0 0.0
    %698 = vmatpush1.msra.mxu0 0.0
    %699 = vmatprep.subr.mxu0 0.0
    %700 = vmatpush1.msra.mxu0 0.0
    %701 = vmatprep.subr.mxu0 0.0
    %702 = vmatpush1.msra.mxu0 0.0
    %703 = vmatprep.subr.mxu0 0.0
    %704 = vmatpush1.msra.mxu0 0.0
    %705 = vmatprep.subr.mxu0 0.0
    %706 = vmatpush1.msra.mxu0 0.0
    %707 = vmatprep.subr.mxu0 0.0
    %708 = vmatpush1.msra.mxu0 0.0
    %709 = vmatprep.subr.mxu0 0.0
    %710 = vmatpush1.msra.mxu0 0.0
    %711 = vmatprep.subr.mxu0 0.0
    %712 = vmatpush1.msra.mxu0 0.0
    %713 = vmatprep.subr.mxu0 0.0
    %714 = vmatpush1.msra.mxu0 0.0
    %715 = vmatprep.subr.mxu0 0.0
    %716 = vmatpush1.msra.mxu0 0.0
    %717 = vmatprep.subr.mxu0 0.0
    %718 = vmatpush1.msra.mxu0 0.0
    %719 = vmatprep.subr.mxu0 0.0
    %720 = vmatpush1.msra.mxu0 0.0
    %721 = vmatprep.subr.mxu0 0.0
    %722 = vmatpush1.msra.mxu0 %v187
    %723 = vmatprep.subr.mxu0 0.0
    %724 = vmatpush1.msra.mxu0 %v186
    %725 = vmatprep.subr.mxu0 0.0
    %726 = vmatpush1.msra.mxu0 %v185
    %727 = vmatprep.subr.mxu0 0.0
    %728 = vmatpush1.msra.mxu0 %v184
    %729 = vmatprep.subr.mxu0 0.0
    %730 = vmatpush2.msra.mxu0 0.0
    %731 = vmatprep.subr.mxu0 0.0
    %732 = vmatpush2.msra.mxu0 0.0
    %733 = vmatprep.subr.mxu0 0.0
    %734 = vmatpush2.msra.mxu0 0.0
    %735 = vmatprep.subr.mxu0 0.0
    %736 = vmatpush2.msra.mxu0 0.0
    %737 = vmatprep.subr.mxu0 0.0
    %738 = vmatpush2.msra.mxu0 0.0
    %739 = vmatprep.subr.mxu0 0.0
    %740 = vmatpush2.msra.mxu0 0.0
    %741 = vmatprep.subr.mxu0 0.0
    %742 = vmatpush2.msra.mxu0 0.0
    %743 = vmatprep.subr.mxu0 0.0
    %744 = vmatpush2.msra.mxu0 0.0
    %745 = vmatprep.subr.mxu0 0.0
    %746 = vmatpush2.msra.mxu0 0.0
    %747 = vmatprep.subr.mxu0 0.0
    %748 = vmatpush2.msra.mxu0 0.0
    %749 = vmatprep.subr.mxu0 0.0
    %750 = vmatpush2.msra.mxu0 0.0
    %751 = vmatprep.subr.mxu0 0.0
    %752 = vmatpush2.msra.mxu0 0.0
    %753 = vmatprep.subr.mxu0 0.0
    %754 = vmatpush2.msra.mxu0 0.0
    %755 = vmatprep.subr.mxu0 0.0
    %756 = vmatpush2.msra.mxu0 0.0
    %757 = vmatprep.subr.mxu0 0.0
    %758 = vmatpush2.msra.mxu0 0.0
    %759 = vmatprep.subr.mxu0 0.0
    %760 = vmatpush2.msra.mxu0 0.0
    %761 = vmatprep.mubr.f32.mxu0 0.0
    %762 = vmatmul.mubr.f32.gmra.mxu0 %v695
    %v763 = vpop.f32.mrf.mxu0
    %v764 = vadd.f32 0.0, %v763
    %v765 = vpop.f32.mrf.mxu0
    %766 = vdwg.mxu0
    %v768 = vrot.slane %v764, 4
    %v770 = vadd.f32 %v694, %v768
    %v771 = vld [vmem:[%s1 + $0x4] sm:$0x3]
    %v772 = vmul.f32 %v770, 0.5
    %v773 = vtanh.pop %v772
    %v774 = vmul.f32 %v773, 0.5
    %v775 = vadd.f32 %v774, 0.5
    %v776 = vtanh.pop %v770
    %v778 = vrot.slane %v556, 4
    %v780 = vmul.f32 %v775, %v778
    %782 = vrot.lane.b32.xlu0 %v776, 32
    %v783 = vpop.permute.xlu0 %782
    %v785 = vmul.f32 %v775, %v783
    %787 = vrot.lane.b32.xlu0 %v785, 32
    %v788 = vpop.permute.xlu0 %787
    %v790 = vadd.f32 %v780, %v788
    %v791 = vtanh.pop %v790
    %793 = vrot.lane.b32.xlu0 %v791, 32
    %v794 = vpop.permute.xlu0 %793
    %v796 = vmul.f32 %v775, %v794
    %v797 = vrot.slane %v544, 4
    %v799 = vsub.f32 %v796, %v797
    %801 = vset.pattern.permute.xlu0 0
    %802 = vperm.xlu0 %801, %v771
    %v803 = vpop.permute.xlu0 %802
    %v806 = vrot.slane %v799, 4
    %807 = vrot.lane.b32.xlu0 %v806, 64
    %v808 = vpop.permute.xlu0 %807
    %v810 = vmul.f32 %v803, %v808
    %812 = vrot.lane.b32.xlu0 %v810, 64
    %v813 = vpop.permute.xlu0 %812
    %v815 = vadd.f32 %v544, %v813
    %v816 = vsub.f32 %v790, %v778
    %v818 = vrot.slane %v816, 4
    %819 = vrot.lane.b32.xlu0 %v818, 96
    %v820 = vpop.permute.xlu0 %819
    %v822 = vmul.f32 %v803, %v820
    %824 = vrot.lane.b32.xlu0 %v822, 32
    %v825 = vpop.permute.xlu0 %824
    %v827 = vadd.f32 %v556, %v825
    %v828 = vld [vmem:[#allocation2 + $0x18] sm:$0xc]
    %v830 = vsel %vm96, %v679, 0
    %832 = vmatprep.subr.mxu0 0.0
    %833 = vmatpush1.msra.mxu0 0.0
    %834 = vmatprep.subr.mxu0 0.0
    %835 = vmatpush1.msra.mxu0 0.0
    %836 = vmatprep.subr.mxu0 0.0
    %837 = vmatpush1.msra.mxu0 0.0
    %838 = vmatprep.subr.mxu0 0.0
    %839 = vmatpush1.msra.mxu0 0.0
    %840 = vmatprep.subr.mxu0 0.0
    %841 = vmatpush1.msra.mxu0 0.0
    %842 = vmatprep.subr.mxu0 0.0
    %843 = vmatpush1.msra.mxu0 0.0
    %844 = vmatprep.subr.mxu0 0.0
    %845 = vmatpush1.msra.mxu0 0.0
    %846 = vmatprep.subr.mxu0 0.0
    %847 = vmatpush1.msra.mxu0 0.0
    %848 = vmatprep.subr.mxu0 0.0
    %849 = vmatpush1.msra.mxu0 0.0
    %850 = vmatprep.subr.mxu0 0.0
    %851 = vmatpush1.msra.mxu0 0.0
    %852 = vmatprep.subr.mxu0 0.0
    %853 = vmatpush1.msra.mxu0 0.0
    %854 = vmatprep.subr.mxu0 0.0
    %855 = vmatpush1.msra.mxu0 0.0
    %856 = vmatprep.subr.mxu0 0.0
    %857 = vmatpush1.msra.mxu0 %v191
    %858 = vmatprep.subr.mxu0 0.0
    %859 = vmatpush1.msra.mxu0 %v190
    %860 = vmatprep.subr.mxu0 0.0
    %861 = vmatpush1.msra.mxu0 %v189
    %862 = vmatprep.subr.mxu0 0.0
    %863 = vmatpush1.msra.mxu0 %v188
    %864 = vmatprep.subr.mxu0 0.0
    %865 = vmatpush2.msra.mxu0 0.0
    %866 = vmatprep.subr.mxu0 0.0
    %867 = vmatpush2.msra.mxu0 0.0
    %868 = vmatprep.subr.mxu0 0.0
    %869 = vmatpush2.msra.mxu0 0.0
    %870 = vmatprep.subr.mxu0 0.0
    %871 = vmatpush2.msra.mxu0 0.0
    %872 = vmatprep.subr.mxu0 0.0
    %873 = vmatpush2.msra.mxu0 0.0
    %874 = vmatprep.subr.mxu0 0.0
    %875 = vmatpush2.msra.mxu0 0.0
    %876 = vmatprep.subr.mxu0 0.0
    %877 = vmatpush2.msra.mxu0 0.0
    %878 = vmatprep.subr.mxu0 0.0
    %879 = vmatpush2.msra.mxu0 0.0
    %880 = vmatprep.subr.mxu0 0.0
    %881 = vmatpush2.msra.mxu0 0.0
    %882 = vmatprep.subr.mxu0 0.0
    %883 = vmatpush2.msra.mxu0 0.0
    %884 = vmatprep.subr.mxu0 0.0
    %885 = vmatpush2.msra.mxu0 0.0
    %886 = vmatprep.subr.mxu0 0.0
    %887 = vmatpush2.msra.mxu0 0.0
    %888 = vmatprep.subr.mxu0 0.0
    %889 = vmatpush2.msra.mxu0 0.0
    %890 = vmatprep.subr.mxu0 0.0
    %891 = vmatpush2.msra.mxu0 0.0
    %892 = vmatprep.subr.mxu0 0.0
    %893 = vmatpush2.msra.mxu0 0.0
    %894 = vmatprep.subr.mxu0 0.0
    %895 = vmatpush2.msra.mxu0 0.0
    %896 = vmatprep.mubr.f32.mxu0 0.0
    %897 = vmatmul.mubr.f32.gmra.mxu0 %v830
    %v898 = vpop.f32.mrf.mxu0
    %v899 = vadd.f32 0.0, %v898
    %v900 = vpop.f32.mrf.mxu0
    %901 = vdwg.mxu0
    %v903 = vrot.slane %v899, 6
    %v905 = vadd.f32 %v828, %v903
    %v906 = vld [vmem:[%s1 + $0xa] sm:$0x3]
    %v907 = vmul.f32 %v905, 0.5
    %v908 = vtanh.pop %v907
    %v909 = vmul.f32 %v908, 0.5
    %v910 = vadd.f32 %v909, 0.5
    %v911 = vtanh.pop %v905
    %v913 = vrot.slane %v687, 6
    %914 = vrot.lane.b32.xlu0 %v913, 32
    %v915 = vpop.permute.xlu0 %914
    %v917 = vmul.f32 %v910, %v915
    %919 = vrot.lane.b32.xlu0 %v911, 32
    %v920 = vpop.permute.xlu0 %919
    %v922 = vmul.f32 %v910, %v920
    %924 = vrot.lane.b32.xlu0 %v922, 32
    %v925 = vpop.permute.xlu0 %924
    %v927 = vadd.f32 %v917, %v925
    %v928 = vtanh.pop %v927
    %930 = vrot.lane.b32.xlu0 %v928, 32
    %v931 = vpop.permute.xlu0 %930
    %v933 = vmul.f32 %v910, %v931
    %v934 = vrot.slane %v679, 6
    %935 = vrot.lane.b32.xlu0 %v934, 64
    %v936 = vpop.permute.xlu0 %935
    %v938 = vsub.f32 %v933, %v936
    %940 = vset.pattern.permute.xlu0 0
    %941 = vperm.xlu0 %940, %v906
    %v942 = vpop.permute.xlu0 %941
    %v945 = vrot.slane %v938, 2
    %946 = vrot.lane.b32.xlu0 %v945, 64
    %v947 = vpop.permute.xlu0 %946
    %v949 = vmul.f32 %v942, %v947
    %v950 = vadd.f32 %v679, %v949
    %v951 = vsub.f32 %v927, %v915
    %v953 = vrot.slane %v951, 2
    %954 = vrot.lane.b32.xlu0 %v953, 96
    %v955 = vpop.permute.xlu0 %954
    %v957 = vmul.f32 %v942, %v955
    %v958 = vadd.f32 %v687, %v957
    %960 = vrot.lane.b32.xlu0 %v815, 64
    %v961 = vpop.permute.xlu0 %960
    %963 = vst.msk [vmem:[#allocation3 + $0x4] sm:$0x3] %vm420, %v961
    %964 = vst.msk [vmem:[#allocation4 + $0xa] sm:$0x3] %vm420, %v950
    %v965 = vld [vmem:[#allocation2] sm:$0xc0]
    %v966 = vsel %vm96, %v961, 0
    %968 = vmatprep.subr.mxu0 0.0
    %969 = vmatpush1.msra.mxu0 0.0
    %970 = vmatprep.subr.mxu0 0.0
    %971 = vmatpush1.msra.mxu0 0.0
    %972 = vmatprep.subr.mxu0 0.0
    %973 = vmatpush1.msra.mxu0 0.0
    %974 = vmatprep.subr.mxu0 0.0
    %975 = vmatpush1.msra.mxu0 0.0
    %976 = vmatprep.subr.mxu0 0.0
    %977 = vmatpush1.msra.mxu0 0.0
    %978 = vmatprep.subr.mxu0 0.0
    %979 = vmatpush1.msra.mxu0 0.0
    %980 = vmatprep.subr.mxu0 0.0
    %981 = vmatpush1.msra.mxu0 0.0
    %982 = vmatprep.subr.mxu0 0.0
    %983 = vmatpush1.msra.mxu0 0.0
    %984 = vmatprep.subr.mxu0 0.0
    %985 = vmatpush1.msra.mxu0 0.0
    %986 = vmatprep.subr.mxu0 0.0
    %987 = vmatpush1.msra.mxu0 0.0
    %988 = vmatprep.subr.mxu0 0.0
    %989 = vmatpush1.msra.mxu0 0.0
    %990 = vmatprep.subr.mxu0 0.0
    %991 = vmatpush1.msra.mxu0 0.0
    %992 = vmatprep.subr.mxu0 0.0
    %993 = vmatpush1.msra.mxu0 %v187
    %994 = vmatprep.subr.mxu0 0.0
    %995 = vmatpush1.msra.mxu0 %v186
    %996 = vmatprep.subr.mxu0 0.0
    %997 = vmatpush1.msra.mxu0 %v185
    %998 = vmatprep.subr.mxu0 0.0
    %999 = vmatpush1.msra.mxu0 %v184
    %1000 = vmatprep.subr.mxu0 0.0
    %1001 = vmatpush2.msra.mxu0 0.0
    %1002 = vmatprep.subr.mxu0 0.0
    %1003 = vmatpush2.msra.mxu0 0.0
    %1004 = vmatprep.subr.mxu0 0.0
    %1005 = vmatpush2.msra.mxu0 0.0
    %1006 = vmatprep.subr.mxu0 0.0
    %1007 = vmatpush2.msra.mxu0 0.0
    %1008 = vmatprep.subr.mxu0 0.0
    %1009 = vmatpush2.msra.mxu0 0.0
    %1010 = vmatprep.subr.mxu0 0.0
    %1011 = vmatpush2.msra.mxu0 0.0
    %1012 = vmatprep.subr.mxu0 0.0
    %1013 = vmatpush2.msra.mxu0 0.0
    %1014 = vmatprep.subr.mxu0 0.0
    %1015 = vmatpush2.msra.mxu0 0.0
    %1016 = vmatprep.subr.mxu0 0.0
    %1017 = vmatpush2.msra.mxu0 0.0
    %1018 = vmatprep.subr.mxu0 0.0
    %1019 = vmatpush2.msra.mxu0 0.0
    %1020 = vmatprep.subr.mxu0 0.0
    %1021 = vmatpush2.msra.mxu0 0.0
    %1022 = vmatprep.subr.mxu0 0.0
    %1023 = vmatpush2.msra.mxu0 0.0
    %1024 = vmatprep.subr.mxu0 0.0
    %1025 = vmatpush2.msra.mxu0 0.0
    %1026 = vmatprep.subr.mxu0 0.0
    %1027 = vmatpush2.msra.mxu0 0.0
    %1028 = vmatprep.subr.mxu0 0.0
    %1029 = vmatpush2.msra.mxu0 0.0
    %1030 = vmatprep.subr.mxu0 0.0
    %1031 = vmatpush2.msra.mxu0 0.0
    %1032 = vmatprep.mubr.f32.mxu0 0.0
    %1033 = vmatmul.mubr.f32.gmra.mxu0 %v966
    %v1034 = vpop.f32.mrf.mxu0
    %v1035 = vadd.f32 0.0, %v1034
    %v1036 = vpop.f32.mrf.mxu0
    %1037 = vdwg.mxu0
    %v1039 = vrot.slane %v1035, 2
    %v1041 = vadd.f32 %v965, %v1039
    %v1042 = vld [vmem:[%s1 + $0x6] sm:$0x3]
    %v1043 = vmul.f32 %v1041, 0.5
    %v1044 = vtanh.pop %v1043
    %v1045 = vmul.f32 %v1044, 0.5
    %v1046 = vadd.f32 %v1045, 0.5
    %v1047 = vtanh.pop %v1041
    %v1049 = vrot.slane %v827, 2
    %v1051 = vmul.f32 %v1046, %v1049
    %1053 = vrot.lane.b32.xlu0 %v1047, 32
    %v1054 = vpop.permute.xlu0 %1053
    %v1056 = vmul.f32 %v1046, %v1054
    %1058 = vrot.lane.b32.xlu0 %v1056, 32
    %v1059 = vpop.permute.xlu0 %1058
    %v1061 = vadd.f32 %v1051, %v1059
    %v1062 = vtanh.pop %v1061
    %1064 = vrot.lane.b32.xlu0 %v1062, 32
    %v1065 = vpop.permute.xlu0 %1064
    %v1067 = vmul.f32 %v1046, %v1065
    %v1068 = vrot.slane %v815, 2
    %v1070 = vsub.f32 %v1067, %v1068
    %1072 = vset.pattern.permute.xlu0 0
    %1073 = vperm.xlu0 %1072, %v1042
    %v1074 = vpop.permute.xlu0 %1073
    %v1077 = vrot.slane %v1070, 6
    %1078 = vrot.lane.b32.xlu0 %v1077, 64
    %v1079 = vpop.permute.xlu0 %1078
    %v1081 = vmul.f32 %v1074, %v1079
    %1083 = vrot.lane.b32.xlu0 %v1081, 64
    %v1084 = vpop.permute.xlu0 %1083
    %v1086 = vadd.f32 %v815, %v1084
    %v1087 = vsub.f32 %v1061, %v1049
    %v1089 = vrot.slane %v1087, 6
    %1090 = vrot.lane.b32.xlu0 %v1089, 96
    %v1091 = vpop.permute.xlu0 %1090
    %v1093 = vmul.f32 %v1074, %v1091
    %1095 = vrot.lane.b32.xlu0 %v1093, 32
    %v1096 = vpop.permute.xlu0 %1095
    %v1098 = vadd.f32 %v827, %v1096
    %v1099 = vld [vmem:[#allocation2 + $0x18] sm:$0x3]
    %v1101 = vsel %vm96, %v950, 0
    %1103 = vmatprep.subr.mxu0 0.0
    %1104 = vmatpush1.msra.mxu0 0.0
    %1105 = vmatprep.subr.mxu0 0.0
    %1106 = vmatpush1.msra.mxu0 0.0
    %1107 = vmatprep.subr.mxu0 0.0
    %1108 = vmatpush1.msra.mxu0 0.0
    %1109 = vmatprep.subr.mxu0 0.0
    %1110 = vmatpush1.msra.mxu0 0.0
    %1111 = vmatprep.subr.mxu0 0.0
    %1112 = vmatpush1.msra.mxu0 0.0
    %1113 = vmatprep.subr.mxu0 0.0
    %1114 = vmatpush1.msra.mxu0 0.0
    %1115 = vmatprep.subr.mxu0 0.0
    %1116 = vmatpush1.msra.mxu0 0.0
    %1117 = vmatprep.subr.mxu0 0.0
    %1118 = vmatpush1.msra.mxu0 0.0
    %1119 = vmatprep.subr.mxu0 0.0
    %1120 = vmatpush1.msra.mxu0 0.0
    %1121 = vmatprep.subr.mxu0 0.0
    %1122 = vmatpush1.msra.mxu0 0.0
    %1123 = vmatprep.subr.mxu0 0.0
    %1124 = vmatpush1.msra.mxu0 0.0
    %1125 = vmatprep.subr.mxu0 0.0
    %1126 = vmatpush1.msra.mxu0 0.0
    %1127 = vmatprep.subr.mxu0 0.0
    %1128 = vmatpush1.msra.mxu0 %v191
    %1129 = vmatprep.subr.mxu0 0.0
    %1130 = vmatpush1.msra.mxu0 %v190
    %1131 = vmatprep.subr.mxu0 0.0
    %1132 = vmatpush1.msra.mxu0 %v189
    %1133 = vmatprep.subr.mxu0 0.0
    %1134 = vmatpush1.msra.mxu0 %v188
    %1135 = vmatprep.subr.mxu0 0.0
    %1136 = vmatpush2.msra.mxu0 0.0
    %1137 = vmatprep.subr.mxu0 0.0
    %1138 = vmatpush2.msra.mxu0 0.0
    %1139 = vmatprep.subr.mxu0 0.0
    %1140 = vmatpush2.msra.mxu0 0.0
    %1141 = vmatprep.subr.mxu0 0.0
    %1142 = vmatpush2.msra.mxu0 0.0
    %1143 = vmatprep.subr.mxu0 0.0
    %1144 = vmatpush2.msra.mxu0 0.0
    %1145 = vmatprep.subr.mxu0 0.0
    %1146 = vmatpush2.msra.mxu0 0.0
    %1147 = vmatprep.subr.mxu0 0.0
    %1148 = vmatpush2.msra.mxu0 0.0
    %1149 = vmatprep.subr.mxu0 0.0
    %1150 = vmatpush2.msra.mxu0 0.0
    %1151 = vmatprep.subr.mxu0 0.0
    %1152 = vmatpush2.msra.mxu0 0.0
    %1153 = vmatprep.subr.mxu0 0.0
    %1154 = vmatpush2.msra.mxu0 0.0
    %1155 = vmatprep.subr.mxu0 0.0
    %1156 = vmatpush2.msra.mxu0 0.0
    %1157 = vmatprep.subr.mxu0 0.0
    %1158 = vmatpush2.msra.mxu0 0.0
    %1159 = vmatprep.subr.mxu0 0.0
    %1160 = vmatpush2.msra.mxu0 0.0
    %1161 = vmatprep.subr.mxu0 0.0
    %1162 = vmatpush2.msra.mxu0 0.0
    %1163 = vmatprep.subr.mxu0 0.0
    %1164 = vmatpush2.msra.mxu0 0.0
    %1165 = vmatprep.subr.mxu0 0.0
    %1166 = vmatpush2.msra.mxu0 0.0
    %1167 = vmatprep.mubr.f32.mxu0 0.0
    %1168 = vmatmul.mubr.f32.gmra.mxu0 %v1101
    %v1169 = vpop.f32.mrf.mxu0
    %v1170 = vadd.f32 0.0, %v1169
    %v1171 = vpop.f32.mrf.mxu0
    %1172 = vdwg.mxu0
    %v1173 = vadd.f32 %v1099, %v1170
    %v1174 = vld [vmem:[%s1 + $0x8] sm:$0x3]
    %v1175 = vmul.f32 %v1173, 0.5
    %v1176 = vtanh.pop %v1175
    %v1177 = vmul.f32 %v1176, 0.5
    %v1178 = vadd.f32 %v1177, 0.5
    %v1179 = vtanh.pop %v1173
    %1181 = vrot.lane.b32.xlu0 %v958, 32
    %v1182 = vpop.permute.xlu0 %1181
    %v1184 = vmul.f32 %v1178, %v1182
    %1186 = vrot.lane.b32.xlu0 %v1179, 32
    %v1187 = vpop.permute.xlu0 %1186
    %v1189 = vmul.f32 %v1178, %v1187
    %1191 = vrot.lane.b32.xlu0 %v1189, 32
    %v1192 = vpop.permute.xlu0 %1191
    %v1194 = vadd.f32 %v1184, %v1192
    %v1195 = vtanh.pop %v1194
    %1197 = vrot.lane.b32.xlu0 %v1195, 32
    %v1198 = vpop.permute.xlu0 %1197
    %v1200 = vmul.f32 %v1178, %v1198
    %1201 = vrot.lane.b32.xlu0 %v950, 64
    %v1202 = vpop.permute.xlu0 %1201
    %v1204 = vsub.f32 %v1200, %v1202
    %1206 = vset.pattern.permute.xlu0 0
    %1207 = vperm.xlu0 %1206, %v1174
    %v1208 = vpop.permute.xlu0 %1207
    %v1210 = vmul.f32 %v1208, %v1204
    %1212 = vrot.lane.b32.xlu0 %v1210, 64
    %v1213 = vpop.permute.xlu0 %1212
    %v1215 = vadd.f32 %v950, %v1213
    %v1216 = vsub.f32 %v1194, %v1182
    %v1217 = vmul.f32 %v1208, %v1216
    %1219 = vrot.lane.b32.xlu0 %v1217, 96
    %v1220 = vpop.permute.xlu0 %1219
    %v1222 = vadd.f32 %v958, %v1220
    %1224 = vrot.lane.b32.xlu0 %v1086, 64
    %v1225 = vpop.permute.xlu0 %1224
    %1227 = vst.msk [vmem:[#allocation3 + $0x6] sm:$0x3] %vm420, %v1225
    %1228 = vst.msk [vmem:[#allocation4 + $0x8] sm:$0x3] %vm420, %v1215
    %v1229 = vld [vmem:[#allocation2 + $0x10] sm:$0x3]
    %v1230 = vsel %vm96, %v1225, 0
    %1232 = vmatprep.subr.mxu0 0.0
    %1233 = vmatpush1.msra.mxu0 0.0
    %1234 = vmatprep.subr.mxu0 0.0
    %1235 = vmatpush1.msra.mxu0 0.0
    %1236 = vmatprep.subr.mxu0 0.0
    %1237 = vmatpush1.msra.mxu0 0.0
    %1238 = vmatprep.subr.mxu0 0.0
    %1239 = vmatpush1.msra.mxu0 0.0
    %1240 = vmatprep.subr.mxu0 0.0
    %1241 = vmatpush1.msra.mxu0 0.0
    %1242 = vmatprep.subr.mxu0 0.0
    %1243 = vmatpush1.msra.mxu0 0.0
    %1244 = vmatprep.subr.mxu0 0.0
    %1245 = vmatpush1.msra.mxu0 0.0
    %1246 = vmatprep.subr.mxu0 0.0
    %1247 = vmatpush1.msra.mxu0 0.0
    %1248 = vmatprep.subr.mxu0 0.0
    %1249 = vmatpush1.msra.mxu0 0.0
    %1250 = vmatprep.subr.mxu0 0.0
    %1251 = vmatpush1.msra.mxu0 0.0
    %1252 = vmatprep.subr.mxu0 0.0
    %1253 = vmatpush1.msra.mxu0 0.0
    %1254 = vmatprep.subr.mxu0 0.0
    %1255 = vmatpush1.msra.mxu0 0.0
    %1256 = vmatprep.subr.mxu0 0.0
    %1257 = vmatpush1.msra.mxu0 %v187
    %1258 = vmatprep.subr.mxu0 0.0
    %1259 = vmatpush1.msra.mxu0 %v186
    %1260 = vmatprep.subr.mxu0 0.0
    %1261 = vmatpush1.msra.mxu0 %v185
    %1262 = vmatprep.subr.mxu0 0.0
    %1263 = vmatpush1.msra.mxu0 %v184
    %1264 = vmatprep.subr.mxu0 0.0
    %1265 = vmatpush2.msra.mxu0 0.0
    %1266 = vmatprep.subr.mxu0 0.0
    %1267 = vmatpush2.msra.mxu0 0.0
    %1268 = vmatprep.subr.mxu0 0.0
    %1269 = vmatpush2.msra.mxu0 0.0
    %1270 = vmatprep.subr.mxu0 0.0
    %1271 = vmatpush2.msra.mxu0 0.0
    %1272 = vmatprep.subr.mxu0 0.0
    %1273 = vmatpush2.msra.mxu0 0.0
    %1274 = vmatprep.subr.mxu0 0.0
    %1275 = vmatpush2.msra.mxu0 0.0
    %1276 = vmatprep.subr.mxu0 0.0
    %1277 = vmatpush2.msra.mxu0 0.0
    %1278 = vmatprep.subr.mxu0 0.0
    %1279 = vmatpush2.msra.mxu0 0.0
    %1280 = vmatprep.subr.mxu0 0.0
    %1281 = vmatpush2.msra.mxu0 0.0
    %1282 = vmatprep.subr.mxu0 0.0
    %1283 = vmatpush2.msra.mxu0 0.0
    %1284 = vmatprep.subr.mxu0 0.0
    %1285 = vmatpush2.msra.mxu0 0.0
    %1286 = vmatprep.subr.mxu0 0.0
    %1287 = vmatpush2.msra.mxu0 0.0
    %1288 = vmatprep.subr.mxu0 0.0
    %1289 = vmatpush2.msra.mxu0 0.0
    %1290 = vmatprep.subr.mxu0 0.0
    %1291 = vmatpush2.msra.mxu0 0.0
    %1292 = vmatprep.subr.mxu0 0.0
    %1293 = vmatpush2.msra.mxu0 0.0
    %1294 = vmatprep.subr.mxu0 0.0
    %1295 = vmatpush2.msra.mxu0 0.0
    %1296 = vmatprep.mubr.f32.mxu0 0.0
    %1297 = vmatmul.mubr.f32.gmra.mxu0 %v1230
    %v1298 = vpop.f32.mrf.mxu0
    %v1299 = vadd.f32 0.0, %v1298
    %v1300 = vpop.f32.mrf.mxu0
    %1301 = vdwg.mxu0
    %v1302 = vadd.f32 %v1229, %v1299
    %v1303 = vld [vmem:[%s1 + $0x8] sm:$0x3]
    %v1304 = vmul.f32 %v1302, 0.5
    %v1305 = vtanh.pop %v1304
    %v1306 = vmul.f32 %v1305, 0.5
    %v1307 = vadd.f32 %v1306, 0.5
    %v1308 = vtanh.pop %v1302
    %v1309 = vmul.f32 %v1307, %v1098
    %1311 = vrot.lane.b32.xlu0 %v1308, 32
    %v1312 = vpop.permute.xlu0 %1311
    %v1314 = vmul.f32 %v1307, %v1312
    %1316 = vrot.lane.b32.xlu0 %v1314, 32
    %v1317 = vpop.permute.xlu0 %1316
    %v1319 = vadd.f32 %v1309, %v1317
    %v1320 = vtanh.pop %v1319
    %1322 = vrot.lane.b32.xlu0 %v1320, 32
    %v1323 = vpop.permute.xlu0 %1322
    %v1325 = vmul.f32 %v1307, %v1323
    %v1326 = vsub.f32 %v1325, %v1086
    %1328 = vset.pattern.permute.xlu0 0
    %1329 = vperm.xlu0 %1328, %v1303
    %v1330 = vpop.permute.xlu0 %1329
    %v1332 = vmul.f32 %v1330, %v1326
    %v1333 = vadd.f32 %v1086, %v1332
    %v1334 = vsub.f32 %v1319, %v1098
    %v1335 = vmul.f32 %v1330, %v1334
    %v1336 = vadd.f32 %v1098, %v1335
    %v1337 = vld [vmem:[#allocation2 + $0x8] sm:$0xc0]
    %v1339 = vsel %vm96, %v1215, 0
    %1341 = vmatprep.subr.mxu0 0.0
    %1342 = vmatpush1.msra.mxu0 0.0
    %1343 = vmatprep.subr.mxu0 0.0
    %1344 = vmatpush1.msra.mxu0 0.0
    %1345 = vmatprep.subr.mxu0 0.0
    %1346 = vmatpush1.msra.mxu0 0.0
    %1347 = vmatprep.subr.mxu0 0.0
    %1348 = vmatpush1.msra.mxu0 0.0
    %1349 = vmatprep.subr.mxu0 0.0
    %1350 = vmatpush1.msra.mxu0 0.0
    %1351 = vmatprep.subr.mxu0 0.0
    %1352 = vmatpush1.msra.mxu0 0.0
    %1353 = vmatprep.subr.mxu0 0.0
    %1354 = vmatpush1.msra.mxu0 0.0
    %1355 = vmatprep.subr.mxu0 0.0
    %1356 = vmatpush1.msra.mxu0 0.0
    %1357 = vmatprep.subr.mxu0 0.0
    %1358 = vmatpush1.msra.mxu0 0.0
    %1359 = vmatprep.subr.mxu0 0.0
    %1360 = vmatpush1.msra.mxu0 0.0
    %1361 = vmatprep.subr.mxu0 0.0
    %1362 = vmatpush1.msra.mxu0 0.0
    %1363 = vmatprep.subr.mxu0 0.0
    %1364 = vmatpush1.msra.mxu0 0.0
    %1365 = vmatprep.subr.mxu0 0.0
    %1366 = vmatpush1.msra.mxu0 %v191
    %1367 = vmatprep.subr.mxu0 0.0
    %1368 = vmatpush1.msra.mxu0 %v190
    %1369 = vmatprep.subr.mxu0 0.0
    %1370 = vmatpush1.msra.mxu0 %v189
    %1371 = vmatprep.subr.mxu0 0.0
    %1372 = vmatpush1.msra.mxu0 %v188
    %1373 = vmatprep.subr.mxu0 0.0
    %1374 = vmatpush2.msra.mxu0 0.0
    %1375 = vmatprep.subr.mxu0 0.0
    %1376 = vmatpush2.msra.mxu0 0.0
    %1377 = vmatprep.subr.mxu0 0.0
    %1378 = vmatpush2.msra.mxu0 0.0
    %1379 = vmatprep.subr.mxu0 0.0
    %1380 = vmatpush2.msra.mxu0 0.0
    %1381 = vmatprep.subr.mxu0 0.0
    %1382 = vmatpush2.msra.mxu0 0.0
    %1383 = vmatprep.subr.mxu0 0.0
    %1384 = vmatpush2.msra.mxu0 0.0
    %1385 = vmatprep.subr.mxu0 0.0
    %1386 = vmatpush2.msra.mxu0 0.0
    %1387 = vmatprep.subr.mxu0 0.0
    %1388 = vmatpush2.msra.mxu0 0.0
    %1389 = vmatprep.subr.mxu0 0.0
    %1390 = vmatpush2.msra.mxu0 0.0
    %1391 = vmatprep.subr.mxu0 0.0
    %1392 = vmatpush2.msra.mxu0 0.0
    %1393 = vmatprep.subr.mxu0 0.0
    %1394 = vmatpush2.msra.mxu0 0.0
    %1395 = vmatprep.subr.mxu0 0.0
    %1396 = vmatpush2.msra.mxu0 0.0
    %1397 = vmatprep.subr.mxu0 0.0
    %1398 = vmatpush2.msra.mxu0 0.0
    %1399 = vmatprep.subr.mxu0 0.0
    %1400 = vmatpush2.msra.mxu0 0.0
    %1401 = vmatprep.subr.mxu0 0.0
    %1402 = vmatpush2.msra.mxu0 0.0
    %1403 = vmatprep.subr.mxu0 0.0
    %1404 = vmatpush2.msra.mxu0 0.0
    %1405 = vmatprep.mubr.f32.mxu0 0.0
    %1406 = vmatmul.mubr.f32.gmra.mxu0 %v1339
    %v1407 = vpop.f32.mrf.mxu0
    %v1408 = vadd.f32 0.0, %v1407
    %v1409 = vpop.f32.mrf.mxu0
    %1410 = vdwg.mxu0
    %v1412 = vrot.slane %v1408, 2
    %v1414 = vadd.f32 %v1337, %v1412
    %v1415 = vld [vmem:[%s1 + $0x6] sm:$0x3]
    %v1416 = vmul.f32 %v1414, 0.5
    %v1417 = vtanh.pop %v1416
    %v1418 = vmul.f32 %v1417, 0.5
    %v1419 = vadd.f32 %v1418, 0.5
    %v1420 = vtanh.pop %v1414
    %v1422 = vrot.slane %v1222, 2
    %1423 = vrot.lane.b32.xlu0 %v1422, 32
    %v1424 = vpop.permute.xlu0 %1423
    %v1426 = vmul.f32 %v1419, %v1424
    %1428 = vrot.lane.b32.xlu0 %v1420, 32
    %v1429 = vpop.permute.xlu0 %1428
    %v1431 = vmul.f32 %v1419, %v1429
    %1433 = vrot.lane.b32.xlu0 %v1431, 32
    %v1434 = vpop.permute.xlu0 %1433
    %v1436 = vadd.f32 %v1426, %v1434
    %v1437 = vtanh.pop %v1436
    %1439 = vrot.lane.b32.xlu0 %v1437, 32
    %v1440 = vpop.permute.xlu0 %1439
    %v1442 = vmul.f32 %v1419, %v1440
    %v1443 = vrot.slane %v1215, 2
    %1444 = vrot.lane.b32.xlu0 %v1443, 64
    %v1445 = vpop.permute.xlu0 %1444
    %v1447 = vsub.f32 %v1442, %v1445
    %1449 = vset.pattern.permute.xlu0 0
    %1450 = vperm.xlu0 %1449, %v1415
    %v1451 = vpop.permute.xlu0 %1450
    %v1454 = vrot.slane %v1447, 6
    %1455 = vrot.lane.b32.xlu0 %v1454, 64
    %v1456 = vpop.permute.xlu0 %1455
    %v1458 = vmul.f32 %v1451, %v1456
    %v1459 = vadd.f32 %v1215, %v1458
    %v1460 = vsub.f32 %v1436, %v1424
    %v1462 = vrot.slane %v1460, 6
    %1463 = vrot.lane.b32.xlu0 %v1462, 96
    %v1464 = vpop.permute.xlu0 %1463
    %v1466 = vmul.f32 %v1451, %v1464
    %v1467 = vadd.f32 %v1222, %v1466
    %1469 = vrot.lane.b32.xlu0 %v1333, 64
    %v1470 = vpop.permute.xlu0 %1469
    %1472 = vst.msk [vmem:[#allocation3 + $0x8] sm:$0x3] %vm420, %v1470
    %1473 = vst.msk [vmem:[#allocation4 + $0x6] sm:$0x3] %vm420, %v1459
    %v1474 = vld [vmem:[#allocation2 + $0x10] sm:$0xc]
    %v1475 = vsel %vm96, %v1470, 0
    %1477 = vmatprep.subr.mxu0 0.0
    %1478 = vmatpush1.msra.mxu0 0.0
    %1479 = vmatprep.subr.mxu0 0.0
    %1480 = vmatpush1.msra.mxu0 0.0
    %1481 = vmatprep.subr.mxu0 0.0
    %1482 = vmatpush1.msra.mxu0 0.0
    %1483 = vmatprep.subr.mxu0 0.0
    %1484 = vmatpush1.msra.mxu0 0.0
    %1485 = vmatprep.subr.mxu0 0.0
    %1486 = vmatpush1.msra.mxu0 0.0
    %1487 = vmatprep.subr.mxu0 0.0
    %1488 = vmatpush1.msra.mxu0 0.0
    %1489 = vmatprep.subr.mxu0 0.0
    %1490 = vmatpush1.msra.mxu0 0.0
    %1491 = vmatprep.subr.mxu0 0.0
    %1492 = vmatpush1.msra.mxu0 0.0
    %1493 = vmatprep.subr.mxu0 0.0
    %1494 = vmatpush1.msra.mxu0 0.0
    %1495 = vmatprep.subr.mxu0 0.0
    %1496 = vmatpush1.msra.mxu0 0.0
    %1497 = vmatprep.subr.mxu0 0.0
    %1498 = vmatpush1.msra.mxu0 0.0
    %1499 = vmatprep.subr.mxu0 0.0
    %1500 = vmatpush1.msra.mxu0 0.0
    %1501 = vmatprep.subr.mxu0 0.0
    %1502 = vmatpush1.msra.mxu0 %v187
    %1503 = vmatprep.subr.mxu0 0.0
    %1504 = vmatpush1.msra.mxu0 %v186
    %1505 = vmatprep.subr.mxu0 0.0
    %1506 = vmatpush1.msra.mxu0 %v185
    %1507 = vmatprep.subr.mxu0 0.0
    %1508 = vmatpush1.msra.mxu0 %v184
    %1509 = vmatprep.subr.mxu0 0.0
    %1510 = vmatpush2.msra.mxu0 0.0
    %1511 = vmatprep.subr.mxu0 0.0
    %1512 = vmatpush2.msra.mxu0 0.0
    %1513 = vmatprep.subr.mxu0 0.0
    %1514 = vmatpush2.msra.mxu0 0.0
    %1515 = vmatprep.subr.mxu0 0.0
    %1516 = vmatpush2.msra.mxu0 0.0
    %1517 = vmatprep.subr.mxu0 0.0
    %1518 = vmatpush2.msra.mxu0 0.0
    %1519 = vmatprep.subr.mxu0 0.0
    %1520 = vmatpush2.msra.mxu0 0.0
    %1521 = vmatprep.subr.mxu0 0.0
    %1522 = vmatpush2.msra.mxu0 0.0
    %1523 = vmatprep.subr.mxu0 0.0
    %1524 = vmatpush2.msra.mxu0 0.0
    %1525 = vmatprep.subr.mxu0 0.0
    %1526 = vmatpush2.msra.mxu0 0.0
    %1527 = vmatprep.subr.mxu0 0.0
    %1528 = vmatpush2.msra.mxu0 0.0
    %1529 = vmatprep.subr.mxu0 0.0
    %1530 = vmatpush2.msra.mxu0 0.0
    %1531 = vmatprep.subr.mxu0 0.0
    %1532 = vmatpush2.msra.mxu0 0.0
    %1533 = vmatprep.subr.mxu0 0.0
    %1534 = vmatpush2.msra.mxu0 0.0
    %1535 = vmatprep.subr.mxu0 0.0
    %1536 = vmatpush2.msra.mxu0 0.0
    %1537 = vmatprep.subr.mxu0 0.0
    %1538 = vmatpush2.msra.mxu0 0.0
    %1539 = vmatprep.subr.mxu0 0.0
    %1540 = vmatpush2.msra.mxu0 0.0
    %1541 = vmatprep.mubr.f32.mxu0 0.0
    %1542 = vmatmul.mubr.f32.gmra.mxu0 %v1475
    %v1543 = vpop.f32.mrf.mxu0
    %v1544 = vadd.f32 0.0, %v1543
    %v1545 = vpop.f32.mrf.mxu0
    %1546 = vdwg.mxu0
    %v1548 = vrot.slane %v1544, 6
    %v1550 = vadd.f32 %v1474, %v1548
    %v1551 = vld [vmem:[%s1 + $0xa] sm:$0x3]
    %v1552 = vmul.f32 %v1550, 0.5
    %v1553 = vtanh.pop %v1552
    %v1554 = vmul.f32 %v1553, 0.5
    %v1555 = vadd.f32 %v1554, 0.5
    %v1556 = vtanh.pop %v1550
    %v1558 = vrot.slane %v1336, 6
    %v1560 = vmul.f32 %v1555, %v1558
    %1562 = vrot.lane.b32.xlu0 %v1556, 32
    %v1563 = vpop.permute.xlu0 %1562
    %v1565 = vmul.f32 %v1555, %v1563
    %1567 = vrot.lane.b32.xlu0 %v1565, 32
    %v1568 = vpop.permute.xlu0 %1567
    %v1570 = vadd.f32 %v1560, %v1568
    %v1571 = vtanh.pop %v1570
    %1573 = vrot.lane.b32.xlu0 %v1571, 32
    %v1574 = vpop.permute.xlu0 %1573
    %v1576 = vmul.f32 %v1555, %v1574
    %v1577 = vrot.slane %v1333, 6
    %v1579 = vsub.f32 %v1576, %v1577
    %1581 = vset.pattern.permute.xlu0 0
    %1582 = vperm.xlu0 %1581, %v1551
    %v1583 = vpop.permute.xlu0 %1582
    %v1586 = vrot.slane %v1579, 2
    %1587 = vrot.lane.b32.xlu0 %v1586, 64
    %v1588 = vpop.permute.xlu0 %1587
    %v1590 = vmul.f32 %v1583, %v1588
    %1592 = vrot.lane.b32.xlu0 %v1590, 64
    %v1593 = vpop.permute.xlu0 %1592
    %v1595 = vadd.f32 %v1333, %v1593
    %v1596 = vsub.f32 %v1570, %v1558
    %v1598 = vrot.slane %v1596, 2
    %1599 = vrot.lane.b32.xlu0 %v1598, 96
    %v1600 = vpop.permute.xlu0 %1599
    %v1602 = vmul.f32 %v1583, %v1600
    %1604 = vrot.lane.b32.xlu0 %v1602, 32
    %v1605 = vpop.permute.xlu0 %1604
    %v1607 = vadd.f32 %v1336, %v1605
    %v1608 = vld [vmem:[#allocation2 + $0x8] sm:$0x30]
    %v1610 = vsel %vm96, %v1459, 0
    %1612 = vmatprep.subr.mxu0 0.0
    %1613 = vmatpush1.msra.mxu0 0.0
    %1614 = vmatprep.subr.mxu0 0.0
    %1615 = vmatpush1.msra.mxu0 0.0
    %1616 = vmatprep.subr.mxu0 0.0
    %1617 = vmatpush1.msra.mxu0 0.0
    %1618 = vmatprep.subr.mxu0 0.0
    %1619 = vmatpush1.msra.mxu0 0.0
    %1620 = vmatprep.subr.mxu0 0.0
    %1621 = vmatpush1.msra.mxu0 0.0
    %1622 = vmatprep.subr.mxu0 0.0
    %1623 = vmatpush1.msra.mxu0 0.0
    %1624 = vmatprep.subr.mxu0 0.0
    %1625 = vmatpush1.msra.mxu0 0.0
    %1626 = vmatprep.subr.mxu0 0.0
    %1627 = vmatpush1.msra.mxu0 0.0
    %1628 = vmatprep.subr.mxu0 0.0
    %1629 = vmatpush1.msra.mxu0 0.0
    %1630 = vmatprep.subr.mxu0 0.0
    %1631 = vmatpush1.msra.mxu0 0.0
    %1632 = vmatprep.subr.mxu0 0.0
    %1633 = vmatpush1.msra.mxu0 0.0
    %1634 = vmatprep.subr.mxu0 0.0
    %1635 = vmatpush1.msra.mxu0 0.0
    %1636 = vmatprep.subr.mxu0 0.0
    %1637 = vmatpush1.msra.mxu0 %v191
    %1638 = vmatprep.subr.mxu0 0.0
    %1639 = vmatpush1.msra.mxu0 %v190
    %1640 = vmatprep.subr.mxu0 0.0
    %1641 = vmatpush1.msra.mxu0 %v189
    %1642 = vmatprep.subr.mxu0 0.0
    %1643 = vmatpush1.msra.mxu0 %v188
    %1644 = vmatprep.subr.mxu0 0.0
    %1645 = vmatpush2.msra.mxu0 0.0
    %1646 = vmatprep.subr.mxu0 0.0
    %1647 = vmatpush2.msra.mxu0 0.0
    %1648 = vmatprep.subr.mxu0 0.0
    %1649 = vmatpush2.msra.mxu0 0.0
    %1650 = vmatprep.subr.mxu0 0.0
    %1651 = vmatpush2.msra.mxu0 0.0
    %1652 = vmatprep.subr.mxu0 0.0
    %1653 = vmatpush2.msra.mxu0 0.0
    %1654 = vmatprep.subr.mxu0 0.0
    %1655 = vmatpush2.msra.mxu0 0.0
    %1656 = vmatprep.subr.mxu0 0.0
    %1657 = vmatpush2.msra.mxu0 0.0
    %1658 = vmatprep.subr.mxu0 0.0
    %1659 = vmatpush2.msra.mxu0 0.0
    %1660 = vmatprep.subr.mxu0 0.0
    %1661 = vmatpush2.msra.mxu0 0.0
    %1662 = vmatprep.subr.mxu0 0.0
    %1663 = vmatpush2.msra.mxu0 0.0
    %1664 = vmatprep.subr.mxu0 0.0
    %1665 = vmatpush2.msra.mxu0 0.0
    %1666 = vmatprep.subr.mxu0 0.0
    %1667 = vmatpush2.msra.mxu0 0.0
    %1668 = vmatprep.subr.mxu0 0.0
    %1669 = vmatpush2.msra.mxu0 0.0
    %1670 = vmatprep.subr.mxu0 0.0
    %1671 = vmatpush2.msra.mxu0 0.0
    %1672 = vmatprep.subr.mxu0 0.0
    %1673 = vmatpush2.msra.mxu0 0.0
    %1674 = vmatprep.subr.mxu0 0.0
    %1675 = vmatpush2.msra.mxu0 0.0
    %1676 = vmatprep.mubr.f32.mxu0 0.0
    %1677 = vmatmul.mubr.f32.gmra.mxu0 %v1610
    %v1678 = vpop.f32.mrf.mxu0
    %v1679 = vadd.f32 0.0, %v1678
    %v1680 = vpop.f32.mrf.mxu0
    %1681 = vdwg.mxu0
    %v1683 = vrot.slane %v1679, 4
    %v1685 = vadd.f32 %v1608, %v1683
    %v1686 = vld [vmem:[%s1 + $0x4] sm:$0x3]
    %v1687 = vmul.f32 %v1685, 0.5
    %v1688 = vtanh.pop %v1687
    %v1689 = vmul.f32 %v1688, 0.5
    %v1690 = vadd.f32 %v1689, 0.5
    %v1691 = vtanh.pop %v1685
    %v1693 = vrot.slane %v1467, 4
    %1694 = vrot.lane.b32.xlu0 %v1693, 32
    %v1695 = vpop.permute.xlu0 %1694
    %v1697 = vmul.f32 %v1690, %v1695
    %1699 = vrot.lane.b32.xlu0 %v1691, 32
    %v1700 = vpop.permute.xlu0 %1699
    %v1702 = vmul.f32 %v1690, %v1700
    %1704 = vrot.lane.b32.xlu0 %v1702, 32
    %v1705 = vpop.permute.xlu0 %1704
    %v1707 = vadd.f32 %v1697, %v1705
    %v1708 = vtanh.pop %v1707
    %1710 = vrot.lane.b32.xlu0 %v1708, 32
    %v1711 = vpop.permute.xlu0 %1710
    %v1713 = vmul.f32 %v1690, %v1711
    %v1714 = vrot.slane %v1459, 4
    %1715 = vrot.lane.b32.xlu0 %v1714, 64
    %v1716 = vpop.permute.xlu0 %1715
    %v1718 = vsub.f32 %v1713, %v1716
    %1720 = vset.pattern.permute.xlu0 0
    %1721 = vperm.xlu0 %1720, %v1686
    %v1722 = vpop.permute.xlu0 %1721
    %v1725 = vrot.slane %v1718, 4
    %1726 = vrot.lane.b32.xlu0 %v1725, 64
    %v1727 = vpop.permute.xlu0 %1726
    %v1729 = vmul.f32 %v1722, %v1727
    %v1730 = vadd.f32 %v1459, %v1729
    %v1731 = vsub.f32 %v1707, %v1695
    %v1733 = vrot.slane %v1731, 4
    %1734 = vrot.lane.b32.xlu0 %v1733, 96
    %v1735 = vpop.permute.xlu0 %1734
    %v1737 = vmul.f32 %v1722, %v1735
    %v1738 = vadd.f32 %v1467, %v1737
    %1740 = vrot.lane.b32.xlu0 %v1595, 64
    %v1741 = vpop.permute.xlu0 %1740
    %1743 = vst.msk [vmem:[#allocation3 + $0xa] sm:$0x3] %vm420, %v1741
    %1744 = vst.msk [vmem:[#allocation4 + $0x4] sm:$0x3] %vm420, %v1730
    %v1745 = vld [vmem:[#allocation2 + $0x10] sm:$0x30]
    %v1746 = vsel %vm96, %v1741, 0
    %1748 = vmatprep.subr.mxu0 0.0
    %1749 = vmatpush1.msra.mxu0 0.0
    %1750 = vmatprep.subr.mxu0 0.0
    %1751 = vmatpush1.msra.mxu0 0.0
    %1752 = vmatprep.subr.mxu0 0.0
    %1753 = vmatpush1.msra.mxu0 0.0
    %1754 = vmatprep.subr.mxu0 0.0
    %1755 = vmatpush1.msra.mxu0 0.0
    %1756 = vmatprep.subr.mxu0 0.0
    %1757 = vmatpush1.msra.mxu0 0.0
    %1758 = vmatprep.subr.mxu0 0.0
    %1759 = vmatpush1.msra.mxu0 0.0
    %1760 = vmatprep.subr.mxu0 0.0
    %1761 = vmatpush1.msra.mxu0 0.0
    %1762 = vmatprep.subr.mxu0 0.0
    %1763 = vmatpush1.msra.mxu0 0.0
    %1764 = vmatprep.subr.mxu0 0.0
    %1765 = vmatpush1.msra.mxu0 0.0
    %1766 = vmatprep.subr.mxu0 0.0
    %1767 = vmatpush1.msra.mxu0 0.0
    %1768 = vmatprep.subr.mxu0 0.0
    %1769 = vmatpush1.msra.mxu0 0.0
    %1770 = vmatprep.subr.mxu0 0.0
    %1771 = vmatpush1.msra.mxu0 0.0
    %1772 = vmatprep.subr.mxu0 0.0
    %1773 = vmatpush1.msra.mxu0 %v187
    %1774 = vmatprep.subr.mxu0 0.0
    %1775 = vmatpush1.msra.mxu0 %v186
    %1776 = vmatprep.subr.mxu0 0.0
    %1777 = vmatpush1.msra.mxu0 %v185
    %1778 = vmatprep.subr.mxu0 0.0
    %1779 = vmatpush1.msra.mxu0 %v184
    %1780 = vmatprep.subr.mxu0 0.0
    %1781 = vmatpush2.msra.mxu0 0.0
    %1782 = vmatprep.subr.mxu0 0.0
    %1783 = vmatpush2.msra.mxu0 0.0
    %1784 = vmatprep.subr.mxu0 0.0
    %1785 = vmatpush2.msra.mxu0 0.0
    %1786 = vmatprep.subr.mxu0 0.0
    %1787 = vmatpush2.msra.mxu0 0.0
    %1788 = vmatprep.subr.mxu0 0.0
    %1789 = vmatpush2.msra.mxu0 0.0
    %1790 = vmatprep.subr.mxu0 0.0
    %1791 = vmatpush2.msra.mxu0 0.0
    %1792 = vmatprep.subr.mxu0 0.0
    %1793 = vmatpush2.msra.mxu0 0.0
    %1794 = vmatprep.subr.mxu0 0.0
    %1795 = vmatpush2.msra.mxu0 0.0
    %1796 = vmatprep.subr.mxu0 0.0
    %1797 = vmatpush2.msra.mxu0 0.0
    %1798 = vmatprep.subr.mxu0 0.0
    %1799 = vmatpush2.msra.mxu0 0.0
    %1800 = vmatprep.subr.mxu0 0.0
    %1801 = vmatpush2.msra.mxu0 0.0
    %1802 = vmatprep.subr.mxu0 0.0
    %1803 = vmatpush2.msra.mxu0 0.0
    %1804 = vmatprep.subr.mxu0 0.0
    %1805 = vmatpush2.msra.mxu0 0.0
    %1806 = vmatprep.subr.mxu0 0.0
    %1807 = vmatpush2.msra.mxu0 0.0
    %1808 = vmatprep.subr.mxu0 0.0
    %1809 = vmatpush2.msra.mxu0 0.0
    %1810 = vmatprep.subr.mxu0 0.0
    %1811 = vmatpush2.msra.mxu0 0.0
    %1812 = vmatprep.mubr.f32.mxu0 0.0
    %1813 = vmatmul.mubr.f32.gmra.mxu0 %v1746
    %v1814 = vpop.f32.mrf.mxu0
    %v1815 = vadd.f32 0.0, %v1814
    %v1816 = vpop.f32.mrf.mxu0
    %1817 = vdwg.mxu0
    %v1819 = vrot.slane %v1815, 4
    %v1821 = vadd.f32 %v1745, %v1819
    %v1822 = vld [vmem:[%s1 + $0xc] sm:$0x3]
    %v1823 = vmul.f32 %v1821, 0.5
    %v1824 = vtanh.pop %v1823
    %v1825 = vmul.f32 %v1824, 0.5
    %v1826 = vadd.f32 %v1825, 0.5
    %v1827 = vtanh.pop %v1821
    %v1829 = vrot.slane %v1607, 4
    %v1831 = vmul.f32 %v1826, %v1829
    %1833 = vrot.lane.b32.xlu0 %v1827, 32
    %v1834 = vpop.permute.xlu0 %1833
    %v1836 = vmul.f32 %v1826, %v1834
    %1838 = vrot.lane.b32.xlu0 %v1836, 32
    %v1839 = vpop.permute.xlu0 %1838
    %v1841 = vadd.f32 %v1831, %v1839
    %v1842 = vtanh.pop %v1841
    %1844 = vrot.lane.b32.xlu0 %v1842, 32
    %v1845 = vpop.permute.xlu0 %1844
    %v1847 = vmul.f32 %v1826, %v1845
    %v1848 = vrot.slane %v1595, 4
    %v1850 = vsub.f32 %v1847, %v1848
    %1852 = vset.pattern.permute.xlu0 0
    %1853 = vperm.xlu0 %1852, %v1822
    %v1854 = vpop.permute.xlu0 %1853
    %v1857 = vrot.slane %v1850, 4
    %1858 = vrot.lane.b32.xlu0 %v1857, 64
    %v1859 = vpop.permute.xlu0 %1858
    %v1861 = vmul.f32 %v1854, %v1859
    %1863 = vrot.lane.b32.xlu0 %v1861, 64
    %v1864 = vpop.permute.xlu0 %1863
    %v1866 = vadd.f32 %v1595, %v1864
    %v1867 = vsub.f32 %v1841, %v1829
    %v1869 = vrot.slane %v1867, 4
    %1870 = vrot.lane.b32.xlu0 %v1869, 96
    %v1871 = vpop.permute.xlu0 %1870
    %v1873 = vmul.f32 %v1854, %v1871
    %1875 = vrot.lane.b32.xlu0 %v1873, 32
    %v1876 = vpop.permute.xlu0 %1875
    %v1878 = vadd.f32 %v1607, %v1876
    %v1879 = vld [vmem:[#allocation2 + $0x8] sm:$0xc]
    %v1881 = vsel %vm96, %v1730, 0
    %1883 = vmatprep.subr.mxu0 0.0
    %1884 = vmatpush1.msra.mxu0 0.0
    %1885 = vmatprep.subr.mxu0 0.0
    %1886 = vmatpush1.msra.mxu0 0.0
    %1887 = vmatprep.subr.mxu0 0.0
    %1888 = vmatpush1.msra.mxu0 0.0
    %1889 = vmatprep.subr.mxu0 0.0
    %1890 = vmatpush1.msra.mxu0 0.0
    %1891 = vmatprep.subr.mxu0 0.0
    %1892 = vmatpush1.msra.mxu0 0.0
    %1893 = vmatprep.subr.mxu0 0.0
    %1894 = vmatpush1.msra.mxu0 0.0
    %1895 = vmatprep.subr.mxu0 0.0
    %1896 = vmatpush1.msra.mxu0 0.0
    %1897 = vmatprep.subr.mxu0 0.0
    %1898 = vmatpush1.msra.mxu0 0.0
    %1899 = vmatprep.subr.mxu0 0.0
    %1900 = vmatpush1.msra.mxu0 0.0
    %1901 = vmatprep.subr.mxu0 0.0
    %1902 = vmatpush1.msra.mxu0 0.0
    %1903 = vmatprep.subr.mxu0 0.0
    %1904 = vmatpush1.msra.mxu0 0.0
    %1905 = vmatprep.subr.mxu0 0.0
    %1906 = vmatpush1.msra.mxu0 0.0
    %1907 = vmatprep.subr.mxu0 0.0
    %1908 = vmatpush1.msra.mxu0 %v191
    %1909 = vmatprep.subr.mxu0 0.0
    %1910 = vmatpush1.msra.mxu0 %v190
    %1911 = vmatprep.subr.mxu0 0.0
    %1912 = vmatpush1.msra.mxu0 %v189
    %1913 = vmatprep.subr.mxu0 0.0
    %1914 = vmatpush1.msra.mxu0 %v188
    %1915 = vmatprep.subr.mxu0 0.0
    %1916 = vmatpush2.msra.mxu0 0.0
    %1917 = vmatprep.subr.mxu0 0.0
    %1918 = vmatpush2.msra.mxu0 0.0
    %1919 = vmatprep.subr.mxu0 0.0
    %1920 = vmatpush2.msra.mxu0 0.0
    %1921 = vmatprep.subr.mxu0 0.0
    %1922 = vmatpush2.msra.mxu0 0.0
    %1923 = vmatprep.subr.mxu0 0.0
    %1924 = vmatpush2.msra.mxu0 0.0
    %1925 = vmatprep.subr.mxu0 0.0
    %1926 = vmatpush2.msra.mxu0 0.0
    %1927 = vmatprep.subr.mxu0 0.0
    %1928 = vmatpush2.msra.mxu0 0.0
    %1929 = vmatprep.subr.mxu0 0.0
    %1930 = vmatpush2.msra.mxu0 0.0
    %1931 = vmatprep.subr.mxu0 0.0
    %1932 = vmatpush2.msra.mxu0 0.0
    %1933 = vmatprep.subr.mxu0 0.0
    %1934 = vmatpush2.msra.mxu0 0.0
    %1935 = vmatprep.subr.mxu0 0.0
    %1936 = vmatpush2.msra.mxu0 0.0
    %1937 = vmatprep.subr.mxu0 0.0
    %1938 = vmatpush2.msra.mxu0 0.0
    %1939 = vmatprep.subr.mxu0 0.0
    %1940 = vmatpush2.msra.mxu0 0.0
    %1941 = vmatprep.subr.mxu0 0.0
    %1942 = vmatpush2.msra.mxu0 0.0
    %1943 = vmatprep.subr.mxu0 0.0
    %1944 = vmatpush2.msra.mxu0 0.0
    %1945 = vmatprep.subr.mxu0 0.0
    %1946 = vmatpush2.msra.mxu0 0.0
    %1947 = vmatprep.mubr.f32.mxu0 0.0
    %1948 = vmatmul.mubr.f32.gmra.mxu0 %v1881
    %v1949 = vpop.f32.mrf.mxu0
    %v1950 = vadd.f32 0.0, %v1949
    %v1951 = vpop.f32.mrf.mxu0
    %1952 = vdwg.mxu0
    %v1954 = vrot.slane %v1950, 6
    %v1956 = vadd.f32 %v1879, %v1954
    %v1957 = vld [vmem:[%s1 + $0x2] sm:$0x3]
    %v1958 = vmul.f32 %v1956, 0.5
    %v1959 = vtanh.pop %v1958
    %v1960 = vmul.f32 %v1959, 0.5
    %v1961 = vadd.f32 %v1960, 0.5
    %v1962 = vtanh.pop %v1956
    %v1964 = vrot.slane %v1738, 6
    %1965 = vrot.lane.b32.xlu0 %v1964, 32
    %v1966 = vpop.permute.xlu0 %1965
    %v1968 = vmul.f32 %v1961, %v1966
    %1970 = vrot.lane.b32.xlu0 %v1962, 32
    %v1971 = vpop.permute.xlu0 %1970
    %v1973 = vmul.f32 %v1961, %v1971
    %1975 = vrot.lane.b32.xlu0 %v1973, 32
    %v1976 = vpop.permute.xlu0 %1975
    %v1978 = vadd.f32 %v1968, %v1976
    %v1979 = vtanh.pop %v1978
    %1981 = vrot.lane.b32.xlu0 %v1979, 32
    %v1982 = vpop.permute.xlu0 %1981
    %v1984 = vmul.f32 %v1961, %v1982
    %v1985 = vrot.slane %v1730, 6
    %1986 = vrot.lane.b32.xlu0 %v1985, 64
    %v1987 = vpop.permute.xlu0 %1986
    %v1989 = vsub.f32 %v1984, %v1987
    %1991 = vset.pattern.permute.xlu0 0
    %1992 = vperm.xlu0 %1991, %v1957
    %v1993 = vpop.permute.xlu0 %1992
    %v1996 = vrot.slane %v1989, 2
    %1997 = vrot.lane.b32.xlu0 %v1996, 64
    %v1998 = vpop.permute.xlu0 %1997
    %v2000 = vmul.f32 %v1993, %v1998
    %v2001 = vadd.f32 %v1730, %v2000
    %v2002 = vsub.f32 %v1978, %v1966
    %v2004 = vrot.slane %v2002, 2
    %2005 = vrot.lane.b32.xlu0 %v2004, 96
    %v2006 = vpop.permute.xlu0 %2005
    %v2008 = vmul.f32 %v1993, %v2006
    %v2009 = vadd.f32 %v1738, %v2008
    %2011 = vrot.lane.b32.xlu0 %v1866, 64
    %v2012 = vpop.permute.xlu0 %2011
    %2014 = vst.msk [vmem:[#allocation3 + $0xc] sm:$0x3] %vm420, %v2012
    %2015 = vst.msk [vmem:[#allocation4 + $0x2] sm:$0x3] %vm420, %v2001
    %v2016 = vld [vmem:[#allocation2 + $0x10] sm:$0xc0]
    %v2017 = vsel %vm96, %v2012, 0
    %2019 = vmatprep.subr.mxu0 0.0
    %2020 = vmatpush1.msra.mxu0 0.0
    %2021 = vmatprep.subr.mxu0 0.0
    %2022 = vmatpush1.msra.mxu0 0.0
    %2023 = vmatprep.subr.mxu0 0.0
    %2024 = vmatpush1.msra.mxu0 0.0
    %2025 = vmatprep.subr.mxu0 0.0
    %2026 = vmatpush1.msra.mxu0 0.0
    %2027 = vmatprep.subr.mxu0 0.0
    %2028 = vmatpush1.msra.mxu0 0.0
    %2029 = vmatprep.subr.mxu0 0.0
    %2030 = vmatpush1.msra.mxu0 0.0
    %2031 = vmatprep.subr.mxu0 0.0
    %2032 = vmatpush1.msra.mxu0 0.0
    %2033 = vmatprep.subr.mxu0 0.0
    %2034 = vmatpush1.msra.mxu0 0.0
    %2035 = vmatprep.subr.mxu0 0.0
    %2036 = vmatpush1.msra.mxu0 0.0
    %2037 = vmatprep.subr.mxu0 0.0
    %2038 = vmatpush1.msra.mxu0 0.0
    %2039 = vmatprep.subr.mxu0 0.0
    %2040 = vmatpush1.msra.mxu0 0.0
    %2041 = vmatprep.subr.mxu0 0.0
    %2042 = vmatpush1.msra.mxu0 0.0
    %2043 = vmatprep.subr.mxu0 0.0
    %2044 = vmatpush1.msra.mxu0 %v187
    %2045 = vmatprep.subr.mxu0 0.0
    %2046 = vmatpush1.msra.mxu0 %v186
    %2047 = vmatprep.subr.mxu0 0.0
    %2048 = vmatpush1.msra.mxu0 %v185
    %2049 = vmatprep.subr.mxu0 0.0
    %2050 = vmatpush1.msra.mxu0 %v184
    %2051 = vmatprep.subr.mxu0 0.0
    %2052 = vmatpush2.msra.mxu0 0.0
    %2053 = vmatprep.subr.mxu0 0.0
    %2054 = vmatpush2.msra.mxu0 0.0
    %2055 = vmatprep.subr.mxu0 0.0
    %2056 = vmatpush2.msra.mxu0 0.0
    %2057 = vmatprep.subr.mxu0 0.0
    %2058 = vmatpush2.msra.mxu0 0.0
    %2059 = vmatprep.subr.mxu0 0.0
    %2060 = vmatpush2.msra.mxu0 0.0
    %2061 = vmatprep.subr.mxu0 0.0
    %2062 = vmatpush2.msra.mxu0 0.0
    %2063 = vmatprep.subr.mxu0 0.0
    %2064 = vmatpush2.msra.mxu0 0.0
    %2065 = vmatprep.subr.mxu0 0.0
    %2066 = vmatpush2.msra.mxu0 0.0
    %2067 = vmatprep.subr.mxu0 0.0
    %2068 = vmatpush2.msra.mxu0 0.0
    %2069 = vmatprep.subr.mxu0 0.0
    %2070 = vmatpush2.msra.mxu0 0.0
    %2071 = vmatprep.subr.mxu0 0.0
    %2072 = vmatpush2.msra.mxu0 0.0
    %2073 = vmatprep.subr.mxu0 0.0
    %2074 = vmatpush2.msra.mxu0 0.0
    %2075 = vmatprep.subr.mxu0 0.0
    %2076 = vmatpush2.msra.mxu0 0.0
    %2077 = vmatprep.subr.mxu0 0.0
    %2078 = vmatpush2.msra.mxu0 0.0
    %2079 = vmatprep.subr.mxu0 0.0
    %2080 = vmatpush2.msra.mxu0 0.0
    %2081 = vmatprep.subr.mxu0 0.0
    %2082 = vmatpush2.msra.mxu0 0.0
    %2083 = vmatprep.mubr.f32.mxu0 0.0
    %2084 = vmatmul.mubr.f32.gmra.mxu0 %v2017
    %v2085 = vpop.f32.mrf.mxu0
    %v2086 = vadd.f32 0.0, %v2085
    %v2087 = vpop.f32.mrf.mxu0
    %2088 = vdwg.mxu0
    %v2090 = vrot.slane %v2086, 2
    %v2092 = vadd.f32 %v2016, %v2090
    %v2093 = vld [vmem:[%s1 + $0xe] sm:$0x3]
    %v2094 = vmul.f32 %v2092, 0.5
    %v2095 = vtanh.pop %v2094
    %v2096 = vmul.f32 %v2095, 0.5
    %v2097 = vadd.f32 %v2096, 0.5
    %v2098 = vtanh.pop %v2092
    %v2100 = vrot.slane %v1878, 2
    %v2102 = vmul.f32 %v2097, %v2100
    %2104 = vrot.lane.b32.xlu0 %v2098, 32
    %v2105 = vpop.permute.xlu0 %2104
    %v2107 = vmul.f32 %v2097, %v2105
    %2109 = vrot.lane.b32.xlu0 %v2107, 32
    %v2110 = vpop.permute.xlu0 %2109
    %v2112 = vadd.f32 %v2102, %v2110
    %v2113 = vtanh.pop %v2112
    %2115 = vrot.lane.b32.xlu0 %v2113, 32
    %v2116 = vpop.permute.xlu0 %2115
    %v2118 = vmul.f32 %v2097, %v2116
    %v2119 = vrot.slane %v1866, 2
    %v2121 = vsub.f32 %v2118, %v2119
    %2123 = vset.pattern.permute.xlu0 0
    %2124 = vperm.xlu0 %2123, %v2093
    %v2125 = vpop.permute.xlu0 %2124
    %v2128 = vrot.slane %v2121, 6
    %2129 = vrot.lane.b32.xlu0 %v2128, 64
    %v2130 = vpop.permute.xlu0 %2129
    %v2132 = vmul.f32 %v2125, %v2130
    %2134 = vrot.lane.b32.xlu0 %v2132, 64
    %v2135 = vpop.permute.xlu0 %2134
    %v2137 = vadd.f32 %v1866, %v2135
    %v2138 = vld [vmem:[#allocation2 + $0x8] sm:$0x3]
    %v2140 = vsel %vm96, %v2001, 0
    %2142 = vmatprep.subr.mxu0 0.0
    %2143 = vmatpush1.msra.mxu0 0.0
    %2144 = vmatprep.subr.mxu0 0.0
    %2145 = vmatpush1.msra.mxu0 0.0
    %2146 = vmatprep.subr.mxu0 0.0
    %2147 = vmatpush1.msra.mxu0 0.0
    %2148 = vmatprep.subr.mxu0 0.0
    %2149 = vmatpush1.msra.mxu0 0.0
    %2150 = vmatprep.subr.mxu0 0.0
    %2151 = vmatpush1.msra.mxu0 0.0
    %2152 = vmatprep.subr.mxu0 0.0
    %2153 = vmatpush1.msra.mxu0 0.0
    %2154 = vmatprep.subr.mxu0 0.0
    %2155 = vmatpush1.msra.mxu0 0.0
    %2156 = vmatprep.subr.mxu0 0.0
    %2157 = vmatpush1.msra.mxu0 0.0
    %2158 = vmatprep.subr.mxu0 0.0
    %2159 = vmatpush1.msra.mxu0 0.0
    %2160 = vmatprep.subr.mxu0 0.0
    %2161 = vmatpush1.msra.mxu0 0.0
    %2162 = vmatprep.subr.mxu0 0.0
    %2163 = vmatpush1.msra.mxu0 0.0
    %2164 = vmatprep.subr.mxu0 0.0
    %2165 = vmatpush1.msra.mxu0 0.0
    %2166 = vmatprep.subr.mxu0 0.0
    %2167 = vmatpush1.msra.mxu0 %v191
    %2168 = vmatprep.subr.mxu0 0.0
    %2169 = vmatpush1.msra.mxu0 %v190
    %2170 = vmatprep.subr.mxu0 0.0
    %2171 = vmatpush1.msra.mxu0 %v189
    %2172 = vmatprep.subr.mxu0 0.0
    %2173 = vmatpush1.msra.mxu0 %v188
    %2174 = vmatprep.subr.mxu0 0.0
    %2175 = vmatpush2.msra.mxu0 0.0
    %2176 = vmatprep.subr.mxu0 0.0
    %2177 = vmatpush2.msra.mxu0 0.0
    %2178 = vmatprep.subr.mxu0 0.0
    %2179 = vmatpush2.msra.mxu0 0.0
    %2180 = vmatprep.subr.mxu0 0.0
    %2181 = vmatpush2.msra.mxu0 0.0
    %2182 = vmatprep.subr.mxu0 0.0
    %2183 = vmatpush2.msra.mxu0 0.0
    %2184 = vmatprep.subr.mxu0 0.0
    %2185 = vmatpush2.msra.mxu0 0.0
    %2186 = vmatprep.subr.mxu0 0.0
    %2187 = vmatpush2.msra.mxu0 0.0
    %2188 = vmatprep.subr.mxu0 0.0
    %2189 = vmatpush2.msra.mxu0 0.0
    %2190 = vmatprep.subr.mxu0 0.0
    %2191 = vmatpush2.msra.mxu0 0.0
    %2192 = vmatprep.subr.mxu0 0.0
    %2193 = vmatpush2.msra.mxu0 0.0
    %2194 = vmatprep.subr.mxu0 0.0
    %2195 = vmatpush2.msra.mxu0 0.0
    %2196 = vmatprep.subr.mxu0 0.0
    %2197 = vmatpush2.msra.mxu0 0.0
    %2198 = vmatprep.subr.mxu0 0.0
    %2199 = vmatpush2.msra.mxu0 0.0
    %2200 = vmatprep.subr.mxu0 0.0
    %2201 = vmatpush2.msra.mxu0 0.0
    %2202 = vmatprep.subr.mxu0 0.0
    %2203 = vmatpush2.msra.mxu0 0.0
    %2204 = vmatprep.subr.mxu0 0.0
    %2205 = vmatpush2.msra.mxu0 0.0
    %2206 = vmatprep.mubr.f32.mxu0 0.0
    %2207 = vmatmul.mubr.f32.gmra.mxu0 %v2140
    %v2208 = vpop.f32.mrf.mxu0
    %v2209 = vadd.f32 0.0, %v2208
    %v2210 = vpop.f32.mrf.mxu0
    %2211 = vdwg.mxu0
    %v2212 = vadd.f32 %v2138, %v2209
    %v2213 = vld [vmem:[%s1] sm:$0x3]
    %v2214 = vmul.f32 %v2212, 0.5
    %v2215 = vtanh.pop %v2214
    %v2216 = vmul.f32 %v2215, 0.5
    %v2217 = vadd.f32 %v2216, 0.5
    %v2218 = vtanh.pop %v2212
    %2220 = vrot.lane.b32.xlu0 %v2009, 32
    %v2221 = vpop.permute.xlu0 %2220
    %v2223 = vmul.f32 %v2217, %v2221
    %2225 = vrot.lane.b32.xlu0 %v2218, 32
    %v2226 = vpop.permute.xlu0 %2225
    %v2228 = vmul.f32 %v2217, %v2226
    %2230 = vrot.lane.b32.xlu0 %v2228, 32
    %v2231 = vpop.permute.xlu0 %2230
    %v2233 = vadd.f32 %v2223, %v2231
    %v2234 = vtanh.pop %v2233
    %2236 = vrot.lane.b32.xlu0 %v2234, 32
    %v2237 = vpop.permute.xlu0 %2236
    %v2239 = vmul.f32 %v2217, %v2237
    %2240 = vrot.lane.b32.xlu0 %v2001, 64
    %v2241 = vpop.permute.xlu0 %2240
    %v2243 = vsub.f32 %v2239, %v2241
    %2245 = vset.pattern.permute.xlu0 0
    %2246 = vperm.xlu0 %2245, %v2213
    %v2247 = vpop.permute.xlu0 %2246
    %v2249 = vmul.f32 %v2247, %v2243
    %2251 = vrot.lane.b32.xlu0 %v2249, 64
    %v2252 = vpop.permute.xlu0 %2251
    %v2254 = vadd.f32 %v2001, %v2252
    %2256 = vrot.lane.b32.xlu0 %v2137, 64
    %v2257 = vpop.permute.xlu0 %2256
    %2259 = vst.msk [vmem:[#allocation3 + $0xe] sm:$0x3] %vm420, %v2257
    %2260 = vst.msk [vmem:[#allocation4] sm:$0x3] %vm420, %v2254
    %v2261 = vld [vmem:[%s7] sm:$0x3]
    %v2262 = vld [vmem:[#allocation3] sm:$0xff]
    %v2263 = vld [vmem:[#allocation3 + $0x8] sm:$0xff]
    %v2264 = vld [vmem:[#allocation4] sm:$0xff]
    %v2265 = vld [vmem:[#allocation4 + $0x8] sm:$0xff]
    %2267 = vrot.lane.b32.xlu0 %v2261, 96
    %v2268 = vpop.permute.xlu0 %2267
    %v2269 = vsel %vm96, %v2268, 0
    %v2272 = vsel %vm96, %v2264, 0
    %v2275 = vsel %vm96, %v2265, 0
    %2277 = vmatprep.subr.mxu0 0.0
    %2278 = vmatpush1.xpose.msra.mxu0 0.0
    %2279 = vmatprep.subr.mxu0 0.0
    %2280 = vmatpush1.xpose.msra.mxu0 0.0
    %2281 = vmatprep.subr.mxu0 0.0
    %2282 = vmatpush1.xpose.msra.mxu0 0.0
    %2283 = vmatprep.subr.mxu0 0.0
    %2284 = vmatpush1.xpose.msra.mxu0 0.0
    %2285 = vmatprep.subr.mxu0 0.0
    %2286 = vmatpush1.xpose.msra.mxu0 0.0
    %2287 = vmatprep.subr.mxu0 0.0
    %2288 = vmatpush1.xpose.msra.mxu0 0.0
    %2289 = vmatprep.subr.mxu0 0.0
    %2290 = vmatpush1.xpose.msra.mxu0 0.0
    %2291 = vmatprep.subr.mxu0 0.0
    %2292 = vmatpush1.xpose.msra.mxu0 0.0
    %2293 = vmatprep.subr.mxu0 0.0
    %2294 = vmatpush1.xpose.msra.mxu0 0.0
    %2295 = vmatprep.subr.mxu0 0.0
    %2296 = vmatpush1.xpose.msra.mxu0 0.0
    %2297 = vmatprep.subr.mxu0 0.0
    %2298 = vmatpush1.xpose.msra.mxu0 0.0
    %2299 = vmatprep.subr.mxu0 0.0
    %2300 = vmatpush1.xpose.msra.mxu0 0.0
    %2301 = vmatprep.subr.mxu0 0.0
    %2302 = vmatpush1.xpose.msra.mxu0 0.0
    %2303 = vmatprep.subr.mxu0 0.0
    %2304 = vmatpush1.xpose.msra.mxu0 0.0
    %2305 = vmatprep.subr.mxu0 0.0
    %2306 = vmatpush1.xpose.msra.mxu0 %v2275
    %2307 = vmatprep.subr.mxu0 0.0
    %2308 = vmatpush1.xpose.msra.mxu0 %v2272
    %2309 = vmatprep.subr.mxu0 0.0
    %2310 = vmatpush2.xpose.msra.mxu0 0.0
    %2311 = vmatprep.subr.mxu0 0.0
    %2312 = vmatpush2.xpose.msra.mxu0 0.0
    %2313 = vmatprep.subr.mxu0 0.0
    %2314 = vmatpush2.xpose.msra.mxu0 0.0
    %2315 = vmatprep.subr.mxu0 0.0
    %2316 = vmatpush2.xpose.msra.mxu0 0.0
    %2317 = vmatprep.subr.mxu0 0.0
    %2318 = vmatpush2.xpose.msra.mxu0 0.0
    %2319 = vmatprep.subr.mxu0 0.0
    %2320 = vmatpush2.xpose.msra.mxu0 0.0
    %2321 = vmatprep.subr.mxu0 0.0
    %2322 = vmatpush2.xpose.msra.mxu0 0.0
    %2323 = vmatprep.subr.mxu0 0.0
    %2324 = vmatpush2.xpose.msra.mxu0 0.0
    %2325 = vmatprep.subr.mxu0 0.0
    %2326 = vmatpush2.xpose.msra.mxu0 0.0
    %2327 = vmatprep.subr.mxu0 0.0
    %2328 = vmatpush2.xpose.msra.mxu0 0.0
    %2329 = vmatprep.subr.mxu0 0.0
    %2330 = vmatpush2.xpose.msra.mxu0 0.0
    %2331 = vmatprep.subr.mxu0 0.0
    %2332 = vmatpush2.xpose.msra.mxu0 0.0
    %2333 = vmatprep.subr.mxu0 0.0
    %2334 = vmatpush2.xpose.msra.mxu0 0.0
    %2335 = vmatprep.subr.mxu0 0.0
    %2336 = vmatpush2.xpose.msra.mxu0 0.0
    %2337 = vmatprep.subr.mxu0 0.0
    %2338 = vmatpush2.xpose.msra.mxu0 0.0
    %2339 = vmatprep.subr.mxu0 0.0
    %2340 = vmatpush2.xpose.msra.mxu0 0.0
    %2341 = vmatprep.mubr.f32.mxu0 0.0
    %2342 = vmatmul.mubr.f32.gmra.mxu0 %v2269
    %v2343 = vpop.f32.mrf.mxu0
    %v2344 = vadd.f32 0.0, %v2343
    %v2345 = vpop.f32.mrf.mxu0
    %2346 = vdwg.mxu0
    %v2347 = vsel %vm96, %v2261, 0
    %v2350 = vsel %vm96, %v2262, 0
    %v2353 = vsel %vm96, %v2263, 0
    %2355 = vmatprep.subr.mxu0 0.0
    %2356 = vmatpush1.xpose.msra.mxu0 0.0
    %2357 = vmatprep.subr.mxu0 0.0
    %2358 = vmatpush1.xpose.msra.mxu0 0.0
    %2359 = vmatprep.subr.mxu0 0.0
    %2360 = vmatpush1.xpose.msra.mxu0 0.0
    %2361 = vmatprep.subr.mxu0 0.0
    %2362 = vmatpush1.xpose.msra.mxu0 0.0
    %2363 = vmatprep.subr.mxu0 0.0
    %2364 = vmatpush1.xpose.msra.mxu0 0.0
    %2365 = vmatprep.subr.mxu0 0.0
    %2366 = vmatpush1.xpose.msra.mxu0 0.0
    %2367 = vmatprep.subr.mxu0 0.0
    %2368 = vmatpush1.xpose.msra.mxu0 0.0
    %2369 = vmatprep.subr.mxu0 0.0
    %2370 = vmatpush1.xpose.msra.mxu0 0.0
    %2371 = vmatprep.subr.mxu0 0.0
    %2372 = vmatpush1.xpose.msra.mxu0 0.0
    %2373 = vmatprep.subr.mxu0 0.0
    %2374 = vmatpush1.xpose.msra.mxu0 0.0
    %2375 = vmatprep.subr.mxu0 0.0
    %2376 = vmatpush1.xpose.msra.mxu0 0.0
    %2377 = vmatprep.subr.mxu0 0.0
    %2378 = vmatpush1.xpose.msra.mxu0 0.0
    %2379 = vmatprep.subr.mxu0 0.0
    %2380 = vmatpush1.xpose.msra.mxu0 0.0
    %2381 = vmatprep.subr.mxu0 0.0
    %2382 = vmatpush1.xpose.msra.mxu0 0.0
    %2383 = vmatprep.subr.mxu0 0.0
    %2384 = vmatpush1.xpose.msra.mxu0 %v2353
    %2385 = vmatprep.subr.mxu0 0.0
    %2386 = vmatpush1.xpose.msra.mxu0 %v2350
    %2387 = vmatprep.subr.mxu0 0.0
    %2388 = vmatpush2.xpose.msra.mxu0 0.0
    %2389 = vmatprep.subr.mxu0 0.0
    %2390 = vmatpush2.xpose.msra.mxu0 0.0
    %2391 = vmatprep.subr.mxu0 0.0
    %2392 = vmatpush2.xpose.msra.mxu0 0.0
    %2393 = vmatprep.subr.mxu0 0.0
    %2394 = vmatpush2.xpose.msra.mxu0 0.0
    %2395 = vmatprep.subr.mxu0 0.0
    %2396 = vmatpush2.xpose.msra.mxu0 0.0
    %2397 = vmatprep.subr.mxu0 0.0
    %2398 = vmatpush2.xpose.msra.mxu0 0.0
    %2399 = vmatprep.subr.mxu0 0.0
    %2400 = vmatpush2.xpose.msra.mxu0 0.0
    %2401 = vmatprep.subr.mxu0 0.0
    %2402 = vmatpush2.xpose.msra.mxu0 0.0
    %2403 = vmatprep.subr.mxu0 0.0
    %2404 = vmatpush2.xpose.msra.mxu0 0.0
    %2405 = vmatprep.subr.mxu0 0.0
    %2406 = vmatpush2.xpose.msra.mxu0 0.0
    %2407 = vmatprep.subr.mxu0 0.0
    %2408 = vmatpush2.xpose.msra.mxu0 0.0
    %2409 = vmatprep.subr.mxu0 0.0
    %2410 = vmatpush2.xpose.msra.mxu0 0.0
    %2411 = vmatprep.subr.mxu0 0.0
    %2412 = vmatpush2.xpose.msra.mxu0 0.0
    %2413 = vmatprep.subr.mxu0 0.0
    %2414 = vmatpush2.xpose.msra.mxu0 0.0
    %2415 = vmatprep.subr.mxu0 0.0
    %2416 = vmatpush2.xpose.msra.mxu0 0.0
    %2417 = vmatprep.subr.mxu0 0.0
    %2418 = vmatpush2.xpose.msra.mxu0 0.0
    %2419 = vmatprep.mubr.f32.mxu0 0.0
    %2420 = vmatmul.mubr.f32.gmra.mxu0 %v2347
    %v2421 = vpop.f32.mrf.mxu0
    %v2422 = vadd.f32 %v2344, %v2421
    %v2423 = vpop.f32.mrf.mxu0
    %2424 = vdwg.mxu0
    %v2425 = vld [vmem:[%s8] sm:$0x3]
    %2427 = vset.pattern.permute.xlu0 0
    %2428 = vperm.xlu0 %2427, %v2425
    %v2429 = vpop.permute.xlu0 %2428
    %v2431 = vadd.f32 %v2422, %v2429
    %vm2432 = vcmp.gt.f32.partialorder %v2431, 20.0
    %v2433 = vmin.f32 %v2431, 20.0
    %v2434 = vmul.f32 %v2433, 1.442695
    %v2435 = vpow.pop %v2434
    %v2436 = vadd.f32 %v2435, 1.0
    %v2437 = vlog2.pop %v2436
    %v2438 = vmul.f32 %v2437, 0.6931472
    %v2439 = vsel %vm2432, %v2431, %v2438
    %v2440 = vmax.f32 %v2439, 1e-06
    %v2441 = vmin.f32 %v2440, 100.0
    %v2442 = vmul.f32 %v2441, -2.4849067
    %v2443 = vmul.f32 %v2442, 1.442695
    %v2444 = vpow.pop %v2443
    %v2445 = vsub.f32 1.0, %v2444
    %v2446 = vmax.f32 %v2445, 1e-12
    %v2447 = vmin.f32 %v2446, 1.0
    %v2448 = vlog2.pop %v2447
    %v2449 = vmul.f32 %v2448, 0.6931472
    %v2451 = vrot.slane %v2449, 7
    %v2453 = vmul.f32 %v2441, %v2451
    %v2454 = vmul.f32 %v2453, 1.442695
    %v2455 = vpow.pop %v2454
    %v2456 = vsub.f32 1.0, %v2455
    %v2457 = vmul.f32 %v2441, -0.087011375
    %v2458 = vmul.f32 %v2457, 1.442695
    %v2459 = vpow.pop %v2458
    %v2460 = vsub.f32 1.0, %v2459
    %v2461 = vmax.f32 %v2460, 1e-12
    %v2462 = vmin.f32 %v2461, 1.0
    %v2463 = vlog2.pop %v2462
    %v2464 = vmul.f32 %v2463, 0.6931472
    %v2466 = vrot.slane %v2464, 7
    %v2468 = vmul.f32 %v2441, %v2466
    %v2469 = vmul.f32 %v2468, 1.442695
    %v2470 = vpow.pop %v2469
    %v2471 = vsub.f32 1.0, %v2470
    %v2472 = vsub.f32 1.0, %v2471
    %v2473 = vrcp.pop %v2441
    %v2474 = vmul.f32 %v2441, %v2473
    %v2475 = vsub.f32 2.0, %v2474
    %v2476 = vmul.f32 %v2473, %v2475
    %v2477 = vadd.f32 %v2476, 1.0
    %v2479 = vrot.slane %v2441, 1
    %v2481 = vadd.f32 %v2477, %v2479
    %v2483 = vrot.slane %v2481, 6
    %vm2485 = vcmask 1040384
    %v2486 = vsel %vm2485, %v2477, %v2441
    %vm2487 = vcmask 1041408
    %v2488 = vsel %vm2487, %v2486, %v2483
    %v2489 = vsub.f32 %v2488, 1.0
    %v2490 = vadd.f32 %v2489, 7.0
    %v2491 = vadd.f32 %v2490, 0.5
    %v2492 = vadd.f32 %v2489, 1.0
    %v2493 = vrcp.pop %v2492
    %v2494 = vmul.f32 %v2492, %v2493
    %v2495 = vsub.f32 2.0, %v2494
    %v2496 = vmul.f32 %v2493, %v2495
    %v2497 = vmul.f32 %v2496, 676.5204
    %v2498 = vadd.f32 %v2497, 1.0
    %v2499 = vadd.f32 %v2489, 2.0
    %v2500 = vrcp.pop %v2499
    %v2501 = vmul.f32 %v2499, %v2500
    %v2502 = vsub.f32 2.0, %v2501
    %v2503 = vmul.f32 %v2500, %v2502
    %v2504 = vmul.f32 %v2503, -1259.1392
    %v2505 = vadd.f32 %v2498, %v2504
    %v2506 = vadd.f32 %v2489, 3.0
    %v2507 = vrcp.pop %v2506
    %v2508 = vmul.f32 %v2506, %v2507
    %v2509 = vsub.f32 2.0, %v2508
    %v2510 = vmul.f32 %v2507, %v2509
    %v2511 = vmul.f32 %v2510, 771.3234
    %v2512 = vadd.f32 %v2505, %v2511
    %v2513 = vadd.f32 %v2489, 4.0
    %v2514 = vrcp.pop %v2513
    %v2515 = vmul.f32 %v2513, %v2514
    %v2516 = vsub.f32 2.0, %v2515
    %v2517 = vmul.f32 %v2514, %v2516
    %v2518 = vmul.f32 %v2517, -176.61504
    %v2519 = vadd.f32 %v2512, %v2518
    %v2520 = vadd.f32 %v2489, 5.0
    %v2521 = vrcp.pop %v2520
    %v2522 = vmul.f32 %v2520, %v2521
    %v2523 = vsub.f32 2.0, %v2522
    %v2524 = vmul.f32 %v2521, %v2523
    %v2525 = vmul.f32 %v2524, 12.507343
    %v2526 = vadd.f32 %v2519, %v2525
    %v2527 = vadd.f32 %v2489, 6.0
    %v2528 = vrcp.pop %v2527
    %v2529 = vmul.f32 %v2527, %v2528
    %v2530 = vsub.f32 2.0, %v2529
    %v2531 = vmul.f32 %v2528, %v2530
    %v2532 = vmul.f32 %v2531, -0.1385711
    %v2533 = vadd.f32 %v2526, %v2532
    %v2534 = vrcp.pop %v2490
    %v2535 = vmul.f32 %v2490, %v2534
    %v2536 = vsub.f32 2.0, %v2535
    %v2537 = vmul.f32 %v2534, %v2536
    %v2538 = vmul.f32 %v2537, 9.984369e-06
    %v2539 = vadd.f32 %v2533, %v2538
    %v2540 = vadd.f32 %v2489, 8.0
    %v2541 = vrcp.pop %v2540
    %v2542 = vmul.f32 %v2540, %v2541
    %v2543 = vsub.f32 2.0, %v2542
    %v2544 = vmul.f32 %v2541, %v2543
    %v2545 = vmul.f32 %v2544, 1.5056327e-07
    %v2546 = vadd.f32 %v2539, %v2545
    %v2547 = vadd.f32 %v2489, 0.5
    %v2548 = vlog2.pop %v2491
    %v2549 = vmul.f32 %v2548, 0.6931472
    %v2550 = vmul.f32 %v2547, %v2549
    %v2551 = vadd.f32 %v2550, 0.9189385
    %v2552 = vsub.f32 %v2551, %v2491
    %v2553 = vlog2.pop %v2546
    %v2554 = vmul.f32 %v2553, 0.6931472
    %v2555 = vadd.f32 %v2552, %v2554
    %v2557 = vrot.slane %v2555, 1
    %v2559 = vadd.f32 %v2555, %v2557
    %v2560 = vrot.slane %v2555, 2
    %v2562 = vsub.f32 %v2559, %v2560
    %v2563 = vmul.f32 %v2562, 1.442695
    %v2564 = vpow.pop %v2563
    %v2566 = vrot.slane %v2564, 7
    %v2568 = vmul.f32 %v2441, %v2566
    %v2569 = vmul.f32 %v2568, 1.2
    %v2570 = vadd.f32 %v2569, -0.1
    %v2571 = vmax.f32 %v2570, 0.0
    %v2572 = vmin.f32 %v2571, 1.0
    %v2573 = vsub.f32 1.0, %v2456
    %v2574 = vsub.f32 %v2573, %v2472
    %vm2575 = vcmp.gt.f32.partialorder %v2456, %v2472
    %v2576 = vsel %vm2575, 0.0, 1.0
    %vm2577 = vcmp.gt.f32.partialorder %v2574, %v2456
    %vm2578 = vcmp.gt.f32.partialorder %v2574, %v2472
    %vm2579 = vmand %vm2577, %vm2578
    %v2580 = vsel %vm2579, %v2572, %v2576
    %v2581 = vld [vmem:[%s2] sm:$0x1]
    %vm2582 = vcmp.gt.f32.partialorder %v2581, 0.0
    %v2585 = vunpack.c.l.s4 1966171168
    %v2586 = vunpack.c.0.s8 %v2585
    %v2587 = vlaneseq
    %v2588 = vshrl.u32 %v2587, 7
    %v2589 = vsub.s32 %v2586, %v2588
    %v2590 = vrot.slane %v2580, %v2589
    %v2591 = vcombine.high %v2590, %v2590
    %v2593 = vunpack.c.l.s4 1966171168
    %v2594 = vunpack.c.0.s8 %v2593
    %v2595 = vlaneseq
    %v2596 = vshrl.u32 %v2595, 7
    %v2597 = vsub.s32 %v2594, %v2596
    %v2598 = vrot.slane %v2591, %v2597
    %v2600 = vsel %vm2582, %v2598, 0.0
    %vm2601 = vcmask 122880
    %2602 = vst.msk [vmem:[#allocation11] sm:$0x1] %vm2601, %v2600
    // Predicated region
    $region50: #{tpu_custom_call.1} parent=1 // pred_check
      _
    $region51: #{tpu_custom_call.1} parent=1 // pred_check_branch
      %2604 = sbr.rel (0) target = $region53
    $region52: #{tpu_custom_call.1} parent=1 // pred_region
      %s2606 = ssub.s32 16, 16
      %2607 = vsyncadd [#allocation7], %s2606
      %s2609 = sshll.u32 [#allocation11], 4
      %s2610 = int_to_ptr.vmem [resolvable:$true] %s2609
      %2612 = dma.vmem_to_hbm [thread:$0]  %s2610, 16, %s9, [#allocation7]
    $region53: #{tpu_custom_call.1} parent=1 // pred_fallthru
      _
    // Predicated region
    $region54: #{tpu_custom_call.1} parent=1 // pred_check
      _
    $region55: #{tpu_custom_call.1} parent=1 // pred_check_branch
      %2614 = sbr.rel (0) target = $region57
    $region56: #{tpu_custom_call.1} parent=1 // pred_region
      %2615 = dma.done [#allocation7], 16
    $region57: #{tpu_custom_call.1} parent=1 // pred_fallthru
      _
    %2616 = vsyncpa [#allocation6], 1
    %2617 = vsyncpa [#allocation9], 1
    %2618 = vsyncpa [#allocation7], 1

</llo_original>
